<compile_context>
chip_gen: v7x
topology: tpu7x:2x2x1
jax: 0.10.0
libtpu: 0.0.40
codegen_flags: <defaults>
</compile_context>

<pallas_src>
import jax
import jax.numpy as jnp
from jax.experimental import pallas as pl
from jax.experimental.pallas import tpu as pltpu

HIDDEN = 64


def _sigmoid(x):
    # sigmoid(x) = 0.5 * tanh(0.5 x) + 0.5  -> one native EUP op (vs exp+recip)
    return 0.5 * jnp.tanh(0.5 * x) + 0.5


def _gates_to_hc(gates, c, hid):
    """Elementwise LSTM cell math. gates: (1, 4H) f32, PyTorch order i,f,g,o."""
    i = _sigmoid(gates[:, 0:hid])
    f = _sigmoid(gates[:, hid:2 * hid])
    g = jnp.tanh(gates[:, 2 * hid:3 * hid])
    o = _sigmoid(gates[:, 3 * hid:4 * hid])
    c_new = f * c + i * g
    h_new = o * jnp.tanh(c_new)
    return h_new, c_new


def vae_kernel(
    # inputs
    x_ref, xp_ref, eps_ref,
    w_proj_ref, w_rec_ref, b_lstm_ref, w_out_ref, b_out_ref,
    # outputs
    recon_ref, enc_ref,
    # scratch
    henc_ref, hdec_ref,
):
    f32 = jnp.float32
    bf16 = jnp.bfloat16

    seq_len = x_ref.shape[0]            # static
    in_size = x_ref.shape[1]
    extra = xp_ref.shape[1]
    feat = eps_ref.shape[1]
    feat2 = enc_ref.shape[1]
    recon_size = recon_ref.shape[1]
    hid = w_rec_ref.shape[0] // 4

    # ---- static weight views (packed blobs) ----
    # recurrent weights (bf16), all 64-row aligned slices:
    w_hh1 = w_rec_ref[0:hid, :]                   # encoder   (H, 4H)
    w_hhd0 = w_rec_ref[hid:2 * hid, :]            # decoder L0 (H, 4H)
    w_d1 = w_rec_ref[2 * hid:4 * hid, :]          # decoder L1 fused [ih; hh] (2H, 4H)
    # projection weights (bf16) and biases (f32), tiny -> load once, slice value
    w_proj = w_proj_ref[...]                      # (in + F + E, 4H)
    b_lstm = b_lstm_ref[...]                      # (3, 4H)
    b1 = b_lstm[0:1, :]
    bd0 = b_lstm[1:2, :]
    bd1 = b_lstm[2:3, :]

    # ---------------- encoder LSTM (1 layer) ----------------
    # input projection for the whole sequence hoisted out of the recurrence
    pre1 = jnp.dot(x_ref[...], w_proj[0:in_size, :],
                   preferred_element_type=f32) + b1
    h = jnp.zeros((1, hid), f32)
    c = jnp.zeros((1, hid), f32)
    for t in range(seq_len):            # fully unrolled (static T)
        gates = pre1[t:t + 1, :] + jnp.dot(h.astype(bf16), w_hh1,
                                           preferred_element_type=f32)
        h, c = _gates_to_hc(gates, c, hid)
        henc_ref[t:t + 1, :] = h        # off-path vst; keeps vreg pressure low

    # ---------------- encoder Linear -> [mu | log_var] ----------------
    # w_out = [w_enc | w_dec] packed along lanes; take the first 2F columns.
    out_all = jnp.dot(henc_ref[...].astype(bf16), w_out_ref[...],
                      preferred_element_type=f32) + b_out_ref[...]
    enc = out_all[:, 0:feat2]
    enc_ref[...] = enc
    mu = enc[:, 0:feat]
    log_var = enc[:, feat:feat2]

    # ---------------- reparameterize: z = mu + eps * exp(0.5 * log_var) ------
    z = mu + eps_ref[...] * jnp.exp(0.5 * log_var)

    # ---------------- decoder LSTM (2 layers, fused per-step) ----------------
    # concat([z, xp], -1) @ W_ih.T folded into two matmuls (no lane concat),
    # hoisted out of the recurrence.
    pre_d0 = (jnp.dot(z.astype(bf16), w_proj[in_size:in_size + feat, :],
                      preferred_element_type=f32)
              + jnp.dot(xp_ref[...],
                        w_proj[in_size + feat:in_size + feat + extra, :],
                        preferred_element_type=f32)
              + bd0)

    h0 = jnp.zeros((1, hid), f32)
    c0 = jnp.zeros((1, hid), f32)
    h1 = jnp.zeros((1, hid), f32)
    c1 = jnp.zeros((1, hid), f32)
    for t in range(seq_len):            # fully unrolled; L0/L1 chains interleave
        g0 = pre_d0[t:t + 1, :] + jnp.dot(h0.astype(bf16), w_hhd0,
                                          preferred_element_type=f32)
        h0, c0 = _gates_to_hc(g0, c0, hid)
        # fused layer-1: single (1, 2H) @ (2H, 4H) matmul replaces ih + hh dots
        lhs1 = jnp.concatenate([h0, h1], axis=-1).astype(bf16)
        g1 = jnp.dot(lhs1, w_d1, preferred_element_type=f32) + bd1
        h1, c1 = _gates_to_hc(g1, c1, hid)
        hdec_ref[t:t + 1, :] = h1

    # ---------------- decoder Linear ----------------
    out_dec = jnp.dot(hdec_ref[...].astype(bf16), w_out_ref[...],
                      preferred_element_type=f32) + b_out_ref[...]
    recon_ref[...] = out_dec[:, feat2:feat2 + recon_size]


def linear_vae_forward(x, xp, eps, params):
    seq_len = x.shape[0]
    feat = eps.shape[1]
    feat2 = 2 * feat
    recon_size = params["w_out"].shape[1] - feat2
    hid = params["w_rec"].shape[0] // 4
    bf16 = jnp.bfloat16

    args = (
        x.astype(bf16), xp.astype(bf16), eps,
        params["w_proj"], params["w_rec"], params["b_lstm"],
        params["w_out"], params["b_out"],
    )

    vmem = pl.BlockSpec(memory_space=pltpu.MemorySpace.VMEM)
    recon, enc = pl.pallas_call(
        vae_kernel,
        out_shape=(
            jax.ShapeDtypeStruct((seq_len, recon_size), jnp.float32),
            jax.ShapeDtypeStruct((seq_len, feat2), jnp.float32),
        ),
        in_specs=[vmem] * len(args),
        out_specs=(vmem, vmem),
        scratch_shapes=[
            pltpu.VMEM((seq_len, hid), jnp.float32),   # encoder hidden sequence
            pltpu.VMEM((seq_len, hid), jnp.float32),   # decoder hidden sequence
        ],
    )(*args)

    return recon, enc[:, :feat], enc[:, feat:]


def reference_forward(x, xp, eps, params):
    """Pure-JAX reference mirroring the kernel's exact math (bf16 MXU operands,
    tanh-based sigmoid, fused decoder layer-1 matmul)."""
    f32 = jnp.float32
    bf16 = jnp.bfloat16
    hid = params["w_rec"].shape[0] // 4
    T, in_size = x.shape
    feat = eps.shape[1]
    feat2 = 2 * feat

    w_proj = params["w_proj"]
    w_rec = params["w_rec"]
    b_lstm = params["b_lstm"]
    w_out = params["w_out"]
    b_out = params["b_out"]
    w_hh1 = w_rec[0:hid]
    w_hhd0 = w_rec[hid:2 * hid]
    w_d1 = w_rec[2 * hid:4 * hid]
    b1, bd0, bd1 = b_lstm[0:1], b_lstm[1:2], b_lstm[2:3]

    xb = x.astype(bf16)
    xpb = xp.astype(bf16)

    pre1 = jnp.dot(xb, w_proj[0:in_size], preferred_element_type=f32) + b1
    h = jnp.zeros((1, hid), f32)
    c = jnp.zeros((1, hid), f32)
    hs = []
    for t in range(T):
        gates = pre1[t:t + 1] + jnp.dot(h.astype(bf16), w_hh1,
                                        preferred_element_type=f32)
        h, c = _gates_to_hc(gates, c, hid)
        hs.append(h)
    h_enc = jnp.concatenate(hs, 0)
    out_all = jnp.dot(h_enc.astype(bf16), w_out, preferred_element_type=f32) + b_out
    enc = out_all[:, :feat2]
    mu, log_var = enc[:, :feat], enc[:, feat:]
    z = mu + eps * jnp.exp(0.5 * log_var)

    pre_d0 = (jnp.dot(z.astype(bf16), w_proj[in_size:in_size + feat],
                      preferred_element_type=f32)
              + jnp.dot(xpb, w_proj[in_size + feat:], preferred_element_type=f32)
              + bd0)
    h0 = jnp.zeros((1, hid), f32)
    c0 = jnp.zeros((1, hid), f32)
    h1 = jnp.zeros((1, hid), f32)
    c1 = jnp.zeros((1, hid), f32)
    outs = []
    for t in range(T):
        g0 = pre_d0[t:t + 1] + jnp.dot(h0.astype(bf16), w_hhd0,
                                       preferred_element_type=f32)
        h0, c0 = _gates_to_hc(g0, c0, hid)
        lhs1 = jnp.concatenate([h0, h1], -1).astype(bf16)
        g1 = jnp.dot(lhs1, w_d1, preferred_element_type=f32) + bd1
        h1, c1 = _gates_to_hc(g1, c1, hid)
        outs.append(h1)
    h_dec = jnp.concatenate(outs, 0)
    out_dec = jnp.dot(h_dec.astype(bf16), w_out, preferred_element_type=f32) + b_out
    recon = out_dec[:, feat2:]
    return recon, mu, log_var


def init_params(key, input_size, features, extra_decoder_input, reconstruct_size):
    """PyTorch-layout weights -> packed, pre-transposed kernel blobs."""
    hid = HIDDEN
    bound = hid ** -0.5
    keys = jax.random.split(key, 16)

    def u(kk, shape):
        return jax.random.uniform(kk, shape, jnp.float32, -bound, bound)

    # PyTorch-layout weights
    w_ih1 = u(keys[0], (4 * hid, input_size))
    w_hh1 = u(keys[1], (4 * hid, hid))
    b_ih1 = u(keys[2], (4 * hid,))
    b_hh1 = u(keys[3], (4 * hid,))
    w_enc = u(keys[4], (2 * features, hid))
    b_enc = u(keys[5], (2 * features,))
    dec_in = features + extra_decoder_input
    w_ihd0 = u(keys[6], (4 * hid, dec_in))
    w_hhd0 = u(keys[7], (4 * hid, hid))
    b_ihd0 = u(keys[8], (4 * hid,))
    b_hhd0 = u(keys[9], (4 * hid,))
    w_ihd1 = u(keys[10], (4 * hid, hid))
    w_hhd1 = u(keys[11], (4 * hid, hid))
    b_ihd1 = u(keys[12], (4 * hid,))
    b_hhd1 = u(keys[13], (4 * hid,))
    w_dec = u(keys[14], (reconstruct_size, hid))
    b_dec = u(keys[15], (reconstruct_size,))

    bf16 = jnp.bfloat16
    # recurrent blob: [W_hh1; W_hhd0; W_ihd1; W_hhd1] each transposed -> (4H, 4H)
    w_rec = jnp.concatenate([w_hh1.T, w_hhd0.T, w_ihd1.T, w_hhd1.T],
                            axis=0).astype(bf16)
    # projection blob: [W_ih1; W_ihd0(z-part); W_ihd0(xp-part)] -> (in+F+E, 4H)
    w_proj = jnp.concatenate([w_ih1.T, w_ihd0.T], axis=0).astype(bf16)
    # LSTM biases (b_ih + b_hh fused): (3, 4H)
    b_lstm = jnp.stack([b_ih1 + b_hh1, b_ihd0 + b_hhd0, b_ihd1 + b_hhd1], axis=0)
    # output blob: [W_enc | W_dec] -> (H, 2F + R)
    w_out = jnp.concatenate([w_enc.T, w_dec.T], axis=1).astype(bf16)
    b_out = jnp.concatenate([b_enc, b_dec])[None, :]

    return dict(w_proj=w_proj, w_rec=w_rec, b_lstm=b_lstm,
                w_out=w_out, b_out=b_out)


if __name__ == "__main__":
    seq_len = 8
    input_size = 16
    features = 8
    extra_decoder_input = 4
    reconstruct_size = 16

    key = jax.random.PRNGKey(0)
    kx, kxp, keps, kparams = jax.random.split(key, 4)
    x = jax.random.normal(kx, (seq_len, input_size), jnp.float32)
    xp = jax.random.normal(kxp, (seq_len, extra_decoder_input), jnp.float32)
    # deterministic replacement for torch.randn_like in reparameterize()
    eps = jax.random.normal(keps, (seq_len, features), jnp.float32)

    params = init_params(kparams, input_size, features,
                         extra_decoder_input, reconstruct_size)

    reconstruction, mu, log_var = linear_vae_forward(x, xp, eps, params)
    jax.block_until_ready((reconstruction, mu, log_var))

    assert reconstruction.shape == (seq_len, reconstruct_size)
    assert mu.shape == (seq_len, features)
    assert log_var.shape == (seq_len, features)

    # numerical sanity vs. pure-JAX reference (same bf16 operands / math)
    r_ref, mu_ref, lv_ref = reference_forward(x, xp, eps, params)
    for got, ref in ((reconstruction, r_ref), (mu, mu_ref), (log_var, lv_ref)):
        err = float(jnp.max(jnp.abs(got - ref)))
        assert err < 5e-2, f"max abs error {err} too large"

    print("KERNEL_OK")
</pallas_src>

<mosaic_0001>
module attributes {stable_mosaic.version = 11 : i64} {
  func.func @vae_kernel(%arg0: memref<8x16xbf16, #tpu.memory_space<vmem>>, %arg1: memref<8x4xbf16, #tpu.memory_space<vmem>>, %arg2: memref<8x8xf32, #tpu.memory_space<vmem>>, %arg3: memref<28x256xbf16, #tpu.memory_space<vmem>>, %arg4: memref<256x256xbf16, #tpu.memory_space<vmem>>, %arg5: memref<3x256xf32, #tpu.memory_space<vmem>>, %arg6: memref<64x32xbf16, #tpu.memory_space<vmem>>, %arg7: memref<1x32xf32, #tpu.memory_space<vmem>>, %arg8: memref<8x16xf32, #tpu.memory_space<vmem>>, %arg9: memref<8x16xf32, #tpu.memory_space<vmem>>, %arg10: memref<8x64xf32, #tpu.memory_space<vmem>>, %arg11: memref<8x64xf32, #tpu.memory_space<vmem>>) attributes {dimension_semantics = [], scalar_prefetch = 0 : i64, scratch_operands = 2 : i64, tpu.core_type = #tpu.core_type<tc>} {
    %c0 = arith.constant 0 : index
    %c0_0 = arith.constant 0 : index
    %0 = vector.load %arg4[%c0, %c0_0] : memref<256x256xbf16, #tpu.memory_space<vmem>>, vector<64x256xbf16>
    %c64 = arith.constant 64 : index
    %c0_1 = arith.constant 0 : index
    %1 = vector.load %arg4[%c64, %c0_1] : memref<256x256xbf16, #tpu.memory_space<vmem>>, vector<64x256xbf16>
    %c128 = arith.constant 128 : index
    %c0_2 = arith.constant 0 : index
    %2 = vector.load %arg4[%c128, %c0_2] : memref<256x256xbf16, #tpu.memory_space<vmem>>, vector<128x256xbf16>
    %c0_3 = arith.constant 0 : index
    %c0_4 = arith.constant 0 : index
    %3 = vector.load %arg3[%c0_3, %c0_4] : memref<28x256xbf16, #tpu.memory_space<vmem>>, vector<28x256xbf16>
    %c0_5 = arith.constant 0 : index
    %c0_6 = arith.constant 0 : index
    %4 = vector.load %arg5[%c0_5, %c0_6] : memref<3x256xf32, #tpu.memory_space<vmem>>, vector<3x256xf32>
    %5 = vector.extract_strided_slice %4 {offsets = [0, 0], sizes = [1, 256], strides = [1, 1]} : vector<3x256xf32> to vector<1x256xf32>
    %6 = vector.extract_strided_slice %4 {offsets = [1, 0], sizes = [1, 256], strides = [1, 1]} : vector<3x256xf32> to vector<1x256xf32>
    %7 = vector.extract_strided_slice %4 {offsets = [2, 0], sizes = [1, 256], strides = [1, 1]} : vector<3x256xf32> to vector<1x256xf32>
    %c0_7 = arith.constant 0 : index
    %c0_8 = arith.constant 0 : index
    %8 = vector.load %arg0[%c0_7, %c0_8] : memref<8x16xbf16, #tpu.memory_space<vmem>>, vector<8x16xbf16>
    %9 = vector.extract_strided_slice %3 {offsets = [0, 0], sizes = [16, 256], strides = [1, 1]} : vector<28x256xbf16> to vector<16x256xbf16>
    %cst = arith.constant dense<0.000000e+00> : vector<8x256xf32>
    %10 = tpu.matmul %8, %9, %cst {dimension_numbers = #tpu.dot_dimension_numbers<[1], [0], [0], [1], [0, 0, 1, 1], [], []>} : vector<8x16xbf16>, vector<16x256xbf16>, vector<8x256xf32> -> vector<8x256xf32>
    %11 = vector.broadcast %5 : vector<1x256xf32> to vector<8x256xf32>
    %12 = arith.addf %10, %11 : vector<8x256xf32>
    %cst_9 = arith.constant 0.000000e+00 : f32
    %13 = vector.broadcast %cst_9 : f32 to vector<1x64xf32>
    %cst_10 = arith.constant 0.000000e+00 : f32
    %14 = vector.broadcast %cst_10 : f32 to vector<1x64xf32>
    %15 = vector.extract_strided_slice %12 {offsets = [0, 0], sizes = [1, 256], strides = [1, 1]} : vector<8x256xf32> to vector<1x256xf32>
    %16 = arith.truncf %13 : vector<1x64xf32> to vector<1x64xbf16>
    %cst_11 = arith.constant dense<0.000000e+00> : vector<1x256xf32>
    %17 = tpu.matmul %16, %0, %cst_11 {dimension_numbers = #tpu.dot_dimension_numbers<[1], [0], [0], [1], [0, 0, 1, 1], [], []>} : vector<1x64xbf16>, vector<64x256xbf16>, vector<1x256xf32> -> vector<1x256xf32>
    %18 = arith.addf %15, %17 : vector<1x256xf32>
    %19 = vector.extract_strided_slice %18 {offsets = [0, 0], sizes = [1, 64], strides = [1, 1]} : vector<1x256xf32> to vector<1x64xf32>
    %cst_12 = arith.constant 5.000000e-01 : f32
    %20 = vector.broadcast %cst_12 : f32 to vector<1x64xf32>
    %21 = arith.mulf %20, %19 : vector<1x64xf32>
    %22 = math.tanh %21 : vector<1x64xf32>
    %cst_13 = arith.constant 5.000000e-01 : f32
    %23 = vector.broadcast %cst_13 : f32 to vector<1x64xf32>
    %24 = arith.mulf %23, %22 : vector<1x64xf32>
    %cst_14 = arith.constant 5.000000e-01 : f32
    %25 = vector.broadcast %cst_14 : f32 to vector<1x64xf32>
    %26 = arith.addf %24, %25 : vector<1x64xf32>
    %27 = vector.extract_strided_slice %18 {offsets = [0, 64], sizes = [1, 64], strides = [1, 1]} : vector<1x256xf32> to vector<1x64xf32>
    %cst_15 = arith.constant 5.000000e-01 : f32
    %28 = vector.broadcast %cst_15 : f32 to vector<1x64xf32>
    %29 = arith.mulf %28, %27 : vector<1x64xf32>
    %30 = math.tanh %29 : vector<1x64xf32>
    %cst_16 = arith.constant 5.000000e-01 : f32
    %31 = vector.broadcast %cst_16 : f32 to vector<1x64xf32>
    %32 = arith.mulf %31, %30 : vector<1x64xf32>
    %cst_17 = arith.constant 5.000000e-01 : f32
    %33 = vector.broadcast %cst_17 : f32 to vector<1x64xf32>
    %34 = arith.addf %32, %33 : vector<1x64xf32>
    %35 = vector.extract_strided_slice %18 {offsets = [0, 128], sizes = [1, 64], strides = [1, 1]} : vector<1x256xf32> to vector<1x64xf32>
    %36 = math.tanh %35 : vector<1x64xf32>
    %37 = vector.extract_strided_slice %18 {offsets = [0, 192], sizes = [1, 64], strides = [1, 1]} : vector<1x256xf32> to vector<1x64xf32>
    %cst_18 = arith.constant 5.000000e-01 : f32
    %38 = vector.broadcast %cst_18 : f32 to vector<1x64xf32>
    %39 = arith.mulf %38, %37 : vector<1x64xf32>
    %40 = math.tanh %39 : vector<1x64xf32>
    %cst_19 = arith.constant 5.000000e-01 : f32
    %41 = vector.broadcast %cst_19 : f32 to vector<1x64xf32>
    %42 = arith.mulf %41, %40 : vector<1x64xf32>
    %cst_20 = arith.constant 5.000000e-01 : f32
    %43 = vector.broadcast %cst_20 : f32 to vector<1x64xf32>
    %44 = arith.addf %42, %43 : vector<1x64xf32>
    %45 = arith.mulf %34, %14 : vector<1x64xf32>
    %46 = arith.mulf %26, %36 : vector<1x64xf32>
    %47 = arith.addf %45, %46 : vector<1x64xf32>
    %48 = math.tanh %47 : vector<1x64xf32>
    %49 = arith.mulf %44, %48 : vector<1x64xf32>
    %c0_21 = arith.constant 0 : index
    %c0_22 = arith.constant 0 : index
    %50 = vector.load %arg10[%c0_21, %c0_22] : memref<8x64xf32, #tpu.memory_space<vmem>>, vector<1x64xf32>
    tpu.vector_store %arg10[%c0_21, %c0_22], %49 {strides = array<i32>} : memref<8x64xf32, #tpu.memory_space<vmem>>, vector<1x64xf32>,
    %51 = vector.extract_strided_slice %12 {offsets = [1, 0], sizes = [1, 256], strides = [1, 1]} : vector<8x256xf32> to vector<1x256xf32>
    %52 = arith.truncf %49 : vector<1x64xf32> to vector<1x64xbf16>
    %cst_23 = arith.constant dense<0.000000e+00> : vector<1x256xf32>
    %53 = tpu.matmul %52, %0, %cst_23 {dimension_numbers = #tpu.dot_dimension_numbers<[1], [0], [0], [1], [0, 0, 1, 1], [], []>} : vector<1x64xbf16>, vector<64x256xbf16>, vector<1x256xf32> -> vector<1x256xf32>
    %54 = arith.addf %51, %53 : vector<1x256xf32>
    %55 = vector.extract_strided_slice %54 {offsets = [0, 0], sizes = [1, 64], strides = [1, 1]} : vector<1x256xf32> to vector<1x64xf32>
    %cst_24 = arith.constant 5.000000e-01 : f32
    %56 = vector.broadcast %cst_24 : f32 to vector<1x64xf32>
    %57 = arith.mulf %56, %55 : vector<1x64xf32>
    %58 = math.tanh %57 : vector<1x64xf32>
    %cst_25 = arith.constant 5.000000e-01 : f32
    %59 = vector.broadcast %cst_25 : f32 to vector<1x64xf32>
    %60 = arith.mulf %59, %58 : vector<1x64xf32>
    %cst_26 = arith.constant 5.000000e-01 : f32
    %61 = vector.broadcast %cst_26 : f32 to vector<1x64xf32>
    %62 = arith.addf %60, %61 : vector<1x64xf32>
    %63 = vector.extract_strided_slice %54 {offsets = [0, 64], sizes = [1, 64], strides = [1, 1]} : vector<1x256xf32> to vector<1x64xf32>
    %cst_27 = arith.constant 5.000000e-01 : f32
    %64 = vector.broadcast %cst_27 : f32 to vector<1x64xf32>
    %65 = arith.mulf %64, %63 : vector<1x64xf32>
    %66 = math.tanh %65 : vector<1x64xf32>
    %cst_28 = arith.constant 5.000000e-01 : f32
    %67 = vector.broadcast %cst_28 : f32 to vector<1x64xf32>
    %68 = arith.mulf %67, %66 : vector<1x64xf32>
    %cst_29 = arith.constant 5.000000e-01 : f32
    %69 = vector.broadcast %cst_29 : f32 to vector<1x64xf32>
    %70 = arith.addf %68, %69 : vector<1x64xf32>
    %71 = vector.extract_strided_slice %54 {offsets = [0, 128], sizes = [1, 64], strides = [1, 1]} : vector<1x256xf32> to vector<1x64xf32>
    %72 = math.tanh %71 : vector<1x64xf32>
    %73 = vector.extract_strided_slice %54 {offsets = [0, 192], sizes = [1, 64], strides = [1, 1]} : vector<1x256xf32> to vector<1x64xf32>
    %cst_30 = arith.constant 5.000000e-01 : f32
    %74 = vector.broadcast %cst_30 : f32 to vector<1x64xf32>
    %75 = arith.mulf %74, %73 : vector<1x64xf32>
    %76 = math.tanh %75 : vector<1x64xf32>
    %cst_31 = arith.constant 5.000000e-01 : f32
    %77 = vector.broadcast %cst_31 : f32 to vector<1x64xf32>
    %78 = arith.mulf %77, %76 : vector<1x64xf32>
    %cst_32 = arith.constant 5.000000e-01 : f32
    %79 = vector.broadcast %cst_32 : f32 to vector<1x64xf32>
    %80 = arith.addf %78, %79 : vector<1x64xf32>
    %81 = arith.mulf %70, %47 : vector<1x64xf32>
    %82 = arith.mulf %62, %72 : vector<1x64xf32>
    %83 = arith.addf %81, %82 : vector<1x64xf32>
    %84 = math.tanh %83 : vector<1x64xf32>
    %85 = arith.mulf %80, %84 : vector<1x64xf32>
    %c1 = arith.constant 1 : index
    %c0_33 = arith.constant 0 : index
    %86 = vector.load %arg10[%c1, %c0_33] : memref<8x64xf32, #tpu.memory_space<vmem>>, vector<1x64xf32>
    tpu.vector_store %arg10[%c1, %c0_33], %85 {strides = array<i32>} : memref<8x64xf32, #tpu.memory_space<vmem>>, vector<1x64xf32>,
    %87 = vector.extract_strided_slice %12 {offsets = [2, 0], sizes = [1, 256], strides = [1, 1]} : vector<8x256xf32> to vector<1x256xf32>
    %88 = arith.truncf %85 : vector<1x64xf32> to vector<1x64xbf16>
    %cst_34 = arith.constant dense<0.000000e+00> : vector<1x256xf32>
    %89 = tpu.matmul %88, %0, %cst_34 {dimension_numbers = #tpu.dot_dimension_numbers<[1], [0], [0], [1], [0, 0, 1, 1], [], []>} : vector<1x64xbf16>, vector<64x256xbf16>, vector<1x256xf32> -> vector<1x256xf32>
    %90 = arith.addf %87, %89 : vector<1x256xf32>
    %91 = vector.extract_strided_slice %90 {offsets = [0, 0], sizes = [1, 64], strides = [1, 1]} : vector<1x256xf32> to vector<1x64xf32>
    %cst_35 = arith.constant 5.000000e-01 : f32
    %92 = vector.broadcast %cst_35 : f32 to vector<1x64xf32>
    %93 = arith.mulf %92, %91 : vector<1x64xf32>
    %94 = math.tanh %93 : vector<1x64xf32>
    %cst_36 = arith.constant 5.000000e-01 : f32
    %95 = vector.broadcast %cst_36 : f32 to vector<1x64xf32>
    %96 = arith.mulf %95, %94 : vector<1x64xf32>
    %cst_37 = arith.constant 5.000000e-01 : f32
    %97 = vector.broadcast %cst_37 : f32 to vector<1x64xf32>
    %98 = arith.addf %96, %97 : vector<1x64xf32>
    %99 = vector.extract_strided_slice %90 {offsets = [0, 64], sizes = [1, 64], strides = [1, 1]} : vector<1x256xf32> to vector<1x64xf32>
    %cst_38 = arith.constant 5.000000e-01 : f32
    %100 = vector.broadcast %cst_38 : f32 to vector<1x64xf32>
    %101 = arith.mulf %100, %99 : vector<1x64xf32>
    %102 = math.tanh %101 : vector<1x64xf32>
    %cst_39 = arith.constant 5.000000e-01 : f32
    %103 = vector.broadcast %cst_39 : f32 to vector<1x64xf32>
    %104 = arith.mulf %103, %102 : vector<1x64xf32>
    %cst_40 = arith.constant 5.000000e-01 : f32
    %105 = vector.broadcast %cst_40 : f32 to vector<1x64xf32>
    %106 = arith.addf %104, %105 : vector<1x64xf32>
    %107 = vector.extract_strided_slice %90 {offsets = [0, 128], sizes = [1, 64], strides = [1, 1]} : vector<1x256xf32> to vector<1x64xf32>
    %108 = math.tanh %107 : vector<1x64xf32>
    %109 = vector.extract_strided_slice %90 {offsets = [0, 192], sizes = [1, 64], strides = [1, 1]} : vector<1x256xf32> to vector<1x64xf32>
    %cst_41 = arith.constant 5.000000e-01 : f32
    %110 = vector.broadcast %cst_41 : f32 to vector<1x64xf32>
    %111 = arith.mulf %110, %109 : vector<1x64xf32>
    %112 = math.tanh %111 : vector<1x64xf32>
    %cst_42 = arith.constant 5.000000e-01 : f32
    %113 = vector.broadcast %cst_42 : f32 to vector<1x64xf32>
    %114 = arith.mulf %113, %112 : vector<1x64xf32>
    %cst_43 = arith.constant 5.000000e-01 : f32
    %115 = vector.broadcast %cst_43 : f32 to vector<1x64xf32>
    %116 = arith.addf %114, %115 : vector<1x64xf32>
    %117 = arith.mulf %106, %83 : vector<1x64xf32>
    %118 = arith.mulf %98, %108 : vector<1x64xf32>
    %119 = arith.addf %117, %118 : vector<1x64xf32>
    %120 = math.tanh %119 : vector<1x64xf32>
    %121 = arith.mulf %116, %120 : vector<1x64xf32>
    %c2 = arith.constant 2 : index
    %c0_44 = arith.constant 0 : index
    %122 = vector.load %arg10[%c2, %c0_44] : memref<8x64xf32, #tpu.memory_space<vmem>>, vector<1x64xf32>
    tpu.vector_store %arg10[%c2, %c0_44], %121 {strides = array<i32>} : memref<8x64xf32, #tpu.memory_space<vmem>>, vector<1x64xf32>,
    %123 = vector.extract_strided_slice %12 {offsets = [3, 0], sizes = [1, 256], strides = [1, 1]} : vector<8x256xf32> to vector<1x256xf32>
    %124 = arith.truncf %121 : vector<1x64xf32> to vector<1x64xbf16>
    %cst_45 = arith.constant dense<0.000000e+00> : vector<1x256xf32>
    %125 = tpu.matmul %124, %0, %cst_45 {dimension_numbers = #tpu.dot_dimension_numbers<[1], [0], [0], [1], [0, 0, 1, 1], [], []>} : vector<1x64xbf16>, vector<64x256xbf16>, vector<1x256xf32> -> vector<1x256xf32>
    %126 = arith.addf %123, %125 : vector<1x256xf32>
    %127 = vector.extract_strided_slice %126 {offsets = [0, 0], sizes = [1, 64], strides = [1, 1]} : vector<1x256xf32> to vector<1x64xf32>
    %cst_46 = arith.constant 5.000000e-01 : f32
    %128 = vector.broadcast %cst_46 : f32 to vector<1x64xf32>
    %129 = arith.mulf %128, %127 : vector<1x64xf32>
    %130 = math.tanh %129 : vector<1x64xf32>
    %cst_47 = arith.constant 5.000000e-01 : f32
    %131 = vector.broadcast %cst_47 : f32 to vector<1x64xf32>
    %132 = arith.mulf %131, %130 : vector<1x64xf32>
    %cst_48 = arith.constant 5.000000e-01 : f32
    %133 = vector.broadcast %cst_48 : f32 to vector<1x64xf32>
    %134 = arith.addf %132, %133 : vector<1x64xf32>
    %135 = vector.extract_strided_slice %126 {offsets = [0, 64], sizes = [1, 64], strides = [1, 1]} : vector<1x256xf32> to vector<1x64xf32>
    %cst_49 = arith.constant 5.000000e-01 : f32
    %136 = vector.broadcast %cst_49 : f32 to vector<1x64xf32>
    %137 = arith.mulf %136, %135 : vector<1x64xf32>
    %138 = math.tanh %137 : vector<1x64xf32>
    %cst_50 = arith.constant 5.000000e-01 : f32
    %139 = vector.broadcast %cst_50 : f32 to vector<1x64xf32>
    %140 = arith.mulf %139, %138 : vector<1x64xf32>
    %cst_51 = arith.constant 5.000000e-01 : f32
    %141 = vector.broadcast %cst_51 : f32 to vector<1x64xf32>
    %142 = arith.addf %140, %141 : vector<1x64xf32>
    %143 = vector.extract_strided_slice %126 {offsets = [0, 128], sizes = [1, 64], strides = [1, 1]} : vector<1x256xf32> to vector<1x64xf32>
    %144 = math.tanh %143 : vector<1x64xf32>
    %145 = vector.extract_strided_slice %126 {offsets = [0, 192], sizes = [1, 64], strides = [1, 1]} : vector<1x256xf32> to vector<1x64xf32>
    %cst_52 = arith.constant 5.000000e-01 : f32
    %146 = vector.broadcast %cst_52 : f32 to vector<1x64xf32>
    %147 = arith.mulf %146, %145 : vector<1x64xf32>
    %148 = math.tanh %147 : vector<1x64xf32>
    %cst_53 = arith.constant 5.000000e-01 : f32
    %149 = vector.broadcast %cst_53 : f32 to vector<1x64xf32>
    %150 = arith.mulf %149, %148 : vector<1x64xf32>
    %cst_54 = arith.constant 5.000000e-01 : f32
    %151 = vector.broadcast %cst_54 : f32 to vector<1x64xf32>
    %152 = arith.addf %150, %151 : vector<1x64xf32>
    %153 = arith.mulf %142, %119 : vector<1x64xf32>
    %154 = arith.mulf %134, %144 : vector<1x64xf32>
    %155 = arith.addf %153, %154 : vector<1x64xf32>
    %156 = math.tanh %155 : vector<1x64xf32>
    %157 = arith.mulf %152, %156 : vector<1x64xf32>
    %c3 = arith.constant 3 : index
    %c0_55 = arith.constant 0 : index
    %158 = vector.load %arg10[%c3, %c0_55] : memref<8x64xf32, #tpu.memory_space<vmem>>, vector<1x64xf32>
    tpu.vector_store %arg10[%c3, %c0_55], %157 {strides = array<i32>} : memref<8x64xf32, #tpu.memory_space<vmem>>, vector<1x64xf32>,
    %159 = vector.extract_strided_slice %12 {offsets = [4, 0], sizes = [1, 256], strides = [1, 1]} : vector<8x256xf32> to vector<1x256xf32>
    %160 = arith.truncf %157 : vector<1x64xf32> to vector<1x64xbf16>
    %cst_56 = arith.constant dense<0.000000e+00> : vector<1x256xf32>
    %161 = tpu.matmul %160, %0, %cst_56 {dimension_numbers = #tpu.dot_dimension_numbers<[1], [0], [0], [1], [0, 0, 1, 1], [], []>} : vector<1x64xbf16>, vector<64x256xbf16>, vector<1x256xf32> -> vector<1x256xf32>
    %162 = arith.addf %159, %161 : vector<1x256xf32>
    %163 = vector.extract_strided_slice %162 {offsets = [0, 0], sizes = [1, 64], strides = [1, 1]} : vector<1x256xf32> to vector<1x64xf32>
    %cst_57 = arith.constant 5.000000e-01 : f32
    %164 = vector.broadcast %cst_57 : f32 to vector<1x64xf32>
    %165 = arith.mulf %164, %163 : vector<1x64xf32>
    %166 = math.tanh %165 : vector<1x64xf32>
    %cst_58 = arith.constant 5.000000e-01 : f32
    %167 = vector.broadcast %cst_58 : f32 to vector<1x64xf32>
    %168 = arith.mulf %167, %166 : vector<1x64xf32>
    %cst_59 = arith.constant 5.000000e-01 : f32
    %169 = vector.broadcast %cst_59 : f32 to vector<1x64xf32>
    %170 = arith.addf %168, %169 : vector<1x64xf32>
    %171 = vector.extract_strided_slice %162 {offsets = [0, 64], sizes = [1, 64], strides = [1, 1]} : vector<1x256xf32> to vector<1x64xf32>
    %cst_60 = arith.constant 5.000000e-01 : f32
    %172 = vector.broadcast %cst_60 : f32 to vector<1x64xf32>
    %173 = arith.mulf %172, %171 : vector<1x64xf32>
    %174 = math.tanh %173 : vector<1x64xf32>
    %cst_61 = arith.constant 5.000000e-01 : f32
    %175 = vector.broadcast %cst_61 : f32 to vector<1x64xf32>
    %176 = arith.mulf %175, %174 : vector<1x64xf32>
    %cst_62 = arith.constant 5.000000e-01 : f32
    %177 = vector.broadcast %cst_62 : f32 to vector<1x64xf32>
    %178 = arith.addf %176, %177 : vector<1x64xf32>
    %179 = vector.extract_strided_slice %162 {offsets = [0, 128], sizes = [1, 64], strides = [1, 1]} : vector<1x256xf32> to vector<1x64xf32>
    %180 = math.tanh %179 : vector<1x64xf32>
    %181 = vector.extract_strided_slice %162 {offsets = [0, 192], sizes = [1, 64], strides = [1, 1]} : vector<1x256xf32> to vector<1x64xf32>
    %cst_63 = arith.constant 5.000000e-01 : f32
    %182 = vector.broadcast %cst_63 : f32 to vector<1x64xf32>
    %183 = arith.mulf %182, %181 : vector<1x64xf32>
    %184 = math.tanh %183 : vector<1x64xf32>
    %cst_64 = arith.constant 5.000000e-01 : f32
    %185 = vector.broadcast %cst_64 : f32 to vector<1x64xf32>
    %186 = arith.mulf %185, %184 : vector<1x64xf32>
    %cst_65 = arith.constant 5.000000e-01 : f32
    %187 = vector.broadcast %cst_65 : f32 to vector<1x64xf32>
    %188 = arith.addf %186, %187 : vector<1x64xf32>
    %189 = arith.mulf %178, %155 : vector<1x64xf32>
    %190 = arith.mulf %170, %180 : vector<1x64xf32>
    %191 = arith.addf %189, %190 : vector<1x64xf32>
    %192 = math.tanh %191 : vector<1x64xf32>
    %193 = arith.mulf %188, %192 : vector<1x64xf32>
    %c4 = arith.constant 4 : index
    %c0_66 = arith.constant 0 : index
    %194 = vector.load %arg10[%c4, %c0_66] : memref<8x64xf32, #tpu.memory_space<vmem>>, vector<1x64xf32>
    tpu.vector_store %arg10[%c4, %c0_66], %193 {strides = array<i32>} : memref<8x64xf32, #tpu.memory_space<vmem>>, vector<1x64xf32>,
    %195 = vector.extract_strided_slice %12 {offsets = [5, 0], sizes = [1, 256], strides = [1, 1]} : vector<8x256xf32> to vector<1x256xf32>
    %196 = arith.truncf %193 : vector<1x64xf32> to vector<1x64xbf16>
    %cst_67 = arith.constant dense<0.000000e+00> : vector<1x256xf32>
    %197 = tpu.matmul %196, %0, %cst_67 {dimension_numbers = #tpu.dot_dimension_numbers<[1], [0], [0], [1], [0, 0, 1, 1], [], []>} : vector<1x64xbf16>, vector<64x256xbf16>, vector<1x256xf32> -> vector<1x256xf32>
    %198 = arith.addf %195, %197 : vector<1x256xf32>
    %199 = vector.extract_strided_slice %198 {offsets = [0, 0], sizes = [1, 64], strides = [1, 1]} : vector<1x256xf32> to vector<1x64xf32>
    %cst_68 = arith.constant 5.000000e-01 : f32
    %200 = vector.broadcast %cst_68 : f32 to vector<1x64xf32>
    %201 = arith.mulf %200, %199 : vector<1x64xf32>
    %202 = math.tanh %201 : vector<1x64xf32>
    %cst_69 = arith.constant 5.000000e-01 : f32
    %203 = vector.broadcast %cst_69 : f32 to vector<1x64xf32>
    %204 = arith.mulf %203, %202 : vector<1x64xf32>
    %cst_70 = arith.constant 5.000000e-01 : f32
    %205 = vector.broadcast %cst_70 : f32 to vector<1x64xf32>
    %206 = arith.addf %204, %205 : vector<1x64xf32>
    %207 = vector.extract_strided_slice %198 {offsets = [0, 64], sizes = [1, 64], strides = [1, 1]} : vector<1x256xf32> to vector<1x64xf32>
    %cst_71 = arith.constant 5.000000e-01 : f32
    %208 = vector.broadcast %cst_71 : f32 to vector<1x64xf32>
    %209 = arith.mulf %208, %207 : vector<1x64xf32>
    %210 = math.tanh %209 : vector<1x64xf32>
    %cst_72 = arith.constant 5.000000e-01 : f32
    %211 = vector.broadcast %cst_72 : f32 to vector<1x64xf32>
    %212 = arith.mulf %211, %210 : vector<1x64xf32>
    %cst_73 = arith.constant 5.000000e-01 : f32
    %213 = vector.broadcast %cst_73 : f32 to vector<1x64xf32>
    %214 = arith.addf %212, %213 : vector<1x64xf32>
    %215 = vector.extract_strided_slice %198 {offsets = [0, 128], sizes = [1, 64], strides = [1, 1]} : vector<1x256xf32> to vector<1x64xf32>
    %216 = math.tanh %215 : vector<1x64xf32>
    %217 = vector.extract_strided_slice %198 {offsets = [0, 192], sizes = [1, 64], strides = [1, 1]} : vector<1x256xf32> to vector<1x64xf32>
    %cst_74 = arith.constant 5.000000e-01 : f32
    %218 = vector.broadcast %cst_74 : f32 to vector<1x64xf32>
    %219 = arith.mulf %218, %217 : vector<1x64xf32>
    %220 = math.tanh %219 : vector<1x64xf32>
    %cst_75 = arith.constant 5.000000e-01 : f32
    %221 = vector.broadcast %cst_75 : f32 to vector<1x64xf32>
    %222 = arith.mulf %221, %220 : vector<1x64xf32>
    %cst_76 = arith.constant 5.000000e-01 : f32
    %223 = vector.broadcast %cst_76 : f32 to vector<1x64xf32>
    %224 = arith.addf %222, %223 : vector<1x64xf32>
    %225 = arith.mulf %214, %191 : vector<1x64xf32>
    %226 = arith.mulf %206, %216 : vector<1x64xf32>
    %227 = arith.addf %225, %226 : vector<1x64xf32>
    %228 = math.tanh %227 : vector<1x64xf32>
    %229 = arith.mulf %224, %228 : vector<1x64xf32>
    %c5 = arith.constant 5 : index
    %c0_77 = arith.constant 0 : index
    %230 = vector.load %arg10[%c5, %c0_77] : memref<8x64xf32, #tpu.memory_space<vmem>>, vector<1x64xf32>
    tpu.vector_store %arg10[%c5, %c0_77], %229 {strides = array<i32>} : memref<8x64xf32, #tpu.memory_space<vmem>>, vector<1x64xf32>,
    %231 = vector.extract_strided_slice %12 {offsets = [6, 0], sizes = [1, 256], strides = [1, 1]} : vector<8x256xf32> to vector<1x256xf32>
    %232 = arith.truncf %229 : vector<1x64xf32> to vector<1x64xbf16>
    %cst_78 = arith.constant dense<0.000000e+00> : vector<1x256xf32>
    %233 = tpu.matmul %232, %0, %cst_78 {dimension_numbers = #tpu.dot_dimension_numbers<[1], [0], [0], [1], [0, 0, 1, 1], [], []>} : vector<1x64xbf16>, vector<64x256xbf16>, vector<1x256xf32> -> vector<1x256xf32>
    %234 = arith.addf %231, %233 : vector<1x256xf32>
    %235 = vector.extract_strided_slice %234 {offsets = [0, 0], sizes = [1, 64], strides = [1, 1]} : vector<1x256xf32> to vector<1x64xf32>
    %cst_79 = arith.constant 5.000000e-01 : f32
    %236 = vector.broadcast %cst_79 : f32 to vector<1x64xf32>
    %237 = arith.mulf %236, %235 : vector<1x64xf32>
    %238 = math.tanh %237 : vector<1x64xf32>
    %cst_80 = arith.constant 5.000000e-01 : f32
    %239 = vector.broadcast %cst_80 : f32 to vector<1x64xf32>
    %240 = arith.mulf %239, %238 : vector<1x64xf32>
    %cst_81 = arith.constant 5.000000e-01 : f32
    %241 = vector.broadcast %cst_81 : f32 to vector<1x64xf32>
    %242 = arith.addf %240, %241 : vector<1x64xf32>
    %243 = vector.extract_strided_slice %234 {offsets = [0, 64], sizes = [1, 64], strides = [1, 1]} : vector<1x256xf32> to vector<1x64xf32>
    %cst_82 = arith.constant 5.000000e-01 : f32
    %244 = vector.broadcast %cst_82 : f32 to vector<1x64xf32>
    %245 = arith.mulf %244, %243 : vector<1x64xf32>
    %246 = math.tanh %245 : vector<1x64xf32>
    %cst_83 = arith.constant 5.000000e-01 : f32
    %247 = vector.broadcast %cst_83 : f32 to vector<1x64xf32>
    %248 = arith.mulf %247, %246 : vector<1x64xf32>
    %cst_84 = arith.constant 5.000000e-01 : f32
    %249 = vector.broadcast %cst_84 : f32 to vector<1x64xf32>
    %250 = arith.addf %248, %249 : vector<1x64xf32>
    %251 = vector.extract_strided_slice %234 {offsets = [0, 128], sizes = [1, 64], strides = [1, 1]} : vector<1x256xf32> to vector<1x64xf32>
    %252 = math.tanh %251 : vector<1x64xf32>
    %253 = vector.extract_strided_slice %234 {offsets = [0, 192], sizes = [1, 64], strides = [1, 1]} : vector<1x256xf32> to vector<1x64xf32>
    %cst_85 = arith.constant 5.000000e-01 : f32
    %254 = vector.broadcast %cst_85 : f32 to vector<1x64xf32>
    %255 = arith.mulf %254, %253 : vector<1x64xf32>
    %256 = math.tanh %255 : vector<1x64xf32>
    %cst_86 = arith.constant 5.000000e-01 : f32
    %257 = vector.broadcast %cst_86 : f32 to vector<1x64xf32>
    %258 = arith.mulf %257, %256 : vector<1x64xf32>
    %cst_87 = arith.constant 5.000000e-01 : f32
    %259 = vector.broadcast %cst_87 : f32 to vector<1x64xf32>
    %260 = arith.addf %258, %259 : vector<1x64xf32>
    %261 = arith.mulf %250, %227 : vector<1x64xf32>
    %262 = arith.mulf %242, %252 : vector<1x64xf32>
    %263 = arith.addf %261, %262 : vector<1x64xf32>
    %264 = math.tanh %263 : vector<1x64xf32>
    %265 = arith.mulf %260, %264 : vector<1x64xf32>
    %c6 = arith.constant 6 : index
    %c0_88 = arith.constant 0 : index
    %266 = vector.load %arg10[%c6, %c0_88] : memref<8x64xf32, #tpu.memory_space<vmem>>, vector<1x64xf32>
    tpu.vector_store %arg10[%c6, %c0_88], %265 {strides = array<i32>} : memref<8x64xf32, #tpu.memory_space<vmem>>, vector<1x64xf32>,
    %267 = vector.extract_strided_slice %12 {offsets = [7, 0], sizes = [1, 256], strides = [1, 1]} : vector<8x256xf32> to vector<1x256xf32>
    %268 = arith.truncf %265 : vector<1x64xf32> to vector<1x64xbf16>
    %cst_89 = arith.constant dense<0.000000e+00> : vector<1x256xf32>
    %269 = tpu.matmul %268, %0, %cst_89 {dimension_numbers = #tpu.dot_dimension_numbers<[1], [0], [0], [1], [0, 0, 1, 1], [], []>} : vector<1x64xbf16>, vector<64x256xbf16>, vector<1x256xf32> -> vector<1x256xf32>
    %270 = arith.addf %267, %269 : vector<1x256xf32>
    %271 = vector.extract_strided_slice %270 {offsets = [0, 0], sizes = [1, 64], strides = [1, 1]} : vector<1x256xf32> to vector<1x64xf32>
    %cst_90 = arith.constant 5.000000e-01 : f32
    %272 = vector.broadcast %cst_90 : f32 to vector<1x64xf32>
    %273 = arith.mulf %272, %271 : vector<1x64xf32>
    %274 = math.tanh %273 : vector<1x64xf32>
    %cst_91 = arith.constant 5.000000e-01 : f32
    %275 = vector.broadcast %cst_91 : f32 to vector<1x64xf32>
    %276 = arith.mulf %275, %274 : vector<1x64xf32>
    %cst_92 = arith.constant 5.000000e-01 : f32
    %277 = vector.broadcast %cst_92 : f32 to vector<1x64xf32>
    %278 = arith.addf %276, %277 : vector<1x64xf32>
    %279 = vector.extract_strided_slice %270 {offsets = [0, 64], sizes = [1, 64], strides = [1, 1]} : vector<1x256xf32> to vector<1x64xf32>
    %cst_93 = arith.constant 5.000000e-01 : f32
    %280 = vector.broadcast %cst_93 : f32 to vector<1x64xf32>
    %281 = arith.mulf %280, %279 : vector<1x64xf32>
    %282 = math.tanh %281 : vector<1x64xf32>
    %cst_94 = arith.constant 5.000000e-01 : f32
    %283 = vector.broadcast %cst_94 : f32 to vector<1x64xf32>
    %284 = arith.mulf %283, %282 : vector<1x64xf32>
    %cst_95 = arith.constant 5.000000e-01 : f32
    %285 = vector.broadcast %cst_95 : f32 to vector<1x64xf32>
    %286 = arith.addf %284, %285 : vector<1x64xf32>
    %287 = vector.extract_strided_slice %270 {offsets = [0, 128], sizes = [1, 64], strides = [1, 1]} : vector<1x256xf32> to vector<1x64xf32>
    %288 = math.tanh %287 : vector<1x64xf32>
    %289 = vector.extract_strided_slice %270 {offsets = [0, 192], sizes = [1, 64], strides = [1, 1]} : vector<1x256xf32> to vector<1x64xf32>
    %cst_96 = arith.constant 5.000000e-01 : f32
    %290 = vector.broadcast %cst_96 : f32 to vector<1x64xf32>
    %291 = arith.mulf %290, %289 : vector<1x64xf32>
    %292 = math.tanh %291 : vector<1x64xf32>
    %cst_97 = arith.constant 5.000000e-01 : f32
    %293 = vector.broadcast %cst_97 : f32 to vector<1x64xf32>
    %294 = arith.mulf %293, %292 : vector<1x64xf32>
    %cst_98 = arith.constant 5.000000e-01 : f32
    %295 = vector.broadcast %cst_98 : f32 to vector<1x64xf32>
    %296 = arith.addf %294, %295 : vector<1x64xf32>
    %297 = arith.mulf %286, %263 : vector<1x64xf32>
    %298 = arith.mulf %278, %288 : vector<1x64xf32>
    %299 = arith.addf %297, %298 : vector<1x64xf32>
    %300 = math.tanh %299 : vector<1x64xf32>
    %301 = arith.mulf %296, %300 : vector<1x64xf32>
    %c7 = arith.constant 7 : index
    %c0_99 = arith.constant 0 : index
    %302 = vector.load %arg10[%c7, %c0_99] : memref<8x64xf32, #tpu.memory_space<vmem>>, vector<1x64xf32>
    tpu.vector_store %arg10[%c7, %c0_99], %301 {strides = array<i32>} : memref<8x64xf32, #tpu.memory_space<vmem>>, vector<1x64xf32>,
    %c0_100 = arith.constant 0 : index
    %c0_101 = arith.constant 0 : index
    %303 = vector.load %arg10[%c0_100, %c0_101] : memref<8x64xf32, #tpu.memory_space<vmem>>, vector<8x64xf32>
    %304 = arith.truncf %303 : vector<8x64xf32> to vector<8x64xbf16>
    %c0_102 = arith.constant 0 : index
    %c0_103 = arith.constant 0 : index
    %305 = vector.load %arg6[%c0_102, %c0_103] : memref<64x32xbf16, #tpu.memory_space<vmem>>, vector<64x32xbf16>
    %cst_104 = arith.constant dense<0.000000e+00> : vector<8x32xf32>
    %306 = tpu.matmul %304, %305, %cst_104 {dimension_numbers = #tpu.dot_dimension_numbers<[1], [0], [0], [1], [0, 0, 1, 1], [], []>} : vector<8x64xbf16>, vector<64x32xbf16>, vector<8x32xf32> -> vector<8x32xf32>
    %c0_105 = arith.constant 0 : index
    %c0_106 = arith.constant 0 : index
    %307 = vector.load %arg7[%c0_105, %c0_106] : memref<1x32xf32, #tpu.memory_space<vmem>>, vector<1x32xf32>
    %308 = vector.broadcast %307 : vector<1x32xf32> to vector<8x32xf32>
    %309 = arith.addf %306, %308 : vector<8x32xf32>
    %310 = vector.extract_strided_slice %309 {offsets = [0, 0], sizes = [8, 16], strides = [1, 1]} : vector<8x32xf32> to vector<8x16xf32>
    %c0_107 = arith.constant 0 : index
    %c0_108 = arith.constant 0 : index
    %311 = vector.load %arg9[%c0_107, %c0_108] : memref<8x16xf32, #tpu.memory_space<vmem>>, vector<8x16xf32>
    tpu.vector_store %arg9[%c0_107, %c0_108], %310 {strides = array<i32>} : memref<8x16xf32, #tpu.memory_space<vmem>>, vector<8x16xf32>,
    %312 = vector.extract_strided_slice %310 {offsets = [0, 0], sizes = [8, 8], strides = [1, 1]} : vector<8x16xf32> to vector<8x8xf32>
    %313 = vector.extract_strided_slice %310 {offsets = [0, 8], sizes = [8, 8], strides = [1, 1]} : vector<8x16xf32> to vector<8x8xf32>
    %c0_109 = arith.constant 0 : index
    %c0_110 = arith.constant 0 : index
    %314 = vector.load %arg2[%c0_109, %c0_110] : memref<8x8xf32, #tpu.memory_space<vmem>>, vector<8x8xf32>
    %cst_111 = arith.constant 5.000000e-01 : f32
    %315 = vector.broadcast %cst_111 : f32 to vector<8x8xf32>
    %316 = arith.mulf %315, %313 : vector<8x8xf32>
    %317 = math.exp %316 : vector<8x8xf32>
    %318 = arith.mulf %314, %317 : vector<8x8xf32>
    %319 = arith.addf %312, %318 : vector<8x8xf32>
    %320 = arith.truncf %319 : vector<8x8xf32> to vector<8x8xbf16>
    %321 = vector.extract_strided_slice %3 {offsets = [16, 0], sizes = [8, 256], strides = [1, 1]} : vector<28x256xbf16> to vector<8x256xbf16>
    %cst_112 = arith.constant dense<0.000000e+00> : vector<8x256xf32>
    %322 = tpu.matmul %320, %321, %cst_112 {dimension_numbers = #tpu.dot_dimension_numbers<[1], [0], [0], [1], [0, 0, 1, 1], [], []>} : vector<8x8xbf16>, vector<8x256xbf16>, vector<8x256xf32> -> vector<8x256xf32>
    %c0_113 = arith.constant 0 : index
    %c0_114 = arith.constant 0 : index
    %323 = vector.load %arg1[%c0_113, %c0_114] : memref<8x4xbf16, #tpu.memory_space<vmem>>, vector<8x4xbf16>
    %324 = vector.extract_strided_slice %3 {offsets = [24, 0], sizes = [4, 256], strides = [1, 1]} : vector<28x256xbf16> to vector<4x256xbf16>
    %cst_115 = arith.constant dense<0.000000e+00> : vector<8x256xf32>
    %325 = tpu.matmul %323, %324, %cst_115 {dimension_numbers = #tpu.dot_dimension_numbers<[1], [0], [0], [1], [0, 0, 1, 1], [], []>} : vector<8x4xbf16>, vector<4x256xbf16>, vector<8x256xf32> -> vector<8x256xf32>
    %326 = arith.addf %322, %325 : vector<8x256xf32>
    %327 = vector.broadcast %6 : vector<1x256xf32> to vector<8x256xf32>
    %328 = arith.addf %326, %327 : vector<8x256xf32>
    %cst_116 = arith.constant 0.000000e+00 : f32
    %329 = vector.broadcast %cst_116 : f32 to vector<1x64xf32>
    %cst_117 = arith.constant 0.000000e+00 : f32
    %330 = vector.broadcast %cst_117 : f32 to vector<1x64xf32>
    %cst_118 = arith.constant 0.000000e+00 : f32
    %331 = vector.broadcast %cst_118 : f32 to vector<1x64xf32>
    %cst_119 = arith.constant 0.000000e+00 : f32
    %332 = vector.broadcast %cst_119 : f32 to vector<1x64xf32>
    %333 = vector.extract_strided_slice %328 {offsets = [0, 0], sizes = [1, 256], strides = [1, 1]} : vector<8x256xf32> to vector<1x256xf32>
    %334 = arith.truncf %329 : vector<1x64xf32> to vector<1x64xbf16>
    %cst_120 = arith.constant dense<0.000000e+00> : vector<1x256xf32>
    %335 = tpu.matmul %334, %1, %cst_120 {dimension_numbers = #tpu.dot_dimension_numbers<[1], [0], [0], [1], [0, 0, 1, 1], [], []>} : vector<1x64xbf16>, vector<64x256xbf16>, vector<1x256xf32> -> vector<1x256xf32>
    %336 = arith.addf %333, %335 : vector<1x256xf32>
    %337 = vector.extract_strided_slice %336 {offsets = [0, 0], sizes = [1, 64], strides = [1, 1]} : vector<1x256xf32> to vector<1x64xf32>
    %cst_121 = arith.constant 5.000000e-01 : f32
    %338 = vector.broadcast %cst_121 : f32 to vector<1x64xf32>
    %339 = arith.mulf %338, %337 : vector<1x64xf32>
    %340 = math.tanh %339 : vector<1x64xf32>
    %cst_122 = arith.constant 5.000000e-01 : f32
    %341 = vector.broadcast %cst_122 : f32 to vector<1x64xf32>
    %342 = arith.mulf %341, %340 : vector<1x64xf32>
    %cst_123 = arith.constant 5.000000e-01 : f32
    %343 = vector.broadcast %cst_123 : f32 to vector<1x64xf32>
    %344 = arith.addf %342, %343 : vector<1x64xf32>
    %345 = vector.extract_strided_slice %336 {offsets = [0, 64], sizes = [1, 64], strides = [1, 1]} : vector<1x256xf32> to vector<1x64xf32>
    %cst_124 = arith.constant 5.000000e-01 : f32
    %346 = vector.broadcast %cst_124 : f32 to vector<1x64xf32>
    %347 = arith.mulf %346, %345 : vector<1x64xf32>
    %348 = math.tanh %347 : vector<1x64xf32>
    %cst_125 = arith.constant 5.000000e-01 : f32
    %349 = vector.broadcast %cst_125 : f32 to vector<1x64xf32>
    %350 = arith.mulf %349, %348 : vector<1x64xf32>
    %cst_126 = arith.constant 5.000000e-01 : f32
    %351 = vector.broadcast %cst_126 : f32 to vector<1x64xf32>
    %352 = arith.addf %350, %351 : vector<1x64xf32>
    %353 = vector.extract_strided_slice %336 {offsets = [0, 128], sizes = [1, 64], strides = [1, 1]} : vector<1x256xf32> to vector<1x64xf32>
    %354 = math.tanh %353 : vector<1x64xf32>
    %355 = vector.extract_strided_slice %336 {offsets = [0, 192], sizes = [1, 64], strides = [1, 1]} : vector<1x256xf32> to vector<1x64xf32>
    %cst_127 = arith.constant 5.000000e-01 : f32
    %356 = vector.broadcast %cst_127 : f32 to vector<1x64xf32>
    %357 = arith.mulf %356, %355 : vector<1x64xf32>
    %358 = math.tanh %357 : vector<1x64xf32>
    %cst_128 = arith.constant 5.000000e-01 : f32
    %359 = vector.broadcast %cst_128 : f32 to vector<1x64xf32>
    %360 = arith.mulf %359, %358 : vector<1x64xf32>
    %cst_129 = arith.constant 5.000000e-01 : f32
    %361 = vector.broadcast %cst_129 : f32 to vector<1x64xf32>
    %362 = arith.addf %360, %361 : vector<1x64xf32>
    %363 = arith.mulf %352, %330 : vector<1x64xf32>
    %364 = arith.mulf %344, %354 : vector<1x64xf32>
    %365 = arith.addf %363, %364 : vector<1x64xf32>
    %366 = math.tanh %365 : vector<1x64xf32>
    %367 = arith.mulf %362, %366 : vector<1x64xf32>
    %368 = tpu.concatenate %367, %331 in 1 : vector<1x64xf32>, vector<1x64xf32> -> vector<1x128xf32>
    %369 = arith.truncf %368 : vector<1x128xf32> to vector<1x128xbf16>
    %cst_130 = arith.constant dense<0.000000e+00> : vector<1x256xf32>
    %370 = tpu.matmul %369, %2, %cst_130 {dimension_numbers = #tpu.dot_dimension_numbers<[1], [0], [0], [1], [0, 0, 1, 1], [], []>} : vector<1x128xbf16>, vector<128x256xbf16>, vector<1x256xf32> -> vector<1x256xf32>
    %371 = arith.addf %370, %7 : vector<1x256xf32>
    %372 = vector.extract_strided_slice %371 {offsets = [0, 0], sizes = [1, 64], strides = [1, 1]} : vector<1x256xf32> to vector<1x64xf32>
    %cst_131 = arith.constant 5.000000e-01 : f32
    %373 = vector.broadcast %cst_131 : f32 to vector<1x64xf32>
    %374 = arith.mulf %373, %372 : vector<1x64xf32>
    %375 = math.tanh %374 : vector<1x64xf32>
    %cst_132 = arith.constant 5.000000e-01 : f32
    %376 = vector.broadcast %cst_132 : f32 to vector<1x64xf32>
    %377 = arith.mulf %376, %375 : vector<1x64xf32>
    %cst_133 = arith.constant 5.000000e-01 : f32
    %378 = vector.broadcast %cst_133 : f32 to vector<1x64xf32>
    %379 = arith.addf %377, %378 : vector<1x64xf32>
    %380 = vector.extract_strided_slice %371 {offsets = [0, 64], sizes = [1, 64], strides = [1, 1]} : vector<1x256xf32> to vector<1x64xf32>
    %cst_134 = arith.constant 5.000000e-01 : f32
    %381 = vector.broadcast %cst_134 : f32 to vector<1x64xf32>
    %382 = arith.mulf %381, %380 : vector<1x64xf32>
    %383 = math.tanh %382 : vector<1x64xf32>
    %cst_135 = arith.constant 5.000000e-01 : f32
    %384 = vector.broadcast %cst_135 : f32 to vector<1x64xf32>
    %385 = arith.mulf %384, %383 : vector<1x64xf32>
    %cst_136 = arith.constant 5.000000e-01 : f32
    %386 = vector.broadcast %cst_136 : f32 to vector<1x64xf32>
    %387 = arith.addf %385, %386 : vector<1x64xf32>
    %388 = vector.extract_strided_slice %371 {offsets = [0, 128], sizes = [1, 64], strides = [1, 1]} : vector<1x256xf32> to vector<1x64xf32>
    %389 = math.tanh %388 : vector<1x64xf32>
    %390 = vector.extract_strided_slice %371 {offsets = [0, 192], sizes = [1, 64], strides = [1, 1]} : vector<1x256xf32> to vector<1x64xf32>
    %cst_137 = arith.constant 5.000000e-01 : f32
    %391 = vector.broadcast %cst_137 : f32 to vector<1x64xf32>
    %392 = arith.mulf %391, %390 : vector<1x64xf32>
    %393 = math.tanh %392 : vector<1x64xf32>
    %cst_138 = arith.constant 5.000000e-01 : f32
    %394 = vector.broadcast %cst_138 : f32 to vector<1x64xf32>
    %395 = arith.mulf %394, %393 : vector<1x64xf32>
    %cst_139 = arith.constant 5.000000e-01 : f32
    %396 = vector.broadcast %cst_139 : f32 to vector<1x64xf32>
    %397 = arith.addf %395, %396 : vector<1x64xf32>
    %398 = arith.mulf %387, %332 : vector<1x64xf32>
    %399 = arith.mulf %379, %389 : vector<1x64xf32>
    %400 = arith.addf %398, %399 : vector<1x64xf32>
    %401 = math.tanh %400 : vector<1x64xf32>
    %402 = arith.mulf %397, %401 : vector<1x64xf32>
    %c0_140 = arith.constant 0 : index
    %c0_141 = arith.constant 0 : index
    %403 = vector.load %arg11[%c0_140, %c0_141] : memref<8x64xf32, #tpu.memory_space<vmem>>, vector<1x64xf32>
    tpu.vector_store %arg11[%c0_140, %c0_141], %402 {strides = array<i32>} : memref<8x64xf32, #tpu.memory_space<vmem>>, vector<1x64xf32>,
    %404 = vector.extract_strided_slice %328 {offsets = [1, 0], sizes = [1, 256], strides = [1, 1]} : vector<8x256xf32> to vector<1x256xf32>
    %405 = arith.truncf %367 : vector<1x64xf32> to vector<1x64xbf16>
    %cst_142 = arith.constant dense<0.000000e+00> : vector<1x256xf32>
    %406 = tpu.matmul %405, %1, %cst_142 {dimension_numbers = #tpu.dot_dimension_numbers<[1], [0], [0], [1], [0, 0, 1, 1], [], []>} : vector<1x64xbf16>, vector<64x256xbf16>, vector<1x256xf32> -> vector<1x256xf32>
    %407 = arith.addf %404, %406 : vector<1x256xf32>
    %408 = vector.extract_strided_slice %407 {offsets = [0, 0], sizes = [1, 64], strides = [1, 1]} : vector<1x256xf32> to vector<1x64xf32>
    %cst_143 = arith.constant 5.000000e-01 : f32
    %409 = vector.broadcast %cst_143 : f32 to vector<1x64xf32>
    %410 = arith.mulf %409, %408 : vector<1x64xf32>
    %411 = math.tanh %410 : vector<1x64xf32>
    %cst_144 = arith.constant 5.000000e-01 : f32
    %412 = vector.broadcast %cst_144 : f32 to vector<1x64xf32>
    %413 = arith.mulf %412, %411 : vector<1x64xf32>
    %cst_145 = arith.constant 5.000000e-01 : f32
    %414 = vector.broadcast %cst_145 : f32 to vector<1x64xf32>
    %415 = arith.addf %413, %414 : vector<1x64xf32>
    %416 = vector.extract_strided_slice %407 {offsets = [0, 64], sizes = [1, 64], strides = [1, 1]} : vector<1x256xf32> to vector<1x64xf32>
    %cst_146 = arith.constant 5.000000e-01 : f32
    %417 = vector.broadcast %cst_146 : f32 to vector<1x64xf32>
    %418 = arith.mulf %417, %416 : vector<1x64xf32>
    %419 = math.tanh %418 : vector<1x64xf32>
    %cst_147 = arith.constant 5.000000e-01 : f32
    %420 = vector.broadcast %cst_147 : f32 to vector<1x64xf32>
    %421 = arith.mulf %420, %419 : vector<1x64xf32>
    %cst_148 = arith.constant 5.000000e-01 : f32
    %422 = vector.broadcast %cst_148 : f32 to vector<1x64xf32>
    %423 = arith.addf %421, %422 : vector<1x64xf32>
    %424 = vector.extract_strided_slice %407 {offsets = [0, 128], sizes = [1, 64], strides = [1, 1]} : vector<1x256xf32> to vector<1x64xf32>
    %425 = math.tanh %424 : vector<1x64xf32>
    %426 = vector.extract_strided_slice %407 {offsets = [0, 192], sizes = [1, 64], strides = [1, 1]} : vector<1x256xf32> to vector<1x64xf32>
    %cst_149 = arith.constant 5.000000e-01 : f32
    %427 = vector.broadcast %cst_149 : f32 to vector<1x64xf32>
    %428 = arith.mulf %427, %426 : vector<1x64xf32>
    %429 = math.tanh %428 : vector<1x64xf32>
    %cst_150 = arith.constant 5.000000e-01 : f32
    %430 = vector.broadcast %cst_150 : f32 to vector<1x64xf32>
    %431 = arith.mulf %430, %429 : vector<1x64xf32>
    %cst_151 = arith.constant 5.000000e-01 : f32
    %432 = vector.broadcast %cst_151 : f32 to vector<1x64xf32>
    %433 = arith.addf %431, %432 : vector<1x64xf32>
    %434 = arith.mulf %423, %365 : vector<1x64xf32>
    %435 = arith.mulf %415, %425 : vector<1x64xf32>
    %436 = arith.addf %434, %435 : vector<1x64xf32>
    %437 = math.tanh %436 : vector<1x64xf32>
    %438 = arith.mulf %433, %437 : vector<1x64xf32>
    %439 = tpu.concatenate %438, %402 in 1 : vector<1x64xf32>, vector<1x64xf32> -> vector<1x128xf32>
    %440 = arith.truncf %439 : vector<1x128xf32> to vector<1x128xbf16>
    %cst_152 = arith.constant dense<0.000000e+00> : vector<1x256xf32>
    %441 = tpu.matmul %440, %2, %cst_152 {dimension_numbers = #tpu.dot_dimension_numbers<[1], [0], [0], [1], [0, 0, 1, 1], [], []>} : vector<1x128xbf16>, vector<128x256xbf16>, vector<1x256xf32> -> vector<1x256xf32>
    %442 = arith.addf %441, %7 : vector<1x256xf32>
    %443 = vector.extract_strided_slice %442 {offsets = [0, 0], sizes = [1, 64], strides = [1, 1]} : vector<1x256xf32> to vector<1x64xf32>
    %cst_153 = arith.constant 5.000000e-01 : f32
    %444 = vector.broadcast %cst_153 : f32 to vector<1x64xf32>
    %445 = arith.mulf %444, %443 : vector<1x64xf32>
    %446 = math.tanh %445 : vector<1x64xf32>
    %cst_154 = arith.constant 5.000000e-01 : f32
    %447 = vector.broadcast %cst_154 : f32 to vector<1x64xf32>
    %448 = arith.mulf %447, %446 : vector<1x64xf32>
    %cst_155 = arith.constant 5.000000e-01 : f32
    %449 = vector.broadcast %cst_155 : f32 to vector<1x64xf32>
    %450 = arith.addf %448, %449 : vector<1x64xf32>
    %451 = vector.extract_strided_slice %442 {offsets = [0, 64], sizes = [1, 64], strides = [1, 1]} : vector<1x256xf32> to vector<1x64xf32>
    %cst_156 = arith.constant 5.000000e-01 : f32
    %452 = vector.broadcast %cst_156 : f32 to vector<1x64xf32>
    %453 = arith.mulf %452, %451 : vector<1x64xf32>
    %454 = math.tanh %453 : vector<1x64xf32>
    %cst_157 = arith.constant 5.000000e-01 : f32
    %455 = vector.broadcast %cst_157 : f32 to vector<1x64xf32>
    %456 = arith.mulf %455, %454 : vector<1x64xf32>
    %cst_158 = arith.constant 5.000000e-01 : f32
    %457 = vector.broadcast %cst_158 : f32 to vector<1x64xf32>
    %458 = arith.addf %456, %457 : vector<1x64xf32>
    %459 = vector.extract_strided_slice %442 {offsets = [0, 128], sizes = [1, 64], strides = [1, 1]} : vector<1x256xf32> to vector<1x64xf32>
    %460 = math.tanh %459 : vector<1x64xf32>
    %461 = vector.extract_strided_slice %442 {offsets = [0, 192], sizes = [1, 64], strides = [1, 1]} : vector<1x256xf32> to vector<1x64xf32>
    %cst_159 = arith.constant 5.000000e-01 : f32
    %462 = vector.broadcast %cst_159 : f32 to vector<1x64xf32>
    %463 = arith.mulf %462, %461 : vector<1x64xf32>
    %464 = math.tanh %463 : vector<1x64xf32>
    %cst_160 = arith.constant 5.000000e-01 : f32
    %465 = vector.broadcast %cst_160 : f32 to vector<1x64xf32>
    %466 = arith.mulf %465, %464 : vector<1x64xf32>
    %cst_161 = arith.constant 5.000000e-01 : f32
    %467 = vector.broadcast %cst_161 : f32 to vector<1x64xf32>
    %468 = arith.addf %466, %467 : vector<1x64xf32>
    %469 = arith.mulf %458, %400 : vector<1x64xf32>
    %470 = arith.mulf %450, %460 : vector<1x64xf32>
    %471 = arith.addf %469, %470 : vector<1x64xf32>
    %472 = math.tanh %471 : vector<1x64xf32>
    %473 = arith.mulf %468, %472 : vector<1x64xf32>
    %c1_162 = arith.constant 1 : index
    %c0_163 = arith.constant 0 : index
    %474 = vector.load %arg11[%c1_162, %c0_163] : memref<8x64xf32, #tpu.memory_space<vmem>>, vector<1x64xf32>
    tpu.vector_store %arg11[%c1_162, %c0_163], %473 {strides = array<i32>} : memref<8x64xf32, #tpu.memory_space<vmem>>, vector<1x64xf32>,
    %475 = vector.extract_strided_slice %328 {offsets = [2, 0], sizes = [1, 256], strides = [1, 1]} : vector<8x256xf32> to vector<1x256xf32>
    %476 = arith.truncf %438 : vector<1x64xf32> to vector<1x64xbf16>
    %cst_164 = arith.constant dense<0.000000e+00> : vector<1x256xf32>
    %477 = tpu.matmul %476, %1, %cst_164 {dimension_numbers = #tpu.dot_dimension_numbers<[1], [0], [0], [1], [0, 0, 1, 1], [], []>} : vector<1x64xbf16>, vector<64x256xbf16>, vector<1x256xf32> -> vector<1x256xf32>
    %478 = arith.addf %475, %477 : vector<1x256xf32>
    %479 = vector.extract_strided_slice %478 {offsets = [0, 0], sizes = [1, 64], strides = [1, 1]} : vector<1x256xf32> to vector<1x64xf32>
    %cst_165 = arith.constant 5.000000e-01 : f32
    %480 = vector.broadcast %cst_165 : f32 to vector<1x64xf32>
    %481 = arith.mulf %480, %479 : vector<1x64xf32>
    %482 = math.tanh %481 : vector<1x64xf32>
    %cst_166 = arith.constant 5.000000e-01 : f32
    %483 = vector.broadcast %cst_166 : f32 to vector<1x64xf32>
    %484 = arith.mulf %483, %482 : vector<1x64xf32>
    %cst_167 = arith.constant 5.000000e-01 : f32
    %485 = vector.broadcast %cst_167 : f32 to vector<1x64xf32>
    %486 = arith.addf %484, %485 : vector<1x64xf32>
    %487 = vector.extract_strided_slice %478 {offsets = [0, 64], sizes = [1, 64], strides = [1, 1]} : vector<1x256xf32> to vector<1x64xf32>
    %cst_168 = arith.constant 5.000000e-01 : f32
    %488 = vector.broadcast %cst_168 : f32 to vector<1x64xf32>
    %489 = arith.mulf %488, %487 : vector<1x64xf32>
    %490 = math.tanh %489 : vector<1x64xf32>
    %cst_169 = arith.constant 5.000000e-01 : f32
    %491 = vector.broadcast %cst_169 : f32 to vector<1x64xf32>
    %492 = arith.mulf %491, %490 : vector<1x64xf32>
    %cst_170 = arith.constant 5.000000e-01 : f32
    %493 = vector.broadcast %cst_170 : f32 to vector<1x64xf32>
    %494 = arith.addf %492, %493 : vector<1x64xf32>
    %495 = vector.extract_strided_slice %478 {offsets = [0, 128], sizes = [1, 64], strides = [1, 1]} : vector<1x256xf32> to vector<1x64xf32>
    %496 = math.tanh %495 : vector<1x64xf32>
    %497 = vector.extract_strided_slice %478 {offsets = [0, 192], sizes = [1, 64], strides = [1, 1]} : vector<1x256xf32> to vector<1x64xf32>
    %cst_171 = arith.constant 5.000000e-01 : f32
    %498 = vector.broadcast %cst_171 : f32 to vector<1x64xf32>
    %499 = arith.mulf %498, %497 : vector<1x64xf32>
    %500 = math.tanh %499 : vector<1x64xf32>
    %cst_172 = arith.constant 5.000000e-01 : f32
    %501 = vector.broadcast %cst_172 : f32 to vector<1x64xf32>
    %502 = arith.mulf %501, %500 : vector<1x64xf32>
    %cst_173 = arith.constant 5.000000e-01 : f32
    %503 = vector.broadcast %cst_173 : f32 to vector<1x64xf32>
    %504 = arith.addf %502, %503 : vector<1x64xf32>
    %505 = arith.mulf %494, %436 : vector<1x64xf32>
    %506 = arith.mulf %486, %496 : vector<1x64xf32>
    %507 = arith.addf %505, %506 : vector<1x64xf32>
    %508 = math.tanh %507 : vector<1x64xf32>
    %509 = arith.mulf %504, %508 : vector<1x64xf32>
    %510 = tpu.concatenate %509, %473 in 1 : vector<1x64xf32>, vector<1x64xf32> -> vector<1x128xf32>
    %511 = arith.truncf %510 : vector<1x128xf32> to vector<1x128xbf16>
    %cst_174 = arith.constant dense<0.000000e+00> : vector<1x256xf32>
    %512 = tpu.matmul %511, %2, %cst_174 {dimension_numbers = #tpu.dot_dimension_numbers<[1], [0], [0], [1], [0, 0, 1, 1], [], []>} : vector<1x128xbf16>, vector<128x256xbf16>, vector<1x256xf32> -> vector<1x256xf32>
    %513 = arith.addf %512, %7 : vector<1x256xf32>
    %514 = vector.extract_strided_slice %513 {offsets = [0, 0], sizes = [1, 64], strides = [1, 1]} : vector<1x256xf32> to vector<1x64xf32>
    %cst_175 = arith.constant 5.000000e-01 : f32
    %515 = vector.broadcast %cst_175 : f32 to vector<1x64xf32>
    %516 = arith.mulf %515, %514 : vector<1x64xf32>
    %517 = math.tanh %516 : vector<1x64xf32>
    %cst_176 = arith.constant 5.000000e-01 : f32
    %518 = vector.broadcast %cst_176 : f32 to vector<1x64xf32>
    %519 = arith.mulf %518, %517 : vector<1x64xf32>
    %cst_177 = arith.constant 5.000000e-01 : f32
    %520 = vector.broadcast %cst_177 : f32 to vector<1x64xf32>
    %521 = arith.addf %519, %520 : vector<1x64xf32>
    %522 = vector.extract_strided_slice %513 {offsets = [0, 64], sizes = [1, 64], strides = [1, 1]} : vector<1x256xf32> to vector<1x64xf32>
    %cst_178 = arith.constant 5.000000e-01 : f32
    %523 = vector.broadcast %cst_178 : f32 to vector<1x64xf32>
    %524 = arith.mulf %523, %522 : vector<1x64xf32>
    %525 = math.tanh %524 : vector<1x64xf32>
    %cst_179 = arith.constant 5.000000e-01 : f32
    %526 = vector.broadcast %cst_179 : f32 to vector<1x64xf32>
    %527 = arith.mulf %526, %525 : vector<1x64xf32>
    %cst_180 = arith.constant 5.000000e-01 : f32
    %528 = vector.broadcast %cst_180 : f32 to vector<1x64xf32>
    %529 = arith.addf %527, %528 : vector<1x64xf32>
    %530 = vector.extract_strided_slice %513 {offsets = [0, 128], sizes = [1, 64], strides = [1, 1]} : vector<1x256xf32> to vector<1x64xf32>
    %531 = math.tanh %530 : vector<1x64xf32>
    %532 = vector.extract_strided_slice %513 {offsets = [0, 192], sizes = [1, 64], strides = [1, 1]} : vector<1x256xf32> to vector<1x64xf32>
    %cst_181 = arith.constant 5.000000e-01 : f32
    %533 = vector.broadcast %cst_181 : f32 to vector<1x64xf32>
    %534 = arith.mulf %533, %532 : vector<1x64xf32>
    %535 = math.tanh %534 : vector<1x64xf32>
    %cst_182 = arith.constant 5.000000e-01 : f32
    %536 = vector.broadcast %cst_182 : f32 to vector<1x64xf32>
    %537 = arith.mulf %536, %535 : vector<1x64xf32>
    %cst_183 = arith.constant 5.000000e-01 : f32
    %538 = vector.broadcast %cst_183 : f32 to vector<1x64xf32>
    %539 = arith.addf %537, %538 : vector<1x64xf32>
    %540 = arith.mulf %529, %471 : vector<1x64xf32>
    %541 = arith.mulf %521, %531 : vector<1x64xf32>
    %542 = arith.addf %540, %541 : vector<1x64xf32>
    %543 = math.tanh %542 : vector<1x64xf32>
    %544 = arith.mulf %539, %543 : vector<1x64xf32>
    %c2_184 = arith.constant 2 : index
    %c0_185 = arith.constant 0 : index
    %545 = vector.load %arg11[%c2_184, %c0_185] : memref<8x64xf32, #tpu.memory_space<vmem>>, vector<1x64xf32>
    tpu.vector_store %arg11[%c2_184, %c0_185], %544 {strides = array<i32>} : memref<8x64xf32, #tpu.memory_space<vmem>>, vector<1x64xf32>,
    %546 = vector.extract_strided_slice %328 {offsets = [3, 0], sizes = [1, 256], strides = [1, 1]} : vector<8x256xf32> to vector<1x256xf32>
    %547 = arith.truncf %509 : vector<1x64xf32> to vector<1x64xbf16>
    %cst_186 = arith.constant dense<0.000000e+00> : vector<1x256xf32>
    %548 = tpu.matmul %547, %1, %cst_186 {dimension_numbers = #tpu.dot_dimension_numbers<[1], [0], [0], [1], [0, 0, 1, 1], [], []>} : vector<1x64xbf16>, vector<64x256xbf16>, vector<1x256xf32> -> vector<1x256xf32>
    %549 = arith.addf %546, %548 : vector<1x256xf32>
    %550 = vector.extract_strided_slice %549 {offsets = [0, 0], sizes = [1, 64], strides = [1, 1]} : vector<1x256xf32> to vector<1x64xf32>
    %cst_187 = arith.constant 5.000000e-01 : f32
    %551 = vector.broadcast %cst_187 : f32 to vector<1x64xf32>
    %552 = arith.mulf %551, %550 : vector<1x64xf32>
    %553 = math.tanh %552 : vector<1x64xf32>
    %cst_188 = arith.constant 5.000000e-01 : f32
    %554 = vector.broadcast %cst_188 : f32 to vector<1x64xf32>
    %555 = arith.mulf %554, %553 : vector<1x64xf32>
    %cst_189 = arith.constant 5.000000e-01 : f32
    %556 = vector.broadcast %cst_189 : f32 to vector<1x64xf32>
    %557 = arith.addf %555, %556 : vector<1x64xf32>
    %558 = vector.extract_strided_slice %549 {offsets = [0, 64], sizes = [1, 64], strides = [1, 1]} : vector<1x256xf32> to vector<1x64xf32>
    %cst_190 = arith.constant 5.000000e-01 : f32
    %559 = vector.broadcast %cst_190 : f32 to vector<1x64xf32>
    %560 = arith.mulf %559, %558 : vector<1x64xf32>
    %561 = math.tanh %560 : vector<1x64xf32>
    %cst_191 = arith.constant 5.000000e-01 : f32
    %562 = vector.broadcast %cst_191 : f32 to vector<1x64xf32>
    %563 = arith.mulf %562, %561 : vector<1x64xf32>
    %cst_192 = arith.constant 5.000000e-01 : f32
    %564 = vector.broadcast %cst_192 : f32 to vector<1x64xf32>
    %565 = arith.addf %563, %564 : vector<1x64xf32>
    %566 = vector.extract_strided_slice %549 {offsets = [0, 128], sizes = [1, 64], strides = [1, 1]} : vector<1x256xf32> to vector<1x64xf32>
    %567 = math.tanh %566 : vector<1x64xf32>
    %568 = vector.extract_strided_slice %549 {offsets = [0, 192], sizes = [1, 64], strides = [1, 1]} : vector<1x256xf32> to vector<1x64xf32>
    %cst_193 = arith.constant 5.000000e-01 : f32
    %569 = vector.broadcast %cst_193 : f32 to vector<1x64xf32>
    %570 = arith.mulf %569, %568 : vector<1x64xf32>
    %571 = math.tanh %570 : vector<1x64xf32>
    %cst_194 = arith.constant 5.000000e-01 : f32
    %572 = vector.broadcast %cst_194 : f32 to vector<1x64xf32>
    %573 = arith.mulf %572, %571 : vector<1x64xf32>
    %cst_195 = arith.constant 5.000000e-01 : f32
    %574 = vector.broadcast %cst_195 : f32 to vector<1x64xf32>
    %575 = arith.addf %573, %574 : vector<1x64xf32>
    %576 = arith.mulf %565, %507 : vector<1x64xf32>
    %577 = arith.mulf %557, %567 : vector<1x64xf32>
    %578 = arith.addf %576, %577 : vector<1x64xf32>
    %579 = math.tanh %578 : vector<1x64xf32>
    %580 = arith.mulf %575, %579 : vector<1x64xf32>
    %581 = tpu.concatenate %580, %544 in 1 : vector<1x64xf32>, vector<1x64xf32> -> vector<1x128xf32>
    %582 = arith.truncf %581 : vector<1x128xf32> to vector<1x128xbf16>
    %cst_196 = arith.constant dense<0.000000e+00> : vector<1x256xf32>
    %583 = tpu.matmul %582, %2, %cst_196 {dimension_numbers = #tpu.dot_dimension_numbers<[1], [0], [0], [1], [0, 0, 1, 1], [], []>} : vector<1x128xbf16>, vector<128x256xbf16>, vector<1x256xf32> -> vector<1x256xf32>
    %584 = arith.addf %583, %7 : vector<1x256xf32>
    %585 = vector.extract_strided_slice %584 {offsets = [0, 0], sizes = [1, 64], strides = [1, 1]} : vector<1x256xf32> to vector<1x64xf32>
    %cst_197 = arith.constant 5.000000e-01 : f32
    %586 = vector.broadcast %cst_197 : f32 to vector<1x64xf32>
    %587 = arith.mulf %586, %585 : vector<1x64xf32>
    %588 = math.tanh %587 : vector<1x64xf32>
    %cst_198 = arith.constant 5.000000e-01 : f32
    %589 = vector.broadcast %cst_198 : f32 to vector<1x64xf32>
    %590 = arith.mulf %589, %588 : vector<1x64xf32>
    %cst_199 = arith.constant 5.000000e-01 : f32
    %591 = vector.broadcast %cst_199 : f32 to vector<1x64xf32>
    %592 = arith.addf %590, %591 : vector<1x64xf32>
    %593 = vector.extract_strided_slice %584 {offsets = [0, 64], sizes = [1, 64], strides = [1, 1]} : vector<1x256xf32> to vector<1x64xf32>
    %cst_200 = arith.constant 5.000000e-01 : f32
    %594 = vector.broadcast %cst_200 : f32 to vector<1x64xf32>
    %595 = arith.mulf %594, %593 : vector<1x64xf32>
    %596 = math.tanh %595 : vector<1x64xf32>
    %cst_201 = arith.constant 5.000000e-01 : f32
    %597 = vector.broadcast %cst_201 : f32 to vector<1x64xf32>
    %598 = arith.mulf %597, %596 : vector<1x64xf32>
    %cst_202 = arith.constant 5.000000e-01 : f32
    %599 = vector.broadcast %cst_202 : f32 to vector<1x64xf32>
    %600 = arith.addf %598, %599 : vector<1x64xf32>
    %601 = vector.extract_strided_slice %584 {offsets = [0, 128], sizes = [1, 64], strides = [1, 1]} : vector<1x256xf32> to vector<1x64xf32>
    %602 = math.tanh %601 : vector<1x64xf32>
    %603 = vector.extract_strided_slice %584 {offsets = [0, 192], sizes = [1, 64], strides = [1, 1]} : vector<1x256xf32> to vector<1x64xf32>
    %cst_203 = arith.constant 5.000000e-01 : f32
    %604 = vector.broadcast %cst_203 : f32 to vector<1x64xf32>
    %605 = arith.mulf %604, %603 : vector<1x64xf32>
    %606 = math.tanh %605 : vector<1x64xf32>
    %cst_204 = arith.constant 5.000000e-01 : f32
    %607 = vector.broadcast %cst_204 : f32 to vector<1x64xf32>
    %608 = arith.mulf %607, %606 : vector<1x64xf32>
    %cst_205 = arith.constant 5.000000e-01 : f32
    %609 = vector.broadcast %cst_205 : f32 to vector<1x64xf32>
    %610 = arith.addf %608, %609 : vector<1x64xf32>
    %611 = arith.mulf %600, %542 : vector<1x64xf32>
    %612 = arith.mulf %592, %602 : vector<1x64xf32>
    %613 = arith.addf %611, %612 : vector<1x64xf32>
    %614 = math.tanh %613 : vector<1x64xf32>
    %615 = arith.mulf %610, %614 : vector<1x64xf32>
    %c3_206 = arith.constant 3 : index
    %c0_207 = arith.constant 0 : index
    %616 = vector.load %arg11[%c3_206, %c0_207] : memref<8x64xf32, #tpu.memory_space<vmem>>, vector<1x64xf32>
    tpu.vector_store %arg11[%c3_206, %c0_207], %615 {strides = array<i32>} : memref<8x64xf32, #tpu.memory_space<vmem>>, vector<1x64xf32>,
    %617 = vector.extract_strided_slice %328 {offsets = [4, 0], sizes = [1, 256], strides = [1, 1]} : vector<8x256xf32> to vector<1x256xf32>
    %618 = arith.truncf %580 : vector<1x64xf32> to vector<1x64xbf16>
    %cst_208 = arith.constant dense<0.000000e+00> : vector<1x256xf32>
    %619 = tpu.matmul %618, %1, %cst_208 {dimension_numbers = #tpu.dot_dimension_numbers<[1], [0], [0], [1], [0, 0, 1, 1], [], []>} : vector<1x64xbf16>, vector<64x256xbf16>, vector<1x256xf32> -> vector<1x256xf32>
    %620 = arith.addf %617, %619 : vector<1x256xf32>
    %621 = vector.extract_strided_slice %620 {offsets = [0, 0], sizes = [1, 64], strides = [1, 1]} : vector<1x256xf32> to vector<1x64xf32>
    %cst_209 = arith.constant 5.000000e-01 : f32
    %622 = vector.broadcast %cst_209 : f32 to vector<1x64xf32>
    %623 = arith.mulf %622, %621 : vector<1x64xf32>
    %624 = math.tanh %623 : vector<1x64xf32>
    %cst_210 = arith.constant 5.000000e-01 : f32
    %625 = vector.broadcast %cst_210 : f32 to vector<1x64xf32>
    %626 = arith.mulf %625, %624 : vector<1x64xf32>
    %cst_211 = arith.constant 5.000000e-01 : f32
    %627 = vector.broadcast %cst_211 : f32 to vector<1x64xf32>
    %628 = arith.addf %626, %627 : vector<1x64xf32>
    %629 = vector.extract_strided_slice %620 {offsets = [0, 64], sizes = [1, 64], strides = [1, 1]} : vector<1x256xf32> to vector<1x64xf32>
    %cst_212 = arith.constant 5.000000e-01 : f32
    %630 = vector.broadcast %cst_212 : f32 to vector<1x64xf32>
    %631 = arith.mulf %630, %629 : vector<1x64xf32>
    %632 = math.tanh %631 : vector<1x64xf32>
    %cst_213 = arith.constant 5.000000e-01 : f32
    %633 = vector.broadcast %cst_213 : f32 to vector<1x64xf32>
    %634 = arith.mulf %633, %632 : vector<1x64xf32>
    %cst_214 = arith.constant 5.000000e-01 : f32
    %635 = vector.broadcast %cst_214 : f32 to vector<1x64xf32>
    %636 = arith.addf %634, %635 : vector<1x64xf32>
    %637 = vector.extract_strided_slice %620 {offsets = [0, 128], sizes = [1, 64], strides = [1, 1]} : vector<1x256xf32> to vector<1x64xf32>
    %638 = math.tanh %637 : vector<1x64xf32>
    %639 = vector.extract_strided_slice %620 {offsets = [0, 192], sizes = [1, 64], strides = [1, 1]} : vector<1x256xf32> to vector<1x64xf32>
    %cst_215 = arith.constant 5.000000e-01 : f32
    %640 = vector.broadcast %cst_215 : f32 to vector<1x64xf32>
    %641 = arith.mulf %640, %639 : vector<1x64xf32>
    %642 = math.tanh %641 : vector<1x64xf32>
    %cst_216 = arith.constant 5.000000e-01 : f32
    %643 = vector.broadcast %cst_216 : f32 to vector<1x64xf32>
    %644 = arith.mulf %643, %642 : vector<1x64xf32>
    %cst_217 = arith.constant 5.000000e-01 : f32
    %645 = vector.broadcast %cst_217 : f32 to vector<1x64xf32>
    %646 = arith.addf %644, %645 : vector<1x64xf32>
    %647 = arith.mulf %636, %578 : vector<1x64xf32>
    %648 = arith.mulf %628, %638 : vector<1x64xf32>
    %649 = arith.addf %647, %648 : vector<1x64xf32>
    %650 = math.tanh %649 : vector<1x64xf32>
    %651 = arith.mulf %646, %650 : vector<1x64xf32>
    %652 = tpu.concatenate %651, %615 in 1 : vector<1x64xf32>, vector<1x64xf32> -> vector<1x128xf32>
    %653 = arith.truncf %652 : vector<1x128xf32> to vector<1x128xbf16>
    %cst_218 = arith.constant dense<0.000000e+00> : vector<1x256xf32>
    %654 = tpu.matmul %653, %2, %cst_218 {dimension_numbers = #tpu.dot_dimension_numbers<[1], [0], [0], [1], [0, 0, 1, 1], [], []>} : vector<1x128xbf16>, vector<128x256xbf16>, vector<1x256xf32> -> vector<1x256xf32>
    %655 = arith.addf %654, %7 : vector<1x256xf32>
    %656 = vector.extract_strided_slice %655 {offsets = [0, 0], sizes = [1, 64], strides = [1, 1]} : vector<1x256xf32> to vector<1x64xf32>
    %cst_219 = arith.constant 5.000000e-01 : f32
    %657 = vector.broadcast %cst_219 : f32 to vector<1x64xf32>
    %658 = arith.mulf %657, %656 : vector<1x64xf32>
    %659 = math.tanh %658 : vector<1x64xf32>
    %cst_220 = arith.constant 5.000000e-01 : f32
    %660 = vector.broadcast %cst_220 : f32 to vector<1x64xf32>
    %661 = arith.mulf %660, %659 : vector<1x64xf32>
    %cst_221 = arith.constant 5.000000e-01 : f32
    %662 = vector.broadcast %cst_221 : f32 to vector<1x64xf32>
    %663 = arith.addf %661, %662 : vector<1x64xf32>
    %664 = vector.extract_strided_slice %655 {offsets = [0, 64], sizes = [1, 64], strides = [1, 1]} : vector<1x256xf32> to vector<1x64xf32>
    %cst_222 = arith.constant 5.000000e-01 : f32
    %665 = vector.broadcast %cst_222 : f32 to vector<1x64xf32>
    %666 = arith.mulf %665, %664 : vector<1x64xf32>
    %667 = math.tanh %666 : vector<1x64xf32>
    %cst_223 = arith.constant 5.000000e-01 : f32
    %668 = vector.broadcast %cst_223 : f32 to vector<1x64xf32>
    %669 = arith.mulf %668, %667 : vector<1x64xf32>
    %cst_224 = arith.constant 5.000000e-01 : f32
    %670 = vector.broadcast %cst_224 : f32 to vector<1x64xf32>
    %671 = arith.addf %669, %670 : vector<1x64xf32>
    %672 = vector.extract_strided_slice %655 {offsets = [0, 128], sizes = [1, 64], strides = [1, 1]} : vector<1x256xf32> to vector<1x64xf32>
    %673 = math.tanh %672 : vector<1x64xf32>
    %674 = vector.extract_strided_slice %655 {offsets = [0, 192], sizes = [1, 64], strides = [1, 1]} : vector<1x256xf32> to vector<1x64xf32>
    %cst_225 = arith.constant 5.000000e-01 : f32
    %675 = vector.broadcast %cst_225 : f32 to vector<1x64xf32>
    %676 = arith.mulf %675, %674 : vector<1x64xf32>
    %677 = math.tanh %676 : vector<1x64xf32>
    %cst_226 = arith.constant 5.000000e-01 : f32
    %678 = vector.broadcast %cst_226 : f32 to vector<1x64xf32>
    %679 = arith.mulf %678, %677 : vector<1x64xf32>
    %cst_227 = arith.constant 5.000000e-01 : f32
    %680 = vector.broadcast %cst_227 : f32 to vector<1x64xf32>
    %681 = arith.addf %679, %680 : vector<1x64xf32>
    %682 = arith.mulf %671, %613 : vector<1x64xf32>
    %683 = arith.mulf %663, %673 : vector<1x64xf32>
    %684 = arith.addf %682, %683 : vector<1x64xf32>
    %685 = math.tanh %684 : vector<1x64xf32>
    %686 = arith.mulf %681, %685 : vector<1x64xf32>
    %c4_228 = arith.constant 4 : index
    %c0_229 = arith.constant 0 : index
    %687 = vector.load %arg11[%c4_228, %c0_229] : memref<8x64xf32, #tpu.memory_space<vmem>>, vector<1x64xf32>
    tpu.vector_store %arg11[%c4_228, %c0_229], %686 {strides = array<i32>} : memref<8x64xf32, #tpu.memory_space<vmem>>, vector<1x64xf32>,
    %688 = vector.extract_strided_slice %328 {offsets = [5, 0], sizes = [1, 256], strides = [1, 1]} : vector<8x256xf32> to vector<1x256xf32>
    %689 = arith.truncf %651 : vector<1x64xf32> to vector<1x64xbf16>
    %cst_230 = arith.constant dense<0.000000e+00> : vector<1x256xf32>
    %690 = tpu.matmul %689, %1, %cst_230 {dimension_numbers = #tpu.dot_dimension_numbers<[1], [0], [0], [1], [0, 0, 1, 1], [], []>} : vector<1x64xbf16>, vector<64x256xbf16>, vector<1x256xf32> -> vector<1x256xf32>
    %691 = arith.addf %688, %690 : vector<1x256xf32>
    %692 = vector.extract_strided_slice %691 {offsets = [0, 0], sizes = [1, 64], strides = [1, 1]} : vector<1x256xf32> to vector<1x64xf32>
    %cst_231 = arith.constant 5.000000e-01 : f32
    %693 = vector.broadcast %cst_231 : f32 to vector<1x64xf32>
    %694 = arith.mulf %693, %692 : vector<1x64xf32>
    %695 = math.tanh %694 : vector<1x64xf32>
    %cst_232 = arith.constant 5.000000e-01 : f32
    %696 = vector.broadcast %cst_232 : f32 to vector<1x64xf32>
    %697 = arith.mulf %696, %695 : vector<1x64xf32>
    %cst_233 = arith.constant 5.000000e-01 : f32
    %698 = vector.broadcast %cst_233 : f32 to vector<1x64xf32>
    %699 = arith.addf %697, %698 : vector<1x64xf32>
    %700 = vector.extract_strided_slice %691 {offsets = [0, 64], sizes = [1, 64], strides = [1, 1]} : vector<1x256xf32> to vector<1x64xf32>
    %cst_234 = arith.constant 5.000000e-01 : f32
    %701 = vector.broadcast %cst_234 : f32 to vector<1x64xf32>
    %702 = arith.mulf %701, %700 : vector<1x64xf32>
    %703 = math.tanh %702 : vector<1x64xf32>
    %cst_235 = arith.constant 5.000000e-01 : f32
    %704 = vector.broadcast %cst_235 : f32 to vector<1x64xf32>
    %705 = arith.mulf %704, %703 : vector<1x64xf32>
    %cst_236 = arith.constant 5.000000e-01 : f32
    %706 = vector.broadcast %cst_236 : f32 to vector<1x64xf32>
    %707 = arith.addf %705, %706 : vector<1x64xf32>
    %708 = vector.extract_strided_slice %691 {offsets = [0, 128], sizes = [1, 64], strides = [1, 1]} : vector<1x256xf32> to vector<1x64xf32>
    %709 = math.tanh %708 : vector<1x64xf32>
    %710 = vector.extract_strided_slice %691 {offsets = [0, 192], sizes = [1, 64], strides = [1, 1]} : vector<1x256xf32> to vector<1x64xf32>
    %cst_237 = arith.constant 5.000000e-01 : f32
    %711 = vector.broadcast %cst_237 : f32 to vector<1x64xf32>
    %712 = arith.mulf %711, %710 : vector<1x64xf32>
    %713 = math.tanh %712 : vector<1x64xf32>
    %cst_238 = arith.constant 5.000000e-01 : f32
    %714 = vector.broadcast %cst_238 : f32 to vector<1x64xf32>
    %715 = arith.mulf %714, %713 : vector<1x64xf32>
    %cst_239 = arith.constant 5.000000e-01 : f32
    %716 = vector.broadcast %cst_239 : f32 to vector<1x64xf32>
    %717 = arith.addf %715, %716 : vector<1x64xf32>
    %718 = arith.mulf %707, %649 : vector<1x64xf32>
    %719 = arith.mulf %699, %709 : vector<1x64xf32>
    %720 = arith.addf %718, %719 : vector<1x64xf32>
    %721 = math.tanh %720 : vector<1x64xf32>
    %722 = arith.mulf %717, %721 : vector<1x64xf32>
    %723 = tpu.concatenate %722, %686 in 1 : vector<1x64xf32>, vector<1x64xf32> -> vector<1x128xf32>
    %724 = arith.truncf %723 : vector<1x128xf32> to vector<1x128xbf16>
    %cst_240 = arith.constant dense<0.000000e+00> : vector<1x256xf32>
    %725 = tpu.matmul %724, %2, %cst_240 {dimension_numbers = #tpu.dot_dimension_numbers<[1], [0], [0], [1], [0, 0, 1, 1], [], []>} : vector<1x128xbf16>, vector<128x256xbf16>, vector<1x256xf32> -> vector<1x256xf32>
    %726 = arith.addf %725, %7 : vector<1x256xf32>
    %727 = vector.extract_strided_slice %726 {offsets = [0, 0], sizes = [1, 64], strides = [1, 1]} : vector<1x256xf32> to vector<1x64xf32>
    %cst_241 = arith.constant 5.000000e-01 : f32
    %728 = vector.broadcast %cst_241 : f32 to vector<1x64xf32>
    %729 = arith.mulf %728, %727 : vector<1x64xf32>
    %730 = math.tanh %729 : vector<1x64xf32>
    %cst_242 = arith.constant 5.000000e-01 : f32
    %731 = vector.broadcast %cst_242 : f32 to vector<1x64xf32>
    %732 = arith.mulf %731, %730 : vector<1x64xf32>
    %cst_243 = arith.constant 5.000000e-01 : f32
    %733 = vector.broadcast %cst_243 : f32 to vector<1x64xf32>
    %734 = arith.addf %732, %733 : vector<1x64xf32>
    %735 = vector.extract_strided_slice %726 {offsets = [0, 64], sizes = [1, 64], strides = [1, 1]} : vector<1x256xf32> to vector<1x64xf32>
    %cst_244 = arith.constant 5.000000e-01 : f32
    %736 = vector.broadcast %cst_244 : f32 to vector<1x64xf32>
    %737 = arith.mulf %736, %735 : vector<1x64xf32>
    %738 = math.tanh %737 : vector<1x64xf32>
    %cst_245 = arith.constant 5.000000e-01 : f32
    %739 = vector.broadcast %cst_245 : f32 to vector<1x64xf32>
    %740 = arith.mulf %739, %738 : vector<1x64xf32>
    %cst_246 = arith.constant 5.000000e-01 : f32
    %741 = vector.broadcast %cst_246 : f32 to vector<1x64xf32>
    %742 = arith.addf %740, %741 : vector<1x64xf32>
    %743 = vector.extract_strided_slice %726 {offsets = [0, 128], sizes = [1, 64], strides = [1, 1]} : vector<1x256xf32> to vector<1x64xf32>
    %744 = math.tanh %743 : vector<1x64xf32>
    %745 = vector.extract_strided_slice %726 {offsets = [0, 192], sizes = [1, 64], strides = [1, 1]} : vector<1x256xf32> to vector<1x64xf32>
    %cst_247 = arith.constant 5.000000e-01 : f32
    %746 = vector.broadcast %cst_247 : f32 to vector<1x64xf32>
    %747 = arith.mulf %746, %745 : vector<1x64xf32>
    %748 = math.tanh %747 : vector<1x64xf32>
    %cst_248 = arith.constant 5.000000e-01 : f32
    %749 = vector.broadcast %cst_248 : f32 to vector<1x64xf32>
    %750 = arith.mulf %749, %748 : vector<1x64xf32>
    %cst_249 = arith.constant 5.000000e-01 : f32
    %751 = vector.broadcast %cst_249 : f32 to vector<1x64xf32>
    %752 = arith.addf %750, %751 : vector<1x64xf32>
    %753 = arith.mulf %742, %684 : vector<1x64xf32>
    %754 = arith.mulf %734, %744 : vector<1x64xf32>
    %755 = arith.addf %753, %754 : vector<1x64xf32>
    %756 = math.tanh %755 : vector<1x64xf32>
    %757 = arith.mulf %752, %756 : vector<1x64xf32>
    %c5_250 = arith.constant 5 : index
    %c0_251 = arith.constant 0 : index
    %758 = vector.load %arg11[%c5_250, %c0_251] : memref<8x64xf32, #tpu.memory_space<vmem>>, vector<1x64xf32>
    tpu.vector_store %arg11[%c5_250, %c0_251], %757 {strides = array<i32>} : memref<8x64xf32, #tpu.memory_space<vmem>>, vector<1x64xf32>,
    %759 = vector.extract_strided_slice %328 {offsets = [6, 0], sizes = [1, 256], strides = [1, 1]} : vector<8x256xf32> to vector<1x256xf32>
    %760 = arith.truncf %722 : vector<1x64xf32> to vector<1x64xbf16>
    %cst_252 = arith.constant dense<0.000000e+00> : vector<1x256xf32>
    %761 = tpu.matmul %760, %1, %cst_252 {dimension_numbers = #tpu.dot_dimension_numbers<[1], [0], [0], [1], [0, 0, 1, 1], [], []>} : vector<1x64xbf16>, vector<64x256xbf16>, vector<1x256xf32> -> vector<1x256xf32>
    %762 = arith.addf %759, %761 : vector<1x256xf32>
    %763 = vector.extract_strided_slice %762 {offsets = [0, 0], sizes = [1, 64], strides = [1, 1]} : vector<1x256xf32> to vector<1x64xf32>
    %cst_253 = arith.constant 5.000000e-01 : f32
    %764 = vector.broadcast %cst_253 : f32 to vector<1x64xf32>
    %765 = arith.mulf %764, %763 : vector<1x64xf32>
    %766 = math.tanh %765 : vector<1x64xf32>
    %cst_254 = arith.constant 5.000000e-01 : f32
    %767 = vector.broadcast %cst_254 : f32 to vector<1x64xf32>
    %768 = arith.mulf %767, %766 : vector<1x64xf32>
    %cst_255 = arith.constant 5.000000e-01 : f32
    %769 = vector.broadcast %cst_255 : f32 to vector<1x64xf32>
    %770 = arith.addf %768, %769 : vector<1x64xf32>
    %771 = vector.extract_strided_slice %762 {offsets = [0, 64], sizes = [1, 64], strides = [1, 1]} : vector<1x256xf32> to vector<1x64xf32>
    %cst_256 = arith.constant 5.000000e-01 : f32
    %772 = vector.broadcast %cst_256 : f32 to vector<1x64xf32>
    %773 = arith.mulf %772, %771 : vector<1x64xf32>
    %774 = math.tanh %773 : vector<1x64xf32>
    %cst_257 = arith.constant 5.000000e-01 : f32
    %775 = vector.broadcast %cst_257 : f32 to vector<1x64xf32>
    %776 = arith.mulf %775, %774 : vector<1x64xf32>
    %cst_258 = arith.constant 5.000000e-01 : f32
    %777 = vector.broadcast %cst_258 : f32 to vector<1x64xf32>
    %778 = arith.addf %776, %777 : vector<1x64xf32>
    %779 = vector.extract_strided_slice %762 {offsets = [0, 128], sizes = [1, 64], strides = [1, 1]} : vector<1x256xf32> to vector<1x64xf32>
    %780 = math.tanh %779 : vector<1x64xf32>
    %781 = vector.extract_strided_slice %762 {offsets = [0, 192], sizes = [1, 64], strides = [1, 1]} : vector<1x256xf32> to vector<1x64xf32>
    %cst_259 = arith.constant 5.000000e-01 : f32
    %782 = vector.broadcast %cst_259 : f32 to vector<1x64xf32>
    %783 = arith.mulf %782, %781 : vector<1x64xf32>
    %784 = math.tanh %783 : vector<1x64xf32>
    %cst_260 = arith.constant 5.000000e-01 : f32
    %785 = vector.broadcast %cst_260 : f32 to vector<1x64xf32>
    %786 = arith.mulf %785, %784 : vector<1x64xf32>
    %cst_261 = arith.constant 5.000000e-01 : f32
    %787 = vector.broadcast %cst_261 : f32 to vector<1x64xf32>
    %788 = arith.addf %786, %787 : vector<1x64xf32>
    %789 = arith.mulf %778, %720 : vector<1x64xf32>
    %790 = arith.mulf %770, %780 : vector<1x64xf32>
    %791 = arith.addf %789, %790 : vector<1x64xf32>
    %792 = math.tanh %791 : vector<1x64xf32>
    %793 = arith.mulf %788, %792 : vector<1x64xf32>
    %794 = tpu.concatenate %793, %757 in 1 : vector<1x64xf32>, vector<1x64xf32> -> vector<1x128xf32>
    %795 = arith.truncf %794 : vector<1x128xf32> to vector<1x128xbf16>
    %cst_262 = arith.constant dense<0.000000e+00> : vector<1x256xf32>
    %796 = tpu.matmul %795, %2, %cst_262 {dimension_numbers = #tpu.dot_dimension_numbers<[1], [0], [0], [1], [0, 0, 1, 1], [], []>} : vector<1x128xbf16>, vector<128x256xbf16>, vector<1x256xf32> -> vector<1x256xf32>
    %797 = arith.addf %796, %7 : vector<1x256xf32>
    %798 = vector.extract_strided_slice %797 {offsets = [0, 0], sizes = [1, 64], strides = [1, 1]} : vector<1x256xf32> to vector<1x64xf32>
    %cst_263 = arith.constant 5.000000e-01 : f32
    %799 = vector.broadcast %cst_263 : f32 to vector<1x64xf32>
    %800 = arith.mulf %799, %798 : vector<1x64xf32>
    %801 = math.tanh %800 : vector<1x64xf32>
    %cst_264 = arith.constant 5.000000e-01 : f32
    %802 = vector.broadcast %cst_264 : f32 to vector<1x64xf32>
    %803 = arith.mulf %802, %801 : vector<1x64xf32>
    %cst_265 = arith.constant 5.000000e-01 : f32
    %804 = vector.broadcast %cst_265 : f32 to vector<1x64xf32>
    %805 = arith.addf %803, %804 : vector<1x64xf32>
    %806 = vector.extract_strided_slice %797 {offsets = [0, 64], sizes = [1, 64], strides = [1, 1]} : vector<1x256xf32> to vector<1x64xf32>
    %cst_266 = arith.constant 5.000000e-01 : f32
    %807 = vector.broadcast %cst_266 : f32 to vector<1x64xf32>
    %808 = arith.mulf %807, %806 : vector<1x64xf32>
    %809 = math.tanh %808 : vector<1x64xf32>
    %cst_267 = arith.constant 5.000000e-01 : f32
    %810 = vector.broadcast %cst_267 : f32 to vector<1x64xf32>
    %811 = arith.mulf %810, %809 : vector<1x64xf32>
    %cst_268 = arith.constant 5.000000e-01 : f32
    %812 = vector.broadcast %cst_268 : f32 to vector<1x64xf32>
    %813 = arith.addf %811, %812 : vector<1x64xf32>
    %814 = vector.extract_strided_slice %797 {offsets = [0, 128], sizes = [1, 64], strides = [1, 1]} : vector<1x256xf32> to vector<1x64xf32>
    %815 = math.tanh %814 : vector<1x64xf32>
    %816 = vector.extract_strided_slice %797 {offsets = [0, 192], sizes = [1, 64], strides = [1, 1]} : vector<1x256xf32> to vector<1x64xf32>
    %cst_269 = arith.constant 5.000000e-01 : f32
    %817 = vector.broadcast %cst_269 : f32 to vector<1x64xf32>
    %818 = arith.mulf %817, %816 : vector<1x64xf32>
    %819 = math.tanh %818 : vector<1x64xf32>
    %cst_270 = arith.constant 5.000000e-01 : f32
    %820 = vector.broadcast %cst_270 : f32 to vector<1x64xf32>
    %821 = arith.mulf %820, %819 : vector<1x64xf32>
    %cst_271 = arith.constant 5.000000e-01 : f32
    %822 = vector.broadcast %cst_271 : f32 to vector<1x64xf32>
    %823 = arith.addf %821, %822 : vector<1x64xf32>
    %824 = arith.mulf %813, %755 : vector<1x64xf32>
    %825 = arith.mulf %805, %815 : vector<1x64xf32>
    %826 = arith.addf %824, %825 : vector<1x64xf32>
    %827 = math.tanh %826 : vector<1x64xf32>
    %828 = arith.mulf %823, %827 : vector<1x64xf32>
    %c6_272 = arith.constant 6 : index
    %c0_273 = arith.constant 0 : index
    %829 = vector.load %arg11[%c6_272, %c0_273] : memref<8x64xf32, #tpu.memory_space<vmem>>, vector<1x64xf32>
    tpu.vector_store %arg11[%c6_272, %c0_273], %828 {strides = array<i32>} : memref<8x64xf32, #tpu.memory_space<vmem>>, vector<1x64xf32>,
    %830 = vector.extract_strided_slice %328 {offsets = [7, 0], sizes = [1, 256], strides = [1, 1]} : vector<8x256xf32> to vector<1x256xf32>
    %831 = arith.truncf %793 : vector<1x64xf32> to vector<1x64xbf16>
    %cst_274 = arith.constant dense<0.000000e+00> : vector<1x256xf32>
    %832 = tpu.matmul %831, %1, %cst_274 {dimension_numbers = #tpu.dot_dimension_numbers<[1], [0], [0], [1], [0, 0, 1, 1], [], []>} : vector<1x64xbf16>, vector<64x256xbf16>, vector<1x256xf32> -> vector<1x256xf32>
    %833 = arith.addf %830, %832 : vector<1x256xf32>
    %834 = vector.extract_strided_slice %833 {offsets = [0, 0], sizes = [1, 64], strides = [1, 1]} : vector<1x256xf32> to vector<1x64xf32>
    %cst_275 = arith.constant 5.000000e-01 : f32
    %835 = vector.broadcast %cst_275 : f32 to vector<1x64xf32>
    %836 = arith.mulf %835, %834 : vector<1x64xf32>
    %837 = math.tanh %836 : vector<1x64xf32>
    %cst_276 = arith.constant 5.000000e-01 : f32
    %838 = vector.broadcast %cst_276 : f32 to vector<1x64xf32>
    %839 = arith.mulf %838, %837 : vector<1x64xf32>
    %cst_277 = arith.constant 5.000000e-01 : f32
    %840 = vector.broadcast %cst_277 : f32 to vector<1x64xf32>
    %841 = arith.addf %839, %840 : vector<1x64xf32>
    %842 = vector.extract_strided_slice %833 {offsets = [0, 64], sizes = [1, 64], strides = [1, 1]} : vector<1x256xf32> to vector<1x64xf32>
    %cst_278 = arith.constant 5.000000e-01 : f32
    %843 = vector.broadcast %cst_278 : f32 to vector<1x64xf32>
    %844 = arith.mulf %843, %842 : vector<1x64xf32>
    %845 = math.tanh %844 : vector<1x64xf32>
    %cst_279 = arith.constant 5.000000e-01 : f32
    %846 = vector.broadcast %cst_279 : f32 to vector<1x64xf32>
    %847 = arith.mulf %846, %845 : vector<1x64xf32>
    %cst_280 = arith.constant 5.000000e-01 : f32
    %848 = vector.broadcast %cst_280 : f32 to vector<1x64xf32>
    %849 = arith.addf %847, %848 : vector<1x64xf32>
    %850 = vector.extract_strided_slice %833 {offsets = [0, 128], sizes = [1, 64], strides = [1, 1]} : vector<1x256xf32> to vector<1x64xf32>
    %851 = math.tanh %850 : vector<1x64xf32>
    %852 = vector.extract_strided_slice %833 {offsets = [0, 192], sizes = [1, 64], strides = [1, 1]} : vector<1x256xf32> to vector<1x64xf32>
    %cst_281 = arith.constant 5.000000e-01 : f32
    %853 = vector.broadcast %cst_281 : f32 to vector<1x64xf32>
    %854 = arith.mulf %853, %852 : vector<1x64xf32>
    %855 = math.tanh %854 : vector<1x64xf32>
    %cst_282 = arith.constant 5.000000e-01 : f32
    %856 = vector.broadcast %cst_282 : f32 to vector<1x64xf32>
    %857 = arith.mulf %856, %855 : vector<1x64xf32>
    %cst_283 = arith.constant 5.000000e-01 : f32
    %858 = vector.broadcast %cst_283 : f32 to vector<1x64xf32>
    %859 = arith.addf %857, %858 : vector<1x64xf32>
    %860 = arith.mulf %849, %791 : vector<1x64xf32>
    %861 = arith.mulf %841, %851 : vector<1x64xf32>
    %862 = arith.addf %860, %861 : vector<1x64xf32>
    %863 = math.tanh %862 : vector<1x64xf32>
    %864 = arith.mulf %859, %863 : vector<1x64xf32>
    %865 = tpu.concatenate %864, %828 in 1 : vector<1x64xf32>, vector<1x64xf32> -> vector<1x128xf32>
    %866 = arith.truncf %865 : vector<1x128xf32> to vector<1x128xbf16>
    %cst_284 = arith.constant dense<0.000000e+00> : vector<1x256xf32>
    %867 = tpu.matmul %866, %2, %cst_284 {dimension_numbers = #tpu.dot_dimension_numbers<[1], [0], [0], [1], [0, 0, 1, 1], [], []>} : vector<1x128xbf16>, vector<128x256xbf16>, vector<1x256xf32> -> vector<1x256xf32>
    %868 = arith.addf %867, %7 : vector<1x256xf32>
    %869 = vector.extract_strided_slice %868 {offsets = [0, 0], sizes = [1, 64], strides = [1, 1]} : vector<1x256xf32> to vector<1x64xf32>
    %cst_285 = arith.constant 5.000000e-01 : f32
    %870 = vector.broadcast %cst_285 : f32 to vector<1x64xf32>
    %871 = arith.mulf %870, %869 : vector<1x64xf32>
    %872 = math.tanh %871 : vector<1x64xf32>
    %cst_286 = arith.constant 5.000000e-01 : f32
    %873 = vector.broadcast %cst_286 : f32 to vector<1x64xf32>
    %874 = arith.mulf %873, %872 : vector<1x64xf32>
    %cst_287 = arith.constant 5.000000e-01 : f32
    %875 = vector.broadcast %cst_287 : f32 to vector<1x64xf32>
    %876 = arith.addf %874, %875 : vector<1x64xf32>
    %877 = vector.extract_strided_slice %868 {offsets = [0, 64], sizes = [1, 64], strides = [1, 1]} : vector<1x256xf32> to vector<1x64xf32>
    %cst_288 = arith.constant 5.000000e-01 : f32
    %878 = vector.broadcast %cst_288 : f32 to vector<1x64xf32>
    %879 = arith.mulf %878, %877 : vector<1x64xf32>
    %880 = math.tanh %879 : vector<1x64xf32>
    %cst_289 = arith.constant 5.000000e-01 : f32
    %881 = vector.broadcast %cst_289 : f32 to vector<1x64xf32>
    %882 = arith.mulf %881, %880 : vector<1x64xf32>
    %cst_290 = arith.constant 5.000000e-01 : f32
    %883 = vector.broadcast %cst_290 : f32 to vector<1x64xf32>
    %884 = arith.addf %882, %883 : vector<1x64xf32>
    %885 = vector.extract_strided_slice %868 {offsets = [0, 128], sizes = [1, 64], strides = [1, 1]} : vector<1x256xf32> to vector<1x64xf32>
    %886 = math.tanh %885 : vector<1x64xf32>
    %887 = vector.extract_strided_slice %868 {offsets = [0, 192], sizes = [1, 64], strides = [1, 1]} : vector<1x256xf32> to vector<1x64xf32>
    %cst_291 = arith.constant 5.000000e-01 : f32
    %888 = vector.broadcast %cst_291 : f32 to vector<1x64xf32>
    %889 = arith.mulf %888, %887 : vector<1x64xf32>
    %890 = math.tanh %889 : vector<1x64xf32>
    %cst_292 = arith.constant 5.000000e-01 : f32
    %891 = vector.broadcast %cst_292 : f32 to vector<1x64xf32>
    %892 = arith.mulf %891, %890 : vector<1x64xf32>
    %cst_293 = arith.constant 5.000000e-01 : f32
    %893 = vector.broadcast %cst_293 : f32 to vector<1x64xf32>
    %894 = arith.addf %892, %893 : vector<1x64xf32>
    %895 = arith.mulf %884, %826 : vector<1x64xf32>
    %896 = arith.mulf %876, %886 : vector<1x64xf32>
    %897 = arith.addf %895, %896 : vector<1x64xf32>
    %898 = math.tanh %897 : vector<1x64xf32>
    %899 = arith.mulf %894, %898 : vector<1x64xf32>
    %c7_294 = arith.constant 7 : index
    %c0_295 = arith.constant 0 : index
    %900 = vector.load %arg11[%c7_294, %c0_295] : memref<8x64xf32, #tpu.memory_space<vmem>>, vector<1x64xf32>
    tpu.vector_store %arg11[%c7_294, %c0_295], %899 {strides = array<i32>} : memref<8x64xf32, #tpu.memory_space<vmem>>, vector<1x64xf32>,
    %c0_296 = arith.constant 0 : index
    %c0_297 = arith.constant 0 : index
    %901 = vector.load %arg11[%c0_296, %c0_297] : memref<8x64xf32, #tpu.memory_space<vmem>>, vector<8x64xf32>
    %902 = arith.truncf %901 : vector<8x64xf32> to vector<8x64xbf16>
    %c0_298 = arith.constant 0 : index
    %c0_299 = arith.constant 0 : index
    %903 = vector.load %arg6[%c0_298, %c0_299] : memref<64x32xbf16, #tpu.memory_space<vmem>>, vector<64x32xbf16>
    %cst_300 = arith.constant dense<0.000000e+00> : vector<8x32xf32>
    %904 = tpu.matmul %902, %903, %cst_300 {dimension_numbers = #tpu.dot_dimension_numbers<[1], [0], [0], [1], [0, 0, 1, 1], [], []>} : vector<8x64xbf16>, vector<64x32xbf16>, vector<8x32xf32> -> vector<8x32xf32>
    %c0_301 = arith.constant 0 : index
    %c0_302 = arith.constant 0 : index
    %905 = vector.load %arg7[%c0_301, %c0_302] : memref<1x32xf32, #tpu.memory_space<vmem>>, vector<1x32xf32>
    %906 = vector.broadcast %905 : vector<1x32xf32> to vector<8x32xf32>
    %907 = arith.addf %904, %906 : vector<8x32xf32>
    %908 = vector.extract_strided_slice %907 {offsets = [0, 16], sizes = [8, 16], strides = [1, 1]} : vector<8x32xf32> to vector<8x16xf32>
    %c0_303 = arith.constant 0 : index
    %c0_304 = arith.constant 0 : index
    %909 = vector.load %arg8[%c0_303, %c0_304] : memref<8x16xf32, #tpu.memory_space<vmem>>, vector<8x16xf32>
    tpu.vector_store %arg8[%c0_303, %c0_304], %908 {strides = array<i32>} : memref<8x16xf32, #tpu.memory_space<vmem>>, vector<8x16xf32>,
    return
  }
}

</mosaic_0001>

<llo_original>
// kernel: tpu_custom_call.1
$region0: #{tpu_custom_call.1}
  #allocation0 [shape = 'u32[]', space=smem, size = 0x4, offset = 0x4, fixed_abs, tag = 'smem constant byte address 0x4 - core index']
  #allocation1 [shape = 'u32[144,128]{1,0:T(1,128)}', space=vmem, size = 0x12000, scoped, tag = 'internal scratch']
  #allocation2 [shape = 'f32[8,64]{1,0:T(8,128)}', space=vmem, size = 0x1000, scoped, tag = 'scratch operand']
  #allocation3 [shape = 'f32[8,64]{1,0:T(8,128)}', space=vmem, size = 0x1000, scoped, tag = 'scratch operand']
  %s0 = inlined_call_operand.vmem [shape: bf16[8,16], index: 0, kind: input, shape index: {}]
  %s1 = inlined_call_operand.vmem [shape: bf16[8,4], index: 1, kind: input, shape index: {}]
  %s2 = inlined_call_operand.vmem [shape: f32[8,8], index: 2, kind: input, shape index: {}]
  %s3 = inlined_call_operand.vmem [shape: bf16[28,256], index: 3, kind: input, shape index: {}]
  %s4 = inlined_call_operand.hbm [shape: bf16[256,256], index: 4, kind: input, shape index: {}]
  %s5 = inlined_call_operand.vmem [shape: f32[3,256], index: 5, kind: input, shape index: {}]
  %s6 = inlined_call_operand.vmem [shape: bf16[64,32], index: 6, kind: input, shape index: {}]
  %s7 = inlined_call_operand.vmem [shape: f32[1,32], index: 7, kind: input, shape index: {}]
  %s8 = inlined_call_operand.hbm [shape: f32[8,16], index: 8, kind: output, shape index: {0}]
  %s9 = inlined_call_operand.hbm [shape: f32[8,16], index: 9, kind: output, shape index: {1}]
  %10 = xla_tuple %s8, %s9
  %s11 = sld [smem:[#allocation0]]
  $region54: #{tpu_custom_call.1} parent=0
    _
  %s13 = ssub.s32 1, %s11
  %s14 = scalar_select 0, %s13, %s11
  $region1: #{tpu_custom_call.1} parent=0
    #allocation4 [shape = 'u8[131072]{0}', space=vmem, size = 0x20000, scoped, tag = 'input window, operand 4, single buffered']
    #allocation5 [shape = 's32[1]{0}', space=sflag, size = 0x4, scoped, tag = 'scoped memory for tpu_custom_call.1']
    #allocation6 [shape = 's32[1]{0}', space=sflag, size = 0x4, scoped, tag = 'scoped memory for tpu_custom_call.1']
    #allocation7 [shape = 'u8[4096]{0}', space=vmem, size = 0x1000, scoped, tag = 'output window, operand 0, single buffered']
    #allocation8 [shape = 'u8[4096]{0}', space=vmem, size = 0x1000, scoped, tag = 'output window, operand 1, single buffered']
    #allocation9 [shape = 's32[1]{0}', space=sflag, size = 0x4, scoped, tag = 'scoped memory for tpu_custom_call.1']
    %15 = vsyncpa [#allocation5], 0
    %16 = vsyncpa [#allocation6], 0
    %17 = vsyncpa [#allocation9], 0
    // Predicated region
    $region2: #{tpu_custom_call.1} parent=1 // pred_check
      _
    $region3: #{tpu_custom_call.1} parent=1 // pred_check_branch
      %19 = sbr.rel (0) target = $region5
    $region4: #{tpu_custom_call.1} parent=1 // pred_region
      _
    $region5: #{tpu_custom_call.1} parent=1 // pred_fallthru
      _
    // Predicated region
    $region6: #{tpu_custom_call.1} parent=1 // pred_check
      _
    $region7: #{tpu_custom_call.1} parent=1 // pred_check_branch
      %21 = sbr.rel (0) target = $region9
    $region8: #{tpu_custom_call.1} parent=1 // pred_region
      _
    $region9: #{tpu_custom_call.1} parent=1 // pred_fallthru
      _
    // Predicated region
    $region10: #{tpu_custom_call.1} parent=1 // pred_check
      _
    $region11: #{tpu_custom_call.1} parent=1 // pred_check_branch
      %23 = sbr.rel (0) target = $region13
    $region12: #{tpu_custom_call.1} parent=1 // pred_region
      _
    $region13: #{tpu_custom_call.1} parent=1 // pred_fallthru
      _
    // Predicated region
    $region14: #{tpu_custom_call.1} parent=1 // pred_check
      _
    $region15: #{tpu_custom_call.1} parent=1 // pred_check_branch
      %25 = sbr.rel (0) target = $region17
    $region16: #{tpu_custom_call.1} parent=1 // pred_region
      _
    $region17: #{tpu_custom_call.1} parent=1 // pred_fallthru
      _
    // Predicated region
    $region18: #{tpu_custom_call.1} parent=1 // pred_check
      _
    $region19: #{tpu_custom_call.1} parent=1 // pred_check_branch
      %27 = sbr.rel (0) target = $region21
    $region20: #{tpu_custom_call.1} parent=1 // pred_region
      %s29 = ssub.s32 4096, 4096
      %30 = vsyncadd [#allocation5], %s29
      %s31 = sshll.u32 [#allocation4], 4
      %s32 = int_to_ptr.vmem [resolvable:$true] %s31
      %37 = dma.hbm_to_vmem [thread:$0]  %s4, 4096, %s32, [#allocation5], 128, 128, 8
    $region21: #{tpu_custom_call.1} parent=1 // pred_fallthru
      _
    // Predicated region
    $region22: #{tpu_custom_call.1} parent=1 // pred_check
      _
    $region23: #{tpu_custom_call.1} parent=1 // pred_check_branch
      %39 = sbr.rel (0) target = $region25
    $region24: #{tpu_custom_call.1} parent=1 // pred_region
      _
    $region25: #{tpu_custom_call.1} parent=1 // pred_fallthru
      _
    // Predicated region
    $region26: #{tpu_custom_call.1} parent=1 // pred_check
      _
    $region27: #{tpu_custom_call.1} parent=1 // pred_check_branch
      %41 = sbr.rel (0) target = $region29
    $region28: #{tpu_custom_call.1} parent=1 // pred_region
      _
    $region29: #{tpu_custom_call.1} parent=1 // pred_fallthru
      _
    // Predicated region
    $region30: #{tpu_custom_call.1} parent=1 // pred_check
      _
    $region31: #{tpu_custom_call.1} parent=1 // pred_check_branch
      %43 = sbr.rel (0) target = $region33
    $region32: #{tpu_custom_call.1} parent=1 // pred_region
      _
    $region33: #{tpu_custom_call.1} parent=1 // pred_fallthru
      _
    // Predicated region
    $region34: #{tpu_custom_call.1} parent=1 // pred_check
      _
    $region35: #{tpu_custom_call.1} parent=1 // pred_check_branch
      %45 = sbr.rel (0) target = $region37
    $region36: #{tpu_custom_call.1} parent=1 // pred_region
      %46 = dma.done [#allocation5], 4096
    $region37: #{tpu_custom_call.1} parent=1 // pred_fallthru
      _
    %v48 = vld [vmem:[#allocation4] sm:$0xff]
    %v49 = vld [vmem:[#allocation4 + $0x8] sm:$0xff]
    %v50 = vld [vmem:[#allocation4 + $0x10] sm:$0xff]
    %v51 = vld [vmem:[#allocation4 + $0x18] sm:$0xff]
    %v52 = vld [vmem:[#allocation4 + $0x20] sm:$0xff]
    %v53 = vld [vmem:[#allocation4 + $0x28] sm:$0xff]
    %v54 = vld [vmem:[#allocation4 + $0x30] sm:$0xff]
    %v55 = vld [vmem:[#allocation4 + $0x38] sm:$0xff]
    %v56 = vld [vmem:[#allocation4 + $0x40] sm:$0xff]
    %v57 = vld [vmem:[#allocation4 + $0x48] sm:$0xff]
    %v58 = vld [vmem:[#allocation4 + $0x50] sm:$0xff]
    %v59 = vld [vmem:[#allocation4 + $0x58] sm:$0xff]
    %v60 = vld [vmem:[#allocation4 + $0x60] sm:$0xff]
    %v61 = vld [vmem:[#allocation4 + $0x68] sm:$0xff]
    %v62 = vld [vmem:[#allocation4 + $0x70] sm:$0xff]
    %v63 = vld [vmem:[#allocation4 + $0x78] sm:$0xff]
    %v64 = vld [vmem:[#allocation4 + $0x80] sm:$0xff]
    %v65 = vld [vmem:[#allocation4 + $0x88] sm:$0xff]
    %v66 = vld [vmem:[#allocation4 + $0x90] sm:$0xff]
    %v67 = vld [vmem:[#allocation4 + $0x98] sm:$0xff]
    %v68 = vld [vmem:[#allocation4 + $0xa0] sm:$0xff]
    %v69 = vld [vmem:[#allocation4 + $0xa8] sm:$0xff]
    %v70 = vld [vmem:[#allocation4 + $0xb0] sm:$0xff]
    %v71 = vld [vmem:[#allocation4 + $0xb8] sm:$0xff]
    %v72 = vld [vmem:[#allocation4 + $0xc0] sm:$0xff]
    %v73 = vld [vmem:[#allocation4 + $0xc8] sm:$0xff]
    %v74 = vld [vmem:[#allocation4 + $0xd0] sm:$0xff]
    %v75 = vld [vmem:[#allocation4 + $0xd8] sm:$0xff]
    %v76 = vld [vmem:[#allocation4 + $0xe0] sm:$0xff]
    %v77 = vld [vmem:[#allocation4 + $0xe8] sm:$0xff]
    %v78 = vld [vmem:[#allocation4 + $0xf0] sm:$0xff]
    %v79 = vld [vmem:[#allocation4 + $0xf8] sm:$0xff]
    %v80 = vld [vmem:[%s3] sm:$0xff]
    %v81 = vld [vmem:[%s3 + $0x8] sm:$0xff]
    %v82 = vld [vmem:[%s3 + $0x10] sm:$0xff]
    %v83 = vld [vmem:[%s3 + $0x18] sm:$0x33]
    %v84 = vld [vmem:[%s5] sm:$0x77]
    %v85 = vld [vmem:[%s0] sm:$0xf]
    %v87 = vlaneseq
    %v88 = vshrl.u32 %v87, 7
    %v89 = vsub.s32 0, %v88
    %v90 = vrot.slane %v84, %v89
    %v91 = vlaneseq
    %v92 = vshrl.u32 %v91, 7
    %v93 = vsub.s32 4, %v92
    %v94 = vrot.slane %v84, %v93
    %v97 = vlaneseq
    %v98 = vshrl.u32 %v97, 7
    %v99 = vsub.s32 0, %v98
    %v100 = vrot.slane %v90, %v99
    %v101 = vlaneseq
    %v102 = vshrl.u32 %v101, 7
    %v103 = vsub.s32 0, %v102
    %v104 = vrot.slane %v94, %v103
    %v107 = vunpack.c.l.b16 %v80
    %v108 = vunpack.c.h.b16 %v80
    %v109 = vunpack.c.l.b16 %v81
    %v110 = vunpack.c.h.b16 %v81
    %v111 = vpack.c.b16 %v109, %v107
    %v112 = vpack.c.b16 %v110, %v108
    %vm115 = vcmask 130048
    %v117 = vsel %vm115, %v85, 0
    %119 = vmatprep.subr.bf16.mxu0 %v112
    %120 = vmatpush1.bf16.msra.mxu0 %v111
    %121 = vmatprep.subr.bf16.mxu0 0
    %122 = vmatpush1.bf16.msra.mxu0 0
    %123 = vmatprep.subr.bf16.mxu0 0
    %124 = vmatpush1.bf16.msra.mxu0 0
    %125 = vmatprep.subr.bf16.mxu0 0
    %126 = vmatpush1.bf16.msra.mxu0 0
    %127 = vmatprep.subr.bf16.mxu0 0
    %128 = vmatpush1.bf16.msra.mxu0 0
    %129 = vmatprep.subr.bf16.mxu0 0
    %130 = vmatpush1.bf16.msra.mxu0 0
    %131 = vmatprep.subr.bf16.mxu0 0
    %132 = vmatpush1.bf16.msra.mxu0 0
    %133 = vmatprep.subr.bf16.mxu0 0
    %134 = vmatpush1.bf16.msra.mxu0 0
    %135 = vmatprep.subr.bf16.mxu0 0
    %136 = vmatpush1.bf16.msra.mxu0 0
    %137 = vmatprep.subr.bf16.mxu0 0
    %138 = vmatpush1.bf16.msra.mxu0 0
    %139 = vmatprep.subr.bf16.mxu0 0
    %140 = vmatpush1.bf16.msra.mxu0 0
    %141 = vmatprep.subr.bf16.mxu0 0
    %142 = vmatpush1.bf16.msra.mxu0 0
    %143 = vmatprep.subr.bf16.mxu0 0
    %144 = vmatpush1.bf16.msra.mxu0 0
    %145 = vmatprep.subr.bf16.mxu0 0
    %146 = vmatpush1.bf16.msra.mxu0 0
    %147 = vmatprep.subr.bf16.mxu0 0
    %148 = vmatpush1.bf16.msra.mxu0 0
    %149 = vmatprep.subr.bf16.mxu0 0
    %150 = vmatpush1.bf16.msra.mxu0 0
    %151 = vmatprep.mubr.bf16.mxu0 0
    %152 = vmatmul.mubr.bf16.gmra.mrb[0].mxu0 %v117
    %v153 = vpop.f32.mrb[0].mxu0
    %v154 = vadd.f32 %v100, %v153
    %v155 = vpop.f32.mrb[0].mxu0
    %v156 = vadd.f32 %v104, %v155
    %v157 = vpop.f32.mrb[0].mxu0
    %v158 = vpop.f32.mrb[0].mxu0
    %159 = vdwg.mxu0
    %v168 = vunpack.c.l.b16 %v48
    %v169 = vunpack.c.h.b16 %v48
    %v170 = vunpack.c.l.b16 %v49
    %v171 = vunpack.c.h.b16 %v49
    %v172 = vunpack.c.l.b16 %v50
    %v173 = vunpack.c.h.b16 %v50
    %v174 = vunpack.c.l.b16 %v51
    %v175 = vunpack.c.h.b16 %v51
    %v176 = vunpack.c.l.b16 %v52
    %v177 = vunpack.c.h.b16 %v52
    %v178 = vunpack.c.l.b16 %v53
    %v179 = vunpack.c.h.b16 %v53
    %v180 = vunpack.c.l.b16 %v54
    %v181 = vunpack.c.h.b16 %v54
    %v182 = vunpack.c.l.b16 %v55
    %v183 = vunpack.c.h.b16 %v55
    %v184 = vpack.c.b16 %v170, %v168
    %v185 = vpack.c.b16 %v171, %v169
    %v186 = vpack.c.b16 %v174, %v172
    %v187 = vpack.c.b16 %v175, %v173
    %v188 = vpack.c.b16 %v178, %v176
    %v189 = vpack.c.b16 %v179, %v177
    %v190 = vpack.c.b16 %v182, %v180
    %v191 = vpack.c.b16 %v183, %v181
    %vm200 = vcmask 523264
    %v202 = vsel %vm200, 0, 0
    %204 = vmatprep.subr.bf16.mxu0 %v185
    %205 = vmatpush1.bf16.msra.mxu0 %v184
    %206 = vmatprep.subr.bf16.mxu0 %v187
    %207 = vmatpush1.bf16.msra.mxu0 %v186
    %208 = vmatprep.subr.bf16.mxu0 %v189
    %209 = vmatpush1.bf16.msra.mxu0 %v188
    %210 = vmatprep.subr.bf16.mxu0 %v191
    %211 = vmatpush1.bf16.msra.mxu0 %v190
    %212 = vmatprep.subr.bf16.mxu0 0
    %213 = vmatpush1.bf16.msra.mxu0 0
    %214 = vmatprep.subr.bf16.mxu0 0
    %215 = vmatpush1.bf16.msra.mxu0 0
    %216 = vmatprep.subr.bf16.mxu0 0
    %217 = vmatpush1.bf16.msra.mxu0 0
    %218 = vmatprep.subr.bf16.mxu0 0
    %219 = vmatpush1.bf16.msra.mxu0 0
    %220 = vmatprep.subr.bf16.mxu0 0
    %221 = vmatpush1.bf16.msra.mxu0 0
    %222 = vmatprep.subr.bf16.mxu0 0
    %223 = vmatpush1.bf16.msra.mxu0 0
    %224 = vmatprep.subr.bf16.mxu0 0
    %225 = vmatpush1.bf16.msra.mxu0 0
    %226 = vmatprep.subr.bf16.mxu0 0
    %227 = vmatpush1.bf16.msra.mxu0 0
    %228 = vmatprep.subr.bf16.mxu0 0
    %229 = vmatpush1.bf16.msra.mxu0 0
    %230 = vmatprep.subr.bf16.mxu0 0
    %231 = vmatpush1.bf16.msra.mxu0 0
    %232 = vmatprep.subr.bf16.mxu0 0
    %233 = vmatpush1.bf16.msra.mxu0 0
    %234 = vmatprep.subr.bf16.mxu0 0
    %235 = vmatpush1.bf16.msra.mxu0 0
    %236 = vmatprep.mubr.bf16.mxu0 0
    %237 = vmatmul.mubr.bf16.gmra.mrb[0].mxu0 %v202
    %v238 = vpop.f32.mrb[0].mxu0
    %v239 = vadd.f32 0.0, %v238
    %v240 = vpop.f32.mrb[0].mxu0
    %v241 = vadd.f32 0.0, %v240
    %v242 = vpop.f32.mrb[0].mxu0
    %v243 = vpop.f32.mrb[0].mxu0
    %244 = vdwg.mxu0
    %v245 = vadd.f32 %v154, %v239
    %v246 = vadd.f32 %v156, %v241
    %v247 = vmul.f32 %v245, 0.5
    %v248 = vtanh.pop %v247
    %v249 = vmul.f32 %v248, 0.5
    %v250 = vadd.f32 %v249, 0.5
    %v251 = vtanh.pop %v246
    %v252 = vmul.f32 %v246, 0.5
    %v253 = vtanh.pop %v252
    %v254 = vmul.f32 %v253, 0.5
    %v255 = vadd.f32 %v254, 0.5
    %v256 = vmul.f32 %v250, 0.0
    %v257 = vmul.f32 %v250, %v251
    %259 = vrot.lane.b32.xlu0 %v257, 64
    %v260 = vpop.permute.xlu0 %259
    %v262 = vadd.f32 %v256, %v260
    %v263 = vtanh.pop %v262
    %v264 = vmul.f32 %v255, %v263
    %266 = vrot.lane.b32.xlu0 %v264, 64
    %v267 = vpop.permute.xlu0 %266
    %vm269 = vcmask 516096
    %270 = vst.msk [vmem:[#allocation2] sm:$0x1] %vm269, %v267
    %v271 = vpack.c.bf16 %v264, %v264
    %273 = vrot.lane.b32.xlu0 %v271, 64
    %v274 = vpop.permute.xlu0 %273
    %v276 = vsel %vm200, %v274, 0
    %278 = vmatprep.subr.bf16.mxu0 %v185
    %279 = vmatpush1.bf16.msra.mxu0 %v184
    %280 = vmatprep.subr.bf16.mxu0 %v187
    %281 = vmatpush1.bf16.msra.mxu0 %v186
    %282 = vmatprep.subr.bf16.mxu0 %v189
    %283 = vmatpush1.bf16.msra.mxu0 %v188
    %284 = vmatprep.subr.bf16.mxu0 %v191
    %285 = vmatpush1.bf16.msra.mxu0 %v190
    %286 = vmatprep.subr.bf16.mxu0 0
    %287 = vmatpush1.bf16.msra.mxu0 0
    %288 = vmatprep.subr.bf16.mxu0 0
    %289 = vmatpush1.bf16.msra.mxu0 0
    %290 = vmatprep.subr.bf16.mxu0 0
    %291 = vmatpush1.bf16.msra.mxu0 0
    %292 = vmatprep.subr.bf16.mxu0 0
    %293 = vmatpush1.bf16.msra.mxu0 0
    %294 = vmatprep.subr.bf16.mxu0 0
    %295 = vmatpush1.bf16.msra.mxu0 0
    %296 = vmatprep.subr.bf16.mxu0 0
    %297 = vmatpush1.bf16.msra.mxu0 0
    %298 = vmatprep.subr.bf16.mxu0 0
    %299 = vmatpush1.bf16.msra.mxu0 0
    %300 = vmatprep.subr.bf16.mxu0 0
    %301 = vmatpush1.bf16.msra.mxu0 0
    %302 = vmatprep.subr.bf16.mxu0 0
    %303 = vmatpush1.bf16.msra.mxu0 0
    %304 = vmatprep.subr.bf16.mxu0 0
    %305 = vmatpush1.bf16.msra.mxu0 0
    %306 = vmatprep.subr.bf16.mxu0 0
    %307 = vmatpush1.bf16.msra.mxu0 0
    %308 = vmatprep.subr.bf16.mxu0 0
    %309 = vmatpush1.bf16.msra.mxu0 0
    %310 = vmatprep.mubr.bf16.mxu0 0
    %311 = vmatmul.mubr.bf16.gmra.mrb[0].mxu0 %v276
    %v312 = vpop.f32.mrb[0].mxu0
    %v313 = vadd.f32 0.0, %v312
    %v314 = vpop.f32.mrb[0].mxu0
    %v315 = vadd.f32 0.0, %v314
    %v316 = vpop.f32.mrb[0].mxu0
    %v317 = vpop.f32.mrb[0].mxu0
    %318 = vdwg.mxu0
    %v321 = vrot.slane %v313, 7
    %v322 = vrot.slane %v315, 7
    %v325 = vadd.f32 %v154, %v321
    %v326 = vadd.f32 %v156, %v322
    %v327 = vmul.f32 %v325, 0.5
    %v328 = vtanh.pop %v327
    %v329 = vmul.f32 %v328, 0.5
    %v330 = vadd.f32 %v329, 0.5
    %v331 = vtanh.pop %v326
    %v332 = vmul.f32 %v326, 0.5
    %v333 = vtanh.pop %v332
    %v334 = vmul.f32 %v333, 0.5
    %v335 = vadd.f32 %v334, 0.5
    %v337 = vrot.slane %v262, 7
    %v339 = vmul.f32 %v330, %v337
    %v340 = vmul.f32 %v330, %v331
    %342 = vrot.lane.b32.xlu0 %v340, 64
    %v343 = vpop.permute.xlu0 %342
    %v345 = vadd.f32 %v339, %v343
    %v346 = vtanh.pop %v345
    %v347 = vmul.f32 %v335, %v346
    %349 = vrot.lane.b32.xlu0 %v347, 64
    %v350 = vpop.permute.xlu0 %349
    %vm352 = vcmask 517121
    %353 = vst.msk [vmem:[#allocation2] sm:$0x2] %vm352, %v350
    %v354 = vpack.c.bf16 %v347, %v347
    %v356 = vshrl.u32 %v354, 16
    %358 = vrot.lane.b32.xlu0 %v356, 64
    %v359 = vpop.permute.xlu0 %358
    %v361 = vsel %vm200, %v359, 0
    %363 = vmatprep.subr.bf16.mxu0 %v185
    %364 = vmatpush1.bf16.msra.mxu0 %v184
    %365 = vmatprep.subr.bf16.mxu0 %v187
    %366 = vmatpush1.bf16.msra.mxu0 %v186
    %367 = vmatprep.subr.bf16.mxu0 %v189
    %368 = vmatpush1.bf16.msra.mxu0 %v188
    %369 = vmatprep.subr.bf16.mxu0 %v191
    %370 = vmatpush1.bf16.msra.mxu0 %v190
    %371 = vmatprep.subr.bf16.mxu0 0
    %372 = vmatpush1.bf16.msra.mxu0 0
    %373 = vmatprep.subr.bf16.mxu0 0
    %374 = vmatpush1.bf16.msra.mxu0 0
    %375 = vmatprep.subr.bf16.mxu0 0
    %376 = vmatpush1.bf16.msra.mxu0 0
    %377 = vmatprep.subr.bf16.mxu0 0
    %378 = vmatpush1.bf16.msra.mxu0 0
    %379 = vmatprep.subr.bf16.mxu0 0
    %380 = vmatpush1.bf16.msra.mxu0 0
    %381 = vmatprep.subr.bf16.mxu0 0
    %382 = vmatpush1.bf16.msra.mxu0 0
    %383 = vmatprep.subr.bf16.mxu0 0
    %384 = vmatpush1.bf16.msra.mxu0 0
    %385 = vmatprep.subr.bf16.mxu0 0
    %386 = vmatpush1.bf16.msra.mxu0 0
    %387 = vmatprep.subr.bf16.mxu0 0
    %388 = vmatpush1.bf16.msra.mxu0 0
    %389 = vmatprep.subr.bf16.mxu0 0
    %390 = vmatpush1.bf16.msra.mxu0 0
    %391 = vmatprep.subr.bf16.mxu0 0
    %392 = vmatpush1.bf16.msra.mxu0 0
    %393 = vmatprep.subr.bf16.mxu0 0
    %394 = vmatpush1.bf16.msra.mxu0 0
    %395 = vmatprep.mubr.bf16.mxu0 0
    %396 = vmatmul.mubr.bf16.gmra.mrb[0].mxu0 %v361
    %v397 = vpop.f32.mrb[0].mxu0
    %v398 = vadd.f32 0.0, %v397
    %v399 = vpop.f32.mrb[0].mxu0
    %v400 = vadd.f32 0.0, %v399
    %v401 = vpop.f32.mrb[0].mxu0
    %v402 = vpop.f32.mrb[0].mxu0
    %403 = vdwg.mxu0
    %v406 = vrot.slane %v398, 6
    %v407 = vrot.slane %v400, 6
    %v410 = vadd.f32 %v154, %v406
    %v411 = vadd.f32 %v156, %v407
    %v412 = vmul.f32 %v410, 0.5
    %v413 = vtanh.pop %v412
    %v414 = vmul.f32 %v413, 0.5
    %v415 = vadd.f32 %v414, 0.5
    %v416 = vtanh.pop %v411
    %v417 = vmul.f32 %v411, 0.5
    %v418 = vtanh.pop %v417
    %v419 = vmul.f32 %v418, 0.5
    %v420 = vadd.f32 %v419, 0.5
    %v422 = vrot.slane %v345, 7
    %v424 = vmul.f32 %v415, %v422
    %v425 = vmul.f32 %v415, %v416
    %427 = vrot.lane.b32.xlu0 %v425, 64
    %v428 = vpop.permute.xlu0 %427
    %v430 = vadd.f32 %v424, %v428
    %v431 = vtanh.pop %v430
    %v432 = vmul.f32 %v420, %v431
    %434 = vrot.lane.b32.xlu0 %v432, 64
    %v435 = vpop.permute.xlu0 %434
    %vm437 = vcmask 518146
    %438 = vst.msk [vmem:[#allocation2] sm:$0x4] %vm437, %v435
    %v439 = vpack.c.bf16 %v432, %v432
    %v441 = vrot.slane %v439, 1
    %442 = vrot.lane.b32.xlu0 %v441, 64
    %v443 = vpop.permute.xlu0 %442
    %v445 = vsel %vm200, %v443, 0
    %447 = vmatprep.subr.bf16.mxu0 %v185
    %448 = vmatpush1.bf16.msra.mxu0 %v184
    %449 = vmatprep.subr.bf16.mxu0 %v187
    %450 = vmatpush1.bf16.msra.mxu0 %v186
    %451 = vmatprep.subr.bf16.mxu0 %v189
    %452 = vmatpush1.bf16.msra.mxu0 %v188
    %453 = vmatprep.subr.bf16.mxu0 %v191
    %454 = vmatpush1.bf16.msra.mxu0 %v190
    %455 = vmatprep.subr.bf16.mxu0 0
    %456 = vmatpush1.bf16.msra.mxu0 0
    %457 = vmatprep.subr.bf16.mxu0 0
    %458 = vmatpush1.bf16.msra.mxu0 0
    %459 = vmatprep.subr.bf16.mxu0 0
    %460 = vmatpush1.bf16.msra.mxu0 0
    %461 = vmatprep.subr.bf16.mxu0 0
    %462 = vmatpush1.bf16.msra.mxu0 0
    %463 = vmatprep.subr.bf16.mxu0 0
    %464 = vmatpush1.bf16.msra.mxu0 0
    %465 = vmatprep.subr.bf16.mxu0 0
    %466 = vmatpush1.bf16.msra.mxu0 0
    %467 = vmatprep.subr.bf16.mxu0 0
    %468 = vmatpush1.bf16.msra.mxu0 0
    %469 = vmatprep.subr.bf16.mxu0 0
    %470 = vmatpush1.bf16.msra.mxu0 0
    %471 = vmatprep.subr.bf16.mxu0 0
    %472 = vmatpush1.bf16.msra.mxu0 0
    %473 = vmatprep.subr.bf16.mxu0 0
    %474 = vmatpush1.bf16.msra.mxu0 0
    %475 = vmatprep.subr.bf16.mxu0 0
    %476 = vmatpush1.bf16.msra.mxu0 0
    %477 = vmatprep.subr.bf16.mxu0 0
    %478 = vmatpush1.bf16.msra.mxu0 0
    %479 = vmatprep.mubr.bf16.mxu0 0
    %480 = vmatmul.mubr.bf16.gmra.mrb[0].mxu0 %v445
    %v481 = vpop.f32.mrb[0].mxu0
    %v482 = vadd.f32 0.0, %v481
    %v483 = vpop.f32.mrb[0].mxu0
    %v484 = vadd.f32 0.0, %v483
    %v485 = vpop.f32.mrb[0].mxu0
    %v486 = vpop.f32.mrb[0].mxu0
    %487 = vdwg.mxu0
    %v490 = vrot.slane %v482, 5
    %v491 = vrot.slane %v484, 5
    %v494 = vadd.f32 %v154, %v490
    %v495 = vadd.f32 %v156, %v491
    %v496 = vmul.f32 %v494, 0.5
    %v497 = vtanh.pop %v496
    %v498 = vmul.f32 %v497, 0.5
    %v499 = vadd.f32 %v498, 0.5
    %v500 = vtanh.pop %v495
    %v501 = vmul.f32 %v495, 0.5
    %v502 = vtanh.pop %v501
    %v503 = vmul.f32 %v502, 0.5
    %v504 = vadd.f32 %v503, 0.5
    %v506 = vrot.slane %v430, 7
    %v508 = vmul.f32 %v499, %v506
    %v509 = vmul.f32 %v499, %v500
    %511 = vrot.lane.b32.xlu0 %v509, 64
    %v512 = vpop.permute.xlu0 %511
    %v514 = vadd.f32 %v508, %v512
    %v515 = vtanh.pop %v514
    %v516 = vmul.f32 %v504, %v515
    %518 = vrot.lane.b32.xlu0 %v516, 64
    %v519 = vpop.permute.xlu0 %518
    %vm521 = vcmask 519171
    %522 = vst.msk [vmem:[#allocation2] sm:$0x8] %vm521, %v519
    %v523 = vpack.c.bf16 %v516, %v516
    %v525 = vshrl.u32 %v523, 16
    %v527 = vrot.slane %v525, 1
    %528 = vrot.lane.b32.xlu0 %v527, 64
    %v529 = vpop.permute.xlu0 %528
    %v531 = vsel %vm200, %v529, 0
    %533 = vmatprep.subr.bf16.mxu0 %v185
    %534 = vmatpush1.bf16.msra.mxu0 %v184
    %535 = vmatprep.subr.bf16.mxu0 %v187
    %536 = vmatpush1.bf16.msra.mxu0 %v186
    %537 = vmatprep.subr.bf16.mxu0 %v189
    %538 = vmatpush1.bf16.msra.mxu0 %v188
    %539 = vmatprep.subr.bf16.mxu0 %v191
    %540 = vmatpush1.bf16.msra.mxu0 %v190
    %541 = vmatprep.subr.bf16.mxu0 0
    %542 = vmatpush1.bf16.msra.mxu0 0
    %543 = vmatprep.subr.bf16.mxu0 0
    %544 = vmatpush1.bf16.msra.mxu0 0
    %545 = vmatprep.subr.bf16.mxu0 0
    %546 = vmatpush1.bf16.msra.mxu0 0
    %547 = vmatprep.subr.bf16.mxu0 0
    %548 = vmatpush1.bf16.msra.mxu0 0
    %549 = vmatprep.subr.bf16.mxu0 0
    %550 = vmatpush1.bf16.msra.mxu0 0
    %551 = vmatprep.subr.bf16.mxu0 0
    %552 = vmatpush1.bf16.msra.mxu0 0
    %553 = vmatprep.subr.bf16.mxu0 0
    %554 = vmatpush1.bf16.msra.mxu0 0
    %555 = vmatprep.subr.bf16.mxu0 0
    %556 = vmatpush1.bf16.msra.mxu0 0
    %557 = vmatprep.subr.bf16.mxu0 0
    %558 = vmatpush1.bf16.msra.mxu0 0
    %559 = vmatprep.subr.bf16.mxu0 0
    %560 = vmatpush1.bf16.msra.mxu0 0
    %561 = vmatprep.subr.bf16.mxu0 0
    %562 = vmatpush1.bf16.msra.mxu0 0
    %563 = vmatprep.subr.bf16.mxu0 0
    %564 = vmatpush1.bf16.msra.mxu0 0
    %565 = vmatprep.mubr.bf16.mxu0 0
    %566 = vmatmul.mubr.bf16.gmra.mrb[0].mxu0 %v531
    %v567 = vpop.f32.mrb[0].mxu0
    %v568 = vadd.f32 0.0, %v567
    %v569 = vpop.f32.mrb[0].mxu0
    %v570 = vadd.f32 0.0, %v569
    %v571 = vpop.f32.mrb[0].mxu0
    %v572 = vpop.f32.mrb[0].mxu0
    %573 = vdwg.mxu0
    %v576 = vrot.slane %v568, 4
    %v577 = vrot.slane %v570, 4
    %v580 = vadd.f32 %v154, %v576
    %v581 = vadd.f32 %v156, %v577
    %v582 = vmul.f32 %v580, 0.5
    %v583 = vtanh.pop %v582
    %v584 = vmul.f32 %v583, 0.5
    %v585 = vadd.f32 %v584, 0.5
    %v586 = vtanh.pop %v581
    %v587 = vmul.f32 %v581, 0.5
    %v588 = vtanh.pop %v587
    %v589 = vmul.f32 %v588, 0.5
    %v590 = vadd.f32 %v589, 0.5
    %v592 = vrot.slane %v514, 7
    %v594 = vmul.f32 %v585, %v592
    %v595 = vmul.f32 %v585, %v586
    %597 = vrot.lane.b32.xlu0 %v595, 64
    %v598 = vpop.permute.xlu0 %597
    %v600 = vadd.f32 %v594, %v598
    %v601 = vtanh.pop %v600
    %v602 = vmul.f32 %v590, %v601
    %604 = vrot.lane.b32.xlu0 %v602, 64
    %v605 = vpop.permute.xlu0 %604
    %vm607 = vcmask 520196
    %608 = vst.msk [vmem:[#allocation2] sm:$0x10] %vm607, %v605
    %v609 = vpack.c.bf16 %v602, %v602
    %v611 = vrot.slane %v609, 2
    %612 = vrot.lane.b32.xlu0 %v611, 64
    %v613 = vpop.permute.xlu0 %612
    %v615 = vsel %vm200, %v613, 0
    %617 = vmatprep.subr.bf16.mxu0 %v185
    %618 = vmatpush1.bf16.msra.mxu0 %v184
    %619 = vmatprep.subr.bf16.mxu0 %v187
    %620 = vmatpush1.bf16.msra.mxu0 %v186
    %621 = vmatprep.subr.bf16.mxu0 %v189
    %622 = vmatpush1.bf16.msra.mxu0 %v188
    %623 = vmatprep.subr.bf16.mxu0 %v191
    %624 = vmatpush1.bf16.msra.mxu0 %v190
    %625 = vmatprep.subr.bf16.mxu0 0
    %626 = vmatpush1.bf16.msra.mxu0 0
    %627 = vmatprep.subr.bf16.mxu0 0
    %628 = vmatpush1.bf16.msra.mxu0 0
    %629 = vmatprep.subr.bf16.mxu0 0
    %630 = vmatpush1.bf16.msra.mxu0 0
    %631 = vmatprep.subr.bf16.mxu0 0
    %632 = vmatpush1.bf16.msra.mxu0 0
    %633 = vmatprep.subr.bf16.mxu0 0
    %634 = vmatpush1.bf16.msra.mxu0 0
    %635 = vmatprep.subr.bf16.mxu0 0
    %636 = vmatpush1.bf16.msra.mxu0 0
    %637 = vmatprep.subr.bf16.mxu0 0
    %638 = vmatpush1.bf16.msra.mxu0 0
    %639 = vmatprep.subr.bf16.mxu0 0
    %640 = vmatpush1.bf16.msra.mxu0 0
    %641 = vmatprep.subr.bf16.mxu0 0
    %642 = vmatpush1.bf16.msra.mxu0 0
    %643 = vmatprep.subr.bf16.mxu0 0
    %644 = vmatpush1.bf16.msra.mxu0 0
    %645 = vmatprep.subr.bf16.mxu0 0
    %646 = vmatpush1.bf16.msra.mxu0 0
    %647 = vmatprep.subr.bf16.mxu0 0
    %648 = vmatpush1.bf16.msra.mxu0 0
    %649 = vmatprep.mubr.bf16.mxu0 0
    %650 = vmatmul.mubr.bf16.gmra.mrb[0].mxu0 %v615
    %v651 = vpop.f32.mrb[0].mxu0
    %v652 = vadd.f32 0.0, %v651
    %v653 = vpop.f32.mrb[0].mxu0
    %v654 = vadd.f32 0.0, %v653
    %v655 = vpop.f32.mrb[0].mxu0
    %v656 = vpop.f32.mrb[0].mxu0
    %657 = vdwg.mxu0
    %v660 = vrot.slane %v652, 3
    %v661 = vrot.slane %v654, 3
    %v664 = vadd.f32 %v154, %v660
    %v665 = vadd.f32 %v156, %v661
    %v666 = vmul.f32 %v664, 0.5
    %v667 = vtanh.pop %v666
    %v668 = vmul.f32 %v667, 0.5
    %v669 = vadd.f32 %v668, 0.5
    %v670 = vtanh.pop %v665
    %v671 = vmul.f32 %v665, 0.5
    %v672 = vtanh.pop %v671
    %v673 = vmul.f32 %v672, 0.5
    %v674 = vadd.f32 %v673, 0.5
    %v676 = vrot.slane %v600, 7
    %v678 = vmul.f32 %v669, %v676
    %v679 = vmul.f32 %v669, %v670
    %681 = vrot.lane.b32.xlu0 %v679, 64
    %v682 = vpop.permute.xlu0 %681
    %v684 = vadd.f32 %v678, %v682
    %v685 = vtanh.pop %v684
    %v686 = vmul.f32 %v674, %v685
    %688 = vrot.lane.b32.xlu0 %v686, 64
    %v689 = vpop.permute.xlu0 %688
    %vm691 = vcmask 521221
    %692 = vst.msk [vmem:[#allocation2] sm:$0x20] %vm691, %v689
    %v693 = vpack.c.bf16 %v686, %v686
    %v695 = vshrl.u32 %v693, 16
    %v697 = vrot.slane %v695, 2
    %698 = vrot.lane.b32.xlu0 %v697, 64
    %v699 = vpop.permute.xlu0 %698
    %v701 = vsel %vm200, %v699, 0
    %703 = vmatprep.subr.bf16.mxu0 %v185
    %704 = vmatpush1.bf16.msra.mxu0 %v184
    %705 = vmatprep.subr.bf16.mxu0 %v187
    %706 = vmatpush1.bf16.msra.mxu0 %v186
    %707 = vmatprep.subr.bf16.mxu0 %v189
    %708 = vmatpush1.bf16.msra.mxu0 %v188
    %709 = vmatprep.subr.bf16.mxu0 %v191
    %710 = vmatpush1.bf16.msra.mxu0 %v190
    %711 = vmatprep.subr.bf16.mxu0 0
    %712 = vmatpush1.bf16.msra.mxu0 0
    %713 = vmatprep.subr.bf16.mxu0 0
    %714 = vmatpush1.bf16.msra.mxu0 0
    %715 = vmatprep.subr.bf16.mxu0 0
    %716 = vmatpush1.bf16.msra.mxu0 0
    %717 = vmatprep.subr.bf16.mxu0 0
    %718 = vmatpush1.bf16.msra.mxu0 0
    %719 = vmatprep.subr.bf16.mxu0 0
    %720 = vmatpush1.bf16.msra.mxu0 0
    %721 = vmatprep.subr.bf16.mxu0 0
    %722 = vmatpush1.bf16.msra.mxu0 0
    %723 = vmatprep.subr.bf16.mxu0 0
    %724 = vmatpush1.bf16.msra.mxu0 0
    %725 = vmatprep.subr.bf16.mxu0 0
    %726 = vmatpush1.bf16.msra.mxu0 0
    %727 = vmatprep.subr.bf16.mxu0 0
    %728 = vmatpush1.bf16.msra.mxu0 0
    %729 = vmatprep.subr.bf16.mxu0 0
    %730 = vmatpush1.bf16.msra.mxu0 0
    %731 = vmatprep.subr.bf16.mxu0 0
    %732 = vmatpush1.bf16.msra.mxu0 0
    %733 = vmatprep.subr.bf16.mxu0 0
    %734 = vmatpush1.bf16.msra.mxu0 0
    %735 = vmatprep.mubr.bf16.mxu0 0
    %736 = vmatmul.mubr.bf16.gmra.mrb[0].mxu0 %v701
    %v737 = vpop.f32.mrb[0].mxu0
    %v738 = vadd.f32 0.0, %v737
    %v739 = vpop.f32.mrb[0].mxu0
    %v740 = vadd.f32 0.0, %v739
    %v741 = vpop.f32.mrb[0].mxu0
    %v742 = vpop.f32.mrb[0].mxu0
    %743 = vdwg.mxu0
    %v746 = vrot.slane %v738, 2
    %v747 = vrot.slane %v740, 2
    %v750 = vadd.f32 %v154, %v746
    %v751 = vadd.f32 %v156, %v747
    %v752 = vmul.f32 %v750, 0.5
    %v753 = vtanh.pop %v752
    %v754 = vmul.f32 %v753, 0.5
    %v755 = vadd.f32 %v754, 0.5
    %v756 = vtanh.pop %v751
    %v757 = vmul.f32 %v751, 0.5
    %v758 = vtanh.pop %v757
    %v759 = vmul.f32 %v758, 0.5
    %v760 = vadd.f32 %v759, 0.5
    %v762 = vrot.slane %v684, 7
    %v764 = vmul.f32 %v755, %v762
    %v765 = vmul.f32 %v755, %v756
    %767 = vrot.lane.b32.xlu0 %v765, 64
    %v768 = vpop.permute.xlu0 %767
    %v770 = vadd.f32 %v764, %v768
    %v771 = vtanh.pop %v770
    %v772 = vmul.f32 %v760, %v771
    %774 = vrot.lane.b32.xlu0 %v772, 64
    %v775 = vpop.permute.xlu0 %774
    %vm777 = vcmask 522246
    %778 = vst.msk [vmem:[#allocation2] sm:$0x40] %vm777, %v775
    %v779 = vpack.c.bf16 %v772, %v772
    %v781 = vrot.slane %v779, 3
    %782 = vrot.lane.b32.xlu0 %v781, 64
    %v783 = vpop.permute.xlu0 %782
    %v785 = vsel %vm200, %v783, 0
    %787 = vmatprep.subr.bf16.mxu0 %v185
    %788 = vmatpush1.bf16.msra.mxu0 %v184
    %789 = vmatprep.subr.bf16.mxu0 %v187
    %790 = vmatpush1.bf16.msra.mxu0 %v186
    %791 = vmatprep.subr.bf16.mxu0 %v189
    %792 = vmatpush1.bf16.msra.mxu0 %v188
    %793 = vmatprep.subr.bf16.mxu0 %v191
    %794 = vmatpush1.bf16.msra.mxu0 %v190
    %795 = vmatprep.subr.bf16.mxu0 0
    %796 = vmatpush1.bf16.msra.mxu0 0
    %797 = vmatprep.subr.bf16.mxu0 0
    %798 = vmatpush1.bf16.msra.mxu0 0
    %799 = vmatprep.subr.bf16.mxu0 0
    %800 = vmatpush1.bf16.msra.mxu0 0
    %801 = vmatprep.subr.bf16.mxu0 0
    %802 = vmatpush1.bf16.msra.mxu0 0
    %803 = vmatprep.subr.bf16.mxu0 0
    %804 = vmatpush1.bf16.msra.mxu0 0
    %805 = vmatprep.subr.bf16.mxu0 0
    %806 = vmatpush1.bf16.msra.mxu0 0
    %807 = vmatprep.subr.bf16.mxu0 0
    %808 = vmatpush1.bf16.msra.mxu0 0
    %809 = vmatprep.subr.bf16.mxu0 0
    %810 = vmatpush1.bf16.msra.mxu0 0
    %811 = vmatprep.subr.bf16.mxu0 0
    %812 = vmatpush1.bf16.msra.mxu0 0
    %813 = vmatprep.subr.bf16.mxu0 0
    %814 = vmatpush1.bf16.msra.mxu0 0
    %815 = vmatprep.subr.bf16.mxu0 0
    %816 = vmatpush1.bf16.msra.mxu0 0
    %817 = vmatprep.subr.bf16.mxu0 0
    %818 = vmatpush1.bf16.msra.mxu0 0
    %819 = vmatprep.mubr.bf16.mxu0 0
    %820 = vmatmul.mubr.bf16.gmra.mrb[0].mxu0 %v785
    %v821 = vpop.f32.mrb[0].mxu0
    %v822 = vadd.f32 0.0, %v821
    %v823 = vpop.f32.mrb[0].mxu0
    %v824 = vadd.f32 0.0, %v823
    %v825 = vpop.f32.mrb[0].mxu0
    %v826 = vpop.f32.mrb[0].mxu0
    %827 = vdwg.mxu0
    %v830 = vrot.slane %v822, 1
    %v831 = vrot.slane %v824, 1
    %v834 = vadd.f32 %v154, %v830
    %v835 = vadd.f32 %v156, %v831
    %v836 = vmul.f32 %v834, 0.5
    %v837 = vtanh.pop %v836
    %v838 = vmul.f32 %v837, 0.5
    %v839 = vadd.f32 %v838, 0.5
    %v840 = vtanh.pop %v835
    %v841 = vmul.f32 %v835, 0.5
    %v842 = vtanh.pop %v841
    %v843 = vmul.f32 %v842, 0.5
    %v844 = vadd.f32 %v843, 0.5
    %v846 = vrot.slane %v770, 7
    %v848 = vmul.f32 %v839, %v846
    %v849 = vmul.f32 %v839, %v840
    %851 = vrot.lane.b32.xlu0 %v849, 64
    %v852 = vpop.permute.xlu0 %851
    %v854 = vadd.f32 %v848, %v852
    %v855 = vtanh.pop %v854
    %v856 = vmul.f32 %v844, %v855
    %858 = vrot.lane.b32.xlu0 %v856, 64
    %v859 = vpop.permute.xlu0 %858
    %vm861 = vcmask 523271
    %862 = vst.msk [vmem:[#allocation2] sm:$0x80] %vm861, %v859
    %v863 = vld [vmem:[#allocation2] sm:$0xff]
    %v864 = vpack.c.bf16 %v863, %v863
    %v865 = vld [vmem:[%s6] sm:$0xf]
    %v866 = vld [vmem:[%s6 + $0x4] sm:$0xf]
    %v867 = vld [vmem:[%s6 + $0x8] sm:$0xf]
    %v868 = vld [vmem:[%s6 + $0xc] sm:$0xf]
    %v869 = vld [vmem:[%s6 + $0x10] sm:$0xf]
    %v870 = vld [vmem:[%s6 + $0x14] sm:$0xf]
    %v871 = vld [vmem:[%s6 + $0x18] sm:$0xf]
    %v872 = vld [vmem:[%s6 + $0x1c] sm:$0xf]
    %v873 = vld [vmem:[%s7] sm:$0x1]
    %v875 = vlaneseq
    %v876 = vshrl.u32 %v875, 7
    %v877 = vsub.s32 0, %v876
    %v878 = vrot.slane %v873, %v877
    %v888 = vunpack.c.l.b16 %v865
    %v889 = vunpack.c.l.b16 %v866
    %v890 = vunpack.c.l.b16 %v867
    %v891 = vunpack.c.l.b16 %v868
    %v892 = vunpack.c.l.b16 %v869
    %v893 = vunpack.c.l.b16 %v870
    %v894 = vunpack.c.l.b16 %v871
    %v895 = vunpack.c.l.b16 %v872
    %v896 = vpack.c.b16 %v889, %v888
    %v897 = vpack.c.b16 %v891, %v890
    %v898 = vpack.c.b16 %v893, %v892
    %v899 = vpack.c.b16 %v895, %v894
    %v905 = vsel %vm200, %v864, 0
    %907 = vmatprep.subr.bf16.mxu0 0
    %908 = vmatpush1.bf16.msra.mxu0 %v896
    %909 = vmatprep.subr.bf16.mxu0 0
    %910 = vmatpush1.bf16.msra.mxu0 %v897
    %911 = vmatprep.subr.bf16.mxu0 0
    %912 = vmatpush1.bf16.msra.mxu0 %v898
    %913 = vmatprep.subr.bf16.mxu0 0
    %914 = vmatpush1.bf16.msra.mxu0 %v899
    %915 = vmatprep.subr.bf16.mxu0 0
    %916 = vmatpush1.bf16.msra.mxu0 0
    %917 = vmatprep.subr.bf16.mxu0 0
    %918 = vmatpush1.bf16.msra.mxu0 0
    %919 = vmatprep.subr.bf16.mxu0 0
    %920 = vmatpush1.bf16.msra.mxu0 0
    %921 = vmatprep.subr.bf16.mxu0 0
    %922 = vmatpush1.bf16.msra.mxu0 0
    %923 = vmatprep.subr.bf16.mxu0 0
    %924 = vmatpush1.bf16.msra.mxu0 0
    %925 = vmatprep.subr.bf16.mxu0 0
    %926 = vmatpush1.bf16.msra.mxu0 0
    %927 = vmatprep.subr.bf16.mxu0 0
    %928 = vmatpush1.bf16.msra.mxu0 0
    %929 = vmatprep.subr.bf16.mxu0 0
    %930 = vmatpush1.bf16.msra.mxu0 0
    %931 = vmatprep.subr.bf16.mxu0 0
    %932 = vmatpush1.bf16.msra.mxu0 0
    %933 = vmatprep.subr.bf16.mxu0 0
    %934 = vmatpush1.bf16.msra.mxu0 0
    %935 = vmatprep.subr.bf16.mxu0 0
    %936 = vmatpush1.bf16.msra.mxu0 0
    %937 = vmatprep.subr.bf16.mxu0 0
    %938 = vmatpush1.bf16.msra.mxu0 0
    %939 = vmatprep.mubr.bf16.mxu0 0
    %940 = vmatmul.mubr.bf16.gmra.mrb[0].mxu0 %v905
    %v941 = vpop.f32.mrb[0].mxu0
    %v942 = vadd.f32 %v878, %v941
    %v943 = vpop.f32.mrb[0].mxu0
    %v944 = vpop.f32.mrb[0].mxu0
    %v945 = vpop.f32.mrb[0].mxu0
    %946 = vdwg.mxu0
    %947 = vst.msk [vmem:[#allocation8] sm:$0xff] %vm115, %v942
    %v948 = vld [vmem:[%s2] sm:$0xff]
    %v949 = vmul.f32 %v942, 0.5
    %v950 = vmul.f32 %v949, 1.442695
    %v951 = vpow.pop %v950
    %953 = vrot.lane.b32.xlu0 %v951, 120
    %v954 = vpop.permute.xlu0 %953
    %v956 = vmul.f32 %v948, %v954
    %v957 = vadd.f32 %v942, %v956
    %v958 = vpack.c.bf16 %v957, %v957
    %v959 = vld [vmem:[%s1] sm:$0xf]
    %v961 = vunpack.c.l.b16 %v83
    %v962 = vunpack.c.h.b16 %v83
    %v963 = vpack.c.b16 %v961, %v961
    %v964 = vpack.c.b16 %v962, %v962
    %vm965 = vcmask 31744
    %v967 = vsel %vm965, %v959, 0
    %vm969 = vcmask 1041408
    %v971 = vsel %vm969, %v963, 0
    %v974 = vsel %vm969, %v964, 0
    %976 = vmatprep.subr.bf16.mxu0 %v974
    %977 = vmatpush1.bf16.msra.mxu0 %v971
    %978 = vmatprep.subr.bf16.mxu0 0
    %979 = vmatpush1.bf16.msra.mxu0 0
    %980 = vmatprep.subr.bf16.mxu0 0
    %981 = vmatpush1.bf16.msra.mxu0 0
    %982 = vmatprep.subr.bf16.mxu0 0
    %983 = vmatpush1.bf16.msra.mxu0 0
    %984 = vmatprep.subr.bf16.mxu0 0
    %985 = vmatpush1.bf16.msra.mxu0 0
    %986 = vmatprep.subr.bf16.mxu0 0
    %987 = vmatpush1.bf16.msra.mxu0 0
    %988 = vmatprep.subr.bf16.mxu0 0
    %989 = vmatpush1.bf16.msra.mxu0 0
    %990 = vmatprep.subr.bf16.mxu0 0
    %991 = vmatpush1.bf16.msra.mxu0 0
    %992 = vmatprep.subr.bf16.mxu0 0
    %993 = vmatpush1.bf16.msra.mxu0 0
    %994 = vmatprep.subr.bf16.mxu0 0
    %995 = vmatpush1.bf16.msra.mxu0 0
    %996 = vmatprep.subr.bf16.mxu0 0
    %997 = vmatpush1.bf16.msra.mxu0 0
    %998 = vmatprep.subr.bf16.mxu0 0
    %999 = vmatpush1.bf16.msra.mxu0 0
    %1000 = vmatprep.subr.bf16.mxu0 0
    %1001 = vmatpush1.bf16.msra.mxu0 0
    %1002 = vmatprep.subr.bf16.mxu0 0
    %1003 = vmatpush1.bf16.msra.mxu0 0
    %1004 = vmatprep.subr.bf16.mxu0 0
    %1005 = vmatpush1.bf16.msra.mxu0 0
    %1006 = vmatprep.subr.bf16.mxu0 0
    %1007 = vmatpush1.bf16.msra.mxu0 0
    %1008 = vmatprep.mubr.bf16.mxu0 0
    %1009 = vmatmul.mubr.bf16.gmra.mrb[0].mxu0 %v967
    %v1010 = vpop.f32.mrb[0].mxu0
    %v1011 = vadd.f32 0.0, %v1010
    %v1012 = vpop.f32.mrb[0].mxu0
    %v1013 = vadd.f32 0.0, %v1012
    %v1014 = vpop.f32.mrb[0].mxu0
    %v1015 = vpop.f32.mrb[0].mxu0
    %1016 = vdwg.mxu0
    %v1018 = vunpack.c.l.b16 %v82
    %v1019 = vunpack.c.h.b16 %v82
    %v1020 = vpack.c.b16 %v1018, %v1018
    %v1021 = vpack.c.b16 %v1019, %v1019
    %vm1022 = vcmask 64512
    %v1024 = vsel %vm1022, %v958, 0
    %vm1026 = vcmask 1043456
    %v1028 = vsel %vm1026, %v1020, 0
    %v1031 = vsel %vm1026, %v1021, 0
    %1033 = vmatprep.subr.bf16.mxu0 %v1031
    %1034 = vmatpush1.bf16.msra.mxu0 %v1028
    %1035 = vmatprep.subr.bf16.mxu0 0
    %1036 = vmatpush1.bf16.msra.mxu0 0
    %1037 = vmatprep.subr.bf16.mxu0 0
    %1038 = vmatpush1.bf16.msra.mxu0 0
    %1039 = vmatprep.subr.bf16.mxu0 0
    %1040 = vmatpush1.bf16.msra.mxu0 0
    %1041 = vmatprep.subr.bf16.mxu0 0
    %1042 = vmatpush1.bf16.msra.mxu0 0
    %1043 = vmatprep.subr.bf16.mxu0 0
    %1044 = vmatpush1.bf16.msra.mxu0 0
    %1045 = vmatprep.subr.bf16.mxu0 0
    %1046 = vmatpush1.bf16.msra.mxu0 0
    %1047 = vmatprep.subr.bf16.mxu0 0
    %1048 = vmatpush1.bf16.msra.mxu0 0
    %1049 = vmatprep.subr.bf16.mxu0 0
    %1050 = vmatpush1.bf16.msra.mxu0 0
    %1051 = vmatprep.subr.bf16.mxu0 0
    %1052 = vmatpush1.bf16.msra.mxu0 0
    %1053 = vmatprep.subr.bf16.mxu0 0
    %1054 = vmatpush1.bf16.msra.mxu0 0
    %1055 = vmatprep.subr.bf16.mxu0 0
    %1056 = vmatpush1.bf16.msra.mxu0 0
    %1057 = vmatprep.subr.bf16.mxu0 0
    %1058 = vmatpush1.bf16.msra.mxu0 0
    %1059 = vmatprep.subr.bf16.mxu0 0
    %1060 = vmatpush1.bf16.msra.mxu0 0
    %1061 = vmatprep.subr.bf16.mxu0 0
    %1062 = vmatpush1.bf16.msra.mxu0 0
    %1063 = vmatprep.subr.bf16.mxu0 0
    %1064 = vmatpush1.bf16.msra.mxu0 0
    %1065 = vmatprep.mubr.bf16.mxu0 0
    %1066 = vmatmul.mubr.bf16.gmra.mrb[0].mxu0 %v1024
    %v1067 = vpop.f32.mrb[0].mxu0
    %v1068 = vadd.f32 %v1011, %v1067
    %v1069 = vpop.f32.mrb[0].mxu0
    %v1070 = vadd.f32 %v1013, %v1069
    %v1071 = vpop.f32.mrb[0].mxu0
    %v1072 = vpop.f32.mrb[0].mxu0
    %1073 = vdwg.mxu0
    %v1074 = vlaneseq
    %v1075 = vshrl.u32 %v1074, 7
    %v1076 = vsub.s32 1, %v1075
    %v1077 = vrot.slane %v84, %v1076
    %v1078 = vlaneseq
    %v1079 = vshrl.u32 %v1078, 7
    %v1080 = vsub.s32 5, %v1079
    %v1081 = vrot.slane %v84, %v1080
    %v1084 = vlaneseq
    %v1085 = vshrl.u32 %v1084, 7
    %v1086 = vsub.s32 1, %v1085
    %v1087 = vrot.slane %v1077, %v1086
    %v1088 = vlaneseq
    %v1089 = vshrl.u32 %v1088, 7
    %v1090 = vsub.s32 1, %v1089
    %v1091 = vrot.slane %v1081, %v1090
    %v1092 = vadd.f32 %v1068, %v1087
    %v1093 = vadd.f32 %v1070, %v1091
    %v1102 = vunpack.c.l.b16 %v56
    %v1103 = vunpack.c.h.b16 %v56
    %v1104 = vunpack.c.l.b16 %v57
    %v1105 = vunpack.c.h.b16 %v57
    %v1106 = vunpack.c.l.b16 %v58
    %v1107 = vunpack.c.h.b16 %v58
    %v1108 = vunpack.c.l.b16 %v59
    %v1109 = vunpack.c.h.b16 %v59
    %v1110 = vunpack.c.l.b16 %v60
    %v1111 = vunpack.c.h.b16 %v60
    %v1112 = vunpack.c.l.b16 %v61
    %v1113 = vunpack.c.h.b16 %v61
    %v1114 = vunpack.c.l.b16 %v62
    %v1115 = vunpack.c.h.b16 %v62
    %v1116 = vunpack.c.l.b16 %v63
    %v1117 = vunpack.c.h.b16 %v63
    %v1118 = vpack.c.b16 %v1104, %v1102
    %v1119 = vpack.c.b16 %v1105, %v1103
    %v1120 = vpack.c.b16 %v1108, %v1106
    %v1121 = vpack.c.b16 %v1109, %v1107
    %v1122 = vpack.c.b16 %v1112, %v1110
    %v1123 = vpack.c.b16 %v1113, %v1111
    %v1124 = vpack.c.b16 %v1116, %v1114
    %v1125 = vpack.c.b16 %v1117, %v1115
    %1134 = vmatprep.subr.bf16.mxu0 %v1119
    %1135 = vmatpush1.bf16.msra.mxu0 %v1118
    %1136 = vmatprep.subr.bf16.mxu0 %v1121
    %1137 = vmatpush1.bf16.msra.mxu0 %v1120
    %1138 = vmatprep.subr.bf16.mxu0 %v1123
    %1139 = vmatpush1.bf16.msra.mxu0 %v1122
    %1140 = vmatprep.subr.bf16.mxu0 %v1125
    %1141 = vmatpush1.bf16.msra.mxu0 %v1124
    %1142 = vmatprep.subr.bf16.mxu0 0
    %1143 = vmatpush1.bf16.msra.mxu0 0
    %1144 = vmatprep.subr.bf16.mxu0 0
    %1145 = vmatpush1.bf16.msra.mxu0 0
    %1146 = vmatprep.subr.bf16.mxu0 0
    %1147 = vmatpush1.bf16.msra.mxu0 0
    %1148 = vmatprep.subr.bf16.mxu0 0
    %1149 = vmatpush1.bf16.msra.mxu0 0
    %1150 = vmatprep.subr.bf16.mxu0 0
    %1151 = vmatpush1.bf16.msra.mxu0 0
    %1152 = vmatprep.subr.bf16.mxu0 0
    %1153 = vmatpush1.bf16.msra.mxu0 0
    %1154 = vmatprep.subr.bf16.mxu0 0
    %1155 = vmatpush1.bf16.msra.mxu0 0
    %1156 = vmatprep.subr.bf16.mxu0 0
    %1157 = vmatpush1.bf16.msra.mxu0 0
    %1158 = vmatprep.subr.bf16.mxu0 0
    %1159 = vmatpush1.bf16.msra.mxu0 0
    %1160 = vmatprep.subr.bf16.mxu0 0
    %1161 = vmatpush1.bf16.msra.mxu0 0
    %1162 = vmatprep.subr.bf16.mxu0 0
    %1163 = vmatpush1.bf16.msra.mxu0 0
    %1164 = vmatprep.subr.bf16.mxu0 0
    %1165 = vmatpush1.bf16.msra.mxu0 0
    %1166 = vmatprep.mubr.bf16.mxu0 0
    %1167 = vmatmul.mubr.bf16.gmra.mrb[0].mxu0 %v202
    %v1168 = vpop.f32.mrb[0].mxu0
    %v1169 = vadd.f32 0.0, %v1168
    %v1170 = vpop.f32.mrb[0].mxu0
    %v1171 = vadd.f32 0.0, %v1170
    %v1172 = vpop.f32.mrb[0].mxu0
    %v1173 = vpop.f32.mrb[0].mxu0
    %1174 = vdwg.mxu0
    %v1175 = vadd.f32 %v1092, %v1169
    %v1176 = vadd.f32 %v1093, %v1171
    %v1177 = vmul.f32 %v1175, 0.5
    %v1178 = vtanh.pop %v1177
    %v1179 = vmul.f32 %v1178, 0.5
    %v1180 = vadd.f32 %v1179, 0.5
    %v1181 = vtanh.pop %v1176
    %v1182 = vmul.f32 %v1176, 0.5
    %v1183 = vtanh.pop %v1182
    %v1184 = vmul.f32 %v1183, 0.5
    %v1185 = vadd.f32 %v1184, 0.5
    %v1186 = vmul.f32 %v1180, 0.0
    %v1187 = vmul.f32 %v1180, %v1181
    %1189 = vrot.lane.b32.xlu0 %v1187, 64
    %v1190 = vpop.permute.xlu0 %1189
    %v1192 = vadd.f32 %v1186, %v1190
    %v1193 = vtanh.pop %v1192
    %v1194 = vmul.f32 %v1185, %v1193
    %1196 = vrot.lane.b32.xlu0 %v1194, 64
    %v1197 = vpop.permute.xlu0 %1196
    %v1199 = vsel %vm200, %v1197, 0.0
    %v1200 = vpack.c.bf16 %v1199, %v1199
    %v1217 = vunpack.c.l.b16 %v64
    %v1218 = vunpack.c.h.b16 %v64
    %v1219 = vunpack.c.l.b16 %v65
    %v1220 = vunpack.c.h.b16 %v65
    %v1221 = vunpack.c.l.b16 %v66
    %v1222 = vunpack.c.h.b16 %v66
    %v1223 = vunpack.c.l.b16 %v67
    %v1224 = vunpack.c.h.b16 %v67
    %v1225 = vunpack.c.l.b16 %v68
    %v1226 = vunpack.c.h.b16 %v68
    %v1227 = vunpack.c.l.b16 %v69
    %v1228 = vunpack.c.h.b16 %v69
    %v1229 = vunpack.c.l.b16 %v70
    %v1230 = vunpack.c.h.b16 %v70
    %v1231 = vunpack.c.l.b16 %v71
    %v1232 = vunpack.c.h.b16 %v71
    %v1233 = vunpack.c.l.b16 %v72
    %v1234 = vunpack.c.h.b16 %v72
    %v1235 = vunpack.c.l.b16 %v73
    %v1236 = vunpack.c.h.b16 %v73
    %v1237 = vunpack.c.l.b16 %v74
    %v1238 = vunpack.c.h.b16 %v74
    %v1239 = vunpack.c.l.b16 %v75
    %v1240 = vunpack.c.h.b16 %v75
    %v1241 = vunpack.c.l.b16 %v76
    %v1242 = vunpack.c.h.b16 %v76
    %v1243 = vunpack.c.l.b16 %v77
    %v1244 = vunpack.c.h.b16 %v77
    %v1245 = vunpack.c.l.b16 %v78
    %v1246 = vunpack.c.h.b16 %v78
    %v1247 = vunpack.c.l.b16 %v79
    %v1248 = vunpack.c.h.b16 %v79
    %v1249 = vpack.c.b16 %v1219, %v1217
    %v1250 = vpack.c.b16 %v1220, %v1218
    %v1251 = vpack.c.b16 %v1223, %v1221
    %v1252 = vpack.c.b16 %v1224, %v1222
    %v1253 = vpack.c.b16 %v1227, %v1225
    %v1254 = vpack.c.b16 %v1228, %v1226
    %v1255 = vpack.c.b16 %v1231, %v1229
    %v1256 = vpack.c.b16 %v1232, %v1230
    %v1257 = vpack.c.b16 %v1235, %v1233
    %v1258 = vpack.c.b16 %v1236, %v1234
    %v1259 = vpack.c.b16 %v1239, %v1237
    %v1260 = vpack.c.b16 %v1240, %v1238
    %v1261 = vpack.c.b16 %v1243, %v1241
    %v1262 = vpack.c.b16 %v1244, %v1242
    %v1263 = vpack.c.b16 %v1247, %v1245
    %v1264 = vpack.c.b16 %v1248, %v1246
    %v1281 = vlaneseq
    %v1282 = vshrl.u32 %v1281, 7
    %v1283 = vsub.s32 2, %v1282
    %v1284 = vrot.slane %v84, %v1283
    %v1285 = vlaneseq
    %v1286 = vshrl.u32 %v1285, 7
    %v1287 = vsub.s32 6, %v1286
    %v1288 = vrot.slane %v84, %v1287
    %1291 = vmatprep.subr.bf16.mxu0 %v1250
    %1292 = vmatpush1.bf16.msra.mxu0 %v1249
    %1293 = vmatprep.subr.bf16.mxu0 %v1252
    %1294 = vmatpush1.bf16.msra.mxu0 %v1251
    %1295 = vmatprep.subr.bf16.mxu0 %v1254
    %1296 = vmatpush1.bf16.msra.mxu0 %v1253
    %1297 = vmatprep.subr.bf16.mxu0 %v1256
    %1298 = vmatpush1.bf16.msra.mxu0 %v1255
    %1299 = vmatprep.subr.bf16.mxu0 %v1258
    %1300 = vmatpush1.bf16.msra.mxu0 %v1257
    %1301 = vmatprep.subr.bf16.mxu0 %v1260
    %1302 = vmatpush1.bf16.msra.mxu0 %v1259
    %1303 = vmatprep.subr.bf16.mxu0 %v1262
    %1304 = vmatpush1.bf16.msra.mxu0 %v1261
    %1305 = vmatprep.subr.bf16.mxu0 %v1264
    %1306 = vmatpush1.bf16.msra.mxu0 %v1263
    %1307 = vmatprep.subr.bf16.mxu0 0
    %1308 = vmatpush1.bf16.msra.mxu0 0
    %1309 = vmatprep.subr.bf16.mxu0 0
    %1310 = vmatpush1.bf16.msra.mxu0 0
    %1311 = vmatprep.subr.bf16.mxu0 0
    %1312 = vmatpush1.bf16.msra.mxu0 0
    %1313 = vmatprep.subr.bf16.mxu0 0
    %1314 = vmatpush1.bf16.msra.mxu0 0
    %1315 = vmatprep.subr.bf16.mxu0 0
    %1316 = vmatpush1.bf16.msra.mxu0 0
    %1317 = vmatprep.subr.bf16.mxu0 0
    %1318 = vmatpush1.bf16.msra.mxu0 0
    %1319 = vmatprep.subr.bf16.mxu0 0
    %1320 = vmatpush1.bf16.msra.mxu0 0
    %1321 = vmatprep.subr.bf16.mxu0 0
    %1322 = vmatpush1.bf16.msra.mxu0 0
    %1323 = vmatprep.mubr.bf16.mxu0 0
    %1324 = vmatmul.mubr.bf16.gmra.mrb[0].mxu0 %v1200
    %v1325 = vpop.f32.mrb[0].mxu0
    %v1326 = vadd.f32 %v1284, %v1325
    %v1327 = vpop.f32.mrb[0].mxu0
    %v1328 = vadd.f32 %v1288, %v1327
    %v1329 = vpop.f32.mrb[0].mxu0
    %v1330 = vpop.f32.mrb[0].mxu0
    %1331 = vdwg.mxu0
    %v1332 = vmul.f32 %v1326, 0.5
    %v1333 = vtanh.pop %v1332
    %v1334 = vmul.f32 %v1333, 0.5
    %v1335 = vadd.f32 %v1334, 0.5
    %v1336 = vtanh.pop %v1328
    %v1337 = vmul.f32 %v1328, 0.5
    %v1338 = vtanh.pop %v1337
    %v1339 = vmul.f32 %v1338, 0.5
    %v1340 = vadd.f32 %v1339, 0.5
    %v1341 = vmul.f32 %v1335, 0.0
    %v1342 = vmul.f32 %v1335, %v1336
    %1344 = vrot.lane.b32.xlu0 %v1342, 64
    %v1345 = vpop.permute.xlu0 %1344
    %v1347 = vadd.f32 %v1341, %v1345
    %v1348 = vtanh.pop %v1347
    %v1349 = vmul.f32 %v1340, %v1348
    %1351 = vrot.lane.b32.xlu0 %v1349, 64
    %v1352 = vpop.permute.xlu0 %1351
    %1354 = vst.msk [vmem:[#allocation3] sm:$0x1] %vm269, %v1352
    %v1355 = vpack.c.bf16 %v1194, %v1194
    %1357 = vrot.lane.b32.xlu0 %v1355, 64
    %v1358 = vpop.permute.xlu0 %1357
    %v1360 = vsel %vm200, %v1358, 0
    %1362 = vmatprep.subr.bf16.mxu0 %v1119
    %1363 = vmatpush1.bf16.msra.mxu0 %v1118
    %1364 = vmatprep.subr.bf16.mxu0 %v1121
    %1365 = vmatpush1.bf16.msra.mxu0 %v1120
    %1366 = vmatprep.subr.bf16.mxu0 %v1123
    %1367 = vmatpush1.bf16.msra.mxu0 %v1122
    %1368 = vmatprep.subr.bf16.mxu0 %v1125
    %1369 = vmatpush1.bf16.msra.mxu0 %v1124
    %1370 = vmatprep.subr.bf16.mxu0 0
    %1371 = vmatpush1.bf16.msra.mxu0 0
    %1372 = vmatprep.subr.bf16.mxu0 0
    %1373 = vmatpush1.bf16.msra.mxu0 0
    %1374 = vmatprep.subr.bf16.mxu0 0
    %1375 = vmatpush1.bf16.msra.mxu0 0
    %1376 = vmatprep.subr.bf16.mxu0 0
    %1377 = vmatpush1.bf16.msra.mxu0 0
    %1378 = vmatprep.subr.bf16.mxu0 0
    %1379 = vmatpush1.bf16.msra.mxu0 0
    %1380 = vmatprep.subr.bf16.mxu0 0
    %1381 = vmatpush1.bf16.msra.mxu0 0
    %1382 = vmatprep.subr.bf16.mxu0 0
    %1383 = vmatpush1.bf16.msra.mxu0 0
    %1384 = vmatprep.subr.bf16.mxu0 0
    %1385 = vmatpush1.bf16.msra.mxu0 0
    %1386 = vmatprep.subr.bf16.mxu0 0
    %1387 = vmatpush1.bf16.msra.mxu0 0
    %1388 = vmatprep.subr.bf16.mxu0 0
    %1389 = vmatpush1.bf16.msra.mxu0 0
    %1390 = vmatprep.subr.bf16.mxu0 0
    %1391 = vmatpush1.bf16.msra.mxu0 0
    %1392 = vmatprep.subr.bf16.mxu0 0
    %1393 = vmatpush1.bf16.msra.mxu0 0
    %1394 = vmatprep.mubr.bf16.mxu0 0
    %1395 = vmatmul.mubr.bf16.gmra.mrb[0].mxu0 %v1360
    %v1396 = vpop.f32.mrb[0].mxu0
    %v1397 = vadd.f32 0.0, %v1396
    %v1398 = vpop.f32.mrb[0].mxu0
    %v1399 = vadd.f32 0.0, %v1398
    %v1400 = vpop.f32.mrb[0].mxu0
    %v1401 = vpop.f32.mrb[0].mxu0
    %1402 = vdwg.mxu0
    %v1405 = vrot.slane %v1397, 7
    %v1406 = vrot.slane %v1399, 7
    %v1409 = vadd.f32 %v1092, %v1405
    %v1410 = vadd.f32 %v1093, %v1406
    %v1411 = vmul.f32 %v1409, 0.5
    %v1412 = vtanh.pop %v1411
    %v1413 = vmul.f32 %v1412, 0.5
    %v1414 = vadd.f32 %v1413, 0.5
    %v1415 = vtanh.pop %v1410
    %v1416 = vmul.f32 %v1410, 0.5
    %v1417 = vtanh.pop %v1416
    %v1418 = vmul.f32 %v1417, 0.5
    %v1419 = vadd.f32 %v1418, 0.5
    %v1421 = vrot.slane %v1192, 7
    %v1423 = vmul.f32 %v1414, %v1421
    %v1424 = vmul.f32 %v1414, %v1415
    %1426 = vrot.lane.b32.xlu0 %v1424, 64
    %v1427 = vpop.permute.xlu0 %1426
    %v1429 = vadd.f32 %v1423, %v1427
    %v1430 = vtanh.pop %v1429
    %v1431 = vmul.f32 %v1419, %v1430
    %1433 = vrot.lane.b32.xlu0 %v1431, 64
    %v1434 = vpop.permute.xlu0 %1433
    %v1436 = vrot.slane %v1349, 7
    %v1438 = vsel %vm200, %v1434, %v1436
    %v1439 = vpack.c.bf16 %v1438, %v1438
    %v1441 = vshrl.u32 %v1439, 16
    %1444 = vmatprep.subr.bf16.mxu0 %v1250
    %1445 = vmatpush1.bf16.msra.mxu0 %v1249
    %1446 = vmatprep.subr.bf16.mxu0 %v1252
    %1447 = vmatpush1.bf16.msra.mxu0 %v1251
    %1448 = vmatprep.subr.bf16.mxu0 %v1254
    %1449 = vmatpush1.bf16.msra.mxu0 %v1253
    %1450 = vmatprep.subr.bf16.mxu0 %v1256
    %1451 = vmatpush1.bf16.msra.mxu0 %v1255
    %1452 = vmatprep.subr.bf16.mxu0 %v1258
    %1453 = vmatpush1.bf16.msra.mxu0 %v1257
    %1454 = vmatprep.subr.bf16.mxu0 %v1260
    %1455 = vmatpush1.bf16.msra.mxu0 %v1259
    %1456 = vmatprep.subr.bf16.mxu0 %v1262
    %1457 = vmatpush1.bf16.msra.mxu0 %v1261
    %1458 = vmatprep.subr.bf16.mxu0 %v1264
    %1459 = vmatpush1.bf16.msra.mxu0 %v1263
    %1460 = vmatprep.subr.bf16.mxu0 0
    %1461 = vmatpush1.bf16.msra.mxu0 0
    %1462 = vmatprep.subr.bf16.mxu0 0
    %1463 = vmatpush1.bf16.msra.mxu0 0
    %1464 = vmatprep.subr.bf16.mxu0 0
    %1465 = vmatpush1.bf16.msra.mxu0 0
    %1466 = vmatprep.subr.bf16.mxu0 0
    %1467 = vmatpush1.bf16.msra.mxu0 0
    %1468 = vmatprep.subr.bf16.mxu0 0
    %1469 = vmatpush1.bf16.msra.mxu0 0
    %1470 = vmatprep.subr.bf16.mxu0 0
    %1471 = vmatpush1.bf16.msra.mxu0 0
    %1472 = vmatprep.subr.bf16.mxu0 0
    %1473 = vmatpush1.bf16.msra.mxu0 0
    %1474 = vmatprep.subr.bf16.mxu0 0
    %1475 = vmatpush1.bf16.msra.mxu0 0
    %1476 = vmatprep.mubr.bf16.mxu0 0
    %1477 = vmatmul.mubr.bf16.gmra.mrb[0].mxu0 %v1441
    %v1478 = vpop.f32.mrb[0].mxu0
    %v1479 = vadd.f32 %v1284, %v1478
    %v1480 = vpop.f32.mrb[0].mxu0
    %v1481 = vadd.f32 %v1288, %v1480
    %v1482 = vpop.f32.mrb[0].mxu0
    %v1483 = vpop.f32.mrb[0].mxu0
    %1484 = vdwg.mxu0
    %v1485 = vmul.f32 %v1479, 0.5
    %v1486 = vtanh.pop %v1485
    %v1487 = vmul.f32 %v1486, 0.5
    %v1488 = vadd.f32 %v1487, 0.5
    %v1489 = vtanh.pop %v1481
    %v1490 = vmul.f32 %v1481, 0.5
    %v1491 = vtanh.pop %v1490
    %v1492 = vmul.f32 %v1491, 0.5
    %v1493 = vadd.f32 %v1492, 0.5
    %v1494 = vmul.f32 %v1488, %v1347
    %v1495 = vmul.f32 %v1488, %v1489
    %1497 = vrot.lane.b32.xlu0 %v1495, 64
    %v1498 = vpop.permute.xlu0 %1497
    %v1500 = vadd.f32 %v1494, %v1498
    %v1501 = vtanh.pop %v1500
    %v1502 = vmul.f32 %v1493, %v1501
    %1504 = vrot.lane.b32.xlu0 %v1502, 64
    %v1505 = vpop.permute.xlu0 %1504
    %1507 = vst.msk [vmem:[#allocation3 + $0x1] sm:$0x1] %vm269, %v1505
    %v1508 = vpack.c.bf16 %v1431, %v1431
    %v1510 = vshrl.u32 %v1508, 16
    %1512 = vrot.lane.b32.xlu0 %v1510, 64
    %v1513 = vpop.permute.xlu0 %1512
    %v1515 = vsel %vm200, %v1513, 0
    %1517 = vmatprep.subr.bf16.mxu0 %v1119
    %1518 = vmatpush1.bf16.msra.mxu0 %v1118
    %1519 = vmatprep.subr.bf16.mxu0 %v1121
    %1520 = vmatpush1.bf16.msra.mxu0 %v1120
    %1521 = vmatprep.subr.bf16.mxu0 %v1123
    %1522 = vmatpush1.bf16.msra.mxu0 %v1122
    %1523 = vmatprep.subr.bf16.mxu0 %v1125
    %1524 = vmatpush1.bf16.msra.mxu0 %v1124
    %1525 = vmatprep.subr.bf16.mxu0 0
    %1526 = vmatpush1.bf16.msra.mxu0 0
    %1527 = vmatprep.subr.bf16.mxu0 0
    %1528 = vmatpush1.bf16.msra.mxu0 0
    %1529 = vmatprep.subr.bf16.mxu0 0
    %1530 = vmatpush1.bf16.msra.mxu0 0
    %1531 = vmatprep.subr.bf16.mxu0 0
    %1532 = vmatpush1.bf16.msra.mxu0 0
    %1533 = vmatprep.subr.bf16.mxu0 0
    %1534 = vmatpush1.bf16.msra.mxu0 0
    %1535 = vmatprep.subr.bf16.mxu0 0
    %1536 = vmatpush1.bf16.msra.mxu0 0
    %1537 = vmatprep.subr.bf16.mxu0 0
    %1538 = vmatpush1.bf16.msra.mxu0 0
    %1539 = vmatprep.subr.bf16.mxu0 0
    %1540 = vmatpush1.bf16.msra.mxu0 0
    %1541 = vmatprep.subr.bf16.mxu0 0
    %1542 = vmatpush1.bf16.msra.mxu0 0
    %1543 = vmatprep.subr.bf16.mxu0 0
    %1544 = vmatpush1.bf16.msra.mxu0 0
    %1545 = vmatprep.subr.bf16.mxu0 0
    %1546 = vmatpush1.bf16.msra.mxu0 0
    %1547 = vmatprep.subr.bf16.mxu0 0
    %1548 = vmatpush1.bf16.msra.mxu0 0
    %1549 = vmatprep.mubr.bf16.mxu0 0
    %1550 = vmatmul.mubr.bf16.gmra.mrb[0].mxu0 %v1515
    %v1551 = vpop.f32.mrb[0].mxu0
    %v1552 = vadd.f32 0.0, %v1551
    %v1553 = vpop.f32.mrb[0].mxu0
    %v1554 = vadd.f32 0.0, %v1553
    %v1555 = vpop.f32.mrb[0].mxu0
    %v1556 = vpop.f32.mrb[0].mxu0
    %1557 = vdwg.mxu0
    %v1560 = vrot.slane %v1552, 6
    %v1561 = vrot.slane %v1554, 6
    %v1564 = vadd.f32 %v1092, %v1560
    %v1565 = vadd.f32 %v1093, %v1561
    %v1566 = vmul.f32 %v1564, 0.5
    %v1567 = vtanh.pop %v1566
    %v1568 = vmul.f32 %v1567, 0.5
    %v1569 = vadd.f32 %v1568, 0.5
    %v1570 = vtanh.pop %v1565
    %v1571 = vmul.f32 %v1565, 0.5
    %v1572 = vtanh.pop %v1571
    %v1573 = vmul.f32 %v1572, 0.5
    %v1574 = vadd.f32 %v1573, 0.5
    %v1576 = vrot.slane %v1429, 7
    %v1578 = vmul.f32 %v1569, %v1576
    %v1579 = vmul.f32 %v1569, %v1570
    %1581 = vrot.lane.b32.xlu0 %v1579, 64
    %v1582 = vpop.permute.xlu0 %1581
    %v1584 = vadd.f32 %v1578, %v1582
    %v1585 = vtanh.pop %v1584
    %v1586 = vmul.f32 %v1574, %v1585
    %1588 = vrot.lane.b32.xlu0 %v1586, 64
    %v1589 = vpop.permute.xlu0 %1588
    %v1591 = vrot.slane %v1502, 6
    %v1593 = vsel %vm200, %v1589, %v1591
    %v1594 = vpack.c.bf16 %v1593, %v1593
    %v1596 = vrot.slane %v1594, 1
    %1598 = vmatprep.subr.bf16.mxu0 %v1250
    %1599 = vmatpush1.bf16.msra.mxu0 %v1249
    %1600 = vmatprep.subr.bf16.mxu0 %v1252
    %1601 = vmatpush1.bf16.msra.mxu0 %v1251
    %1602 = vmatprep.subr.bf16.mxu0 %v1254
    %1603 = vmatpush1.bf16.msra.mxu0 %v1253
    %1604 = vmatprep.subr.bf16.mxu0 %v1256
    %1605 = vmatpush1.bf16.msra.mxu0 %v1255
    %1606 = vmatprep.subr.bf16.mxu0 %v1258
    %1607 = vmatpush1.bf16.msra.mxu0 %v1257
    %1608 = vmatprep.subr.bf16.mxu0 %v1260
    %1609 = vmatpush1.bf16.msra.mxu0 %v1259
    %1610 = vmatprep.subr.bf16.mxu0 %v1262
    %1611 = vmatpush1.bf16.msra.mxu0 %v1261
    %1612 = vmatprep.subr.bf16.mxu0 %v1264
    %1613 = vmatpush1.bf16.msra.mxu0 %v1263
    %1614 = vmatprep.subr.bf16.mxu0 0
    %1615 = vmatpush1.bf16.msra.mxu0 0
    %1616 = vmatprep.subr.bf16.mxu0 0
    %1617 = vmatpush1.bf16.msra.mxu0 0
    %1618 = vmatprep.subr.bf16.mxu0 0
    %1619 = vmatpush1.bf16.msra.mxu0 0
    %1620 = vmatprep.subr.bf16.mxu0 0
    %1621 = vmatpush1.bf16.msra.mxu0 0
    %1622 = vmatprep.subr.bf16.mxu0 0
    %1623 = vmatpush1.bf16.msra.mxu0 0
    %1624 = vmatprep.subr.bf16.mxu0 0
    %1625 = vmatpush1.bf16.msra.mxu0 0
    %1626 = vmatprep.subr.bf16.mxu0 0
    %1627 = vmatpush1.bf16.msra.mxu0 0
    %1628 = vmatprep.subr.bf16.mxu0 0
    %1629 = vmatpush1.bf16.msra.mxu0 0
    %1630 = vmatprep.mubr.bf16.mxu0 0
    %1631 = vmatmul.mubr.bf16.gmra.mrb[0].mxu0 %v1596
    %v1632 = vpop.f32.mrb[0].mxu0
    %v1633 = vadd.f32 %v1284, %v1632
    %v1634 = vpop.f32.mrb[0].mxu0
    %v1635 = vadd.f32 %v1288, %v1634
    %v1636 = vpop.f32.mrb[0].mxu0
    %v1637 = vpop.f32.mrb[0].mxu0
    %1638 = vdwg.mxu0
    %v1639 = vmul.f32 %v1633, 0.5
    %v1640 = vtanh.pop %v1639
    %v1641 = vmul.f32 %v1640, 0.5
    %v1642 = vadd.f32 %v1641, 0.5
    %v1643 = vtanh.pop %v1635
    %v1644 = vmul.f32 %v1635, 0.5
    %v1645 = vtanh.pop %v1644
    %v1646 = vmul.f32 %v1645, 0.5
    %v1647 = vadd.f32 %v1646, 0.5
    %v1648 = vmul.f32 %v1642, %v1500
    %v1649 = vmul.f32 %v1642, %v1643
    %1651 = vrot.lane.b32.xlu0 %v1649, 64
    %v1652 = vpop.permute.xlu0 %1651
    %v1654 = vadd.f32 %v1648, %v1652
    %v1655 = vtanh.pop %v1654
    %v1656 = vmul.f32 %v1647, %v1655
    %1658 = vrot.lane.b32.xlu0 %v1656, 64
    %v1659 = vpop.permute.xlu0 %1658
    %1661 = vst.msk [vmem:[#allocation3 + $0x2] sm:$0x1] %vm269, %v1659
    %v1662 = vpack.c.bf16 %v1586, %v1586
    %v1664 = vrot.slane %v1662, 1
    %1665 = vrot.lane.b32.xlu0 %v1664, 64
    %v1666 = vpop.permute.xlu0 %1665
    %v1668 = vsel %vm200, %v1666, 0
    %1670 = vmatprep.subr.bf16.mxu0 %v1119
    %1671 = vmatpush1.bf16.msra.mxu0 %v1118
    %1672 = vmatprep.subr.bf16.mxu0 %v1121
    %1673 = vmatpush1.bf16.msra.mxu0 %v1120
    %1674 = vmatprep.subr.bf16.mxu0 %v1123
    %1675 = vmatpush1.bf16.msra.mxu0 %v1122
    %1676 = vmatprep.subr.bf16.mxu0 %v1125
    %1677 = vmatpush1.bf16.msra.mxu0 %v1124
    %1678 = vmatprep.subr.bf16.mxu0 0
    %1679 = vmatpush1.bf16.msra.mxu0 0
    %1680 = vmatprep.subr.bf16.mxu0 0
    %1681 = vmatpush1.bf16.msra.mxu0 0
    %1682 = vmatprep.subr.bf16.mxu0 0
    %1683 = vmatpush1.bf16.msra.mxu0 0
    %1684 = vmatprep.subr.bf16.mxu0 0
    %1685 = vmatpush1.bf16.msra.mxu0 0
    %1686 = vmatprep.subr.bf16.mxu0 0
    %1687 = vmatpush1.bf16.msra.mxu0 0
    %1688 = vmatprep.subr.bf16.mxu0 0
    %1689 = vmatpush1.bf16.msra.mxu0 0
    %1690 = vmatprep.subr.bf16.mxu0 0
    %1691 = vmatpush1.bf16.msra.mxu0 0
    %1692 = vmatprep.subr.bf16.mxu0 0
    %1693 = vmatpush1.bf16.msra.mxu0 0
    %1694 = vmatprep.subr.bf16.mxu0 0
    %1695 = vmatpush1.bf16.msra.mxu0 0
    %1696 = vmatprep.subr.bf16.mxu0 0
    %1697 = vmatpush1.bf16.msra.mxu0 0
    %1698 = vmatprep.subr.bf16.mxu0 0
    %1699 = vmatpush1.bf16.msra.mxu0 0
    %1700 = vmatprep.subr.bf16.mxu0 0
    %1701 = vmatpush1.bf16.msra.mxu0 0
    %1702 = vmatprep.mubr.bf16.mxu0 0
    %1703 = vmatmul.mubr.bf16.gmra.mrb[0].mxu0 %v1668
    %v1704 = vpop.f32.mrb[0].mxu0
    %v1705 = vadd.f32 0.0, %v1704
    %v1706 = vpop.f32.mrb[0].mxu0
    %v1707 = vadd.f32 0.0, %v1706
    %v1708 = vpop.f32.mrb[0].mxu0
    %v1709 = vpop.f32.mrb[0].mxu0
    %1710 = vdwg.mxu0
    %v1713 = vrot.slane %v1705, 5
    %v1714 = vrot.slane %v1707, 5
    %v1717 = vadd.f32 %v1092, %v1713
    %v1718 = vadd.f32 %v1093, %v1714
    %v1719 = vmul.f32 %v1717, 0.5
    %v1720 = vtanh.pop %v1719
    %v1721 = vmul.f32 %v1720, 0.5
    %v1722 = vadd.f32 %v1721, 0.5
    %v1723 = vtanh.pop %v1718
    %v1724 = vmul.f32 %v1718, 0.5
    %v1725 = vtanh.pop %v1724
    %v1726 = vmul.f32 %v1725, 0.5
    %v1727 = vadd.f32 %v1726, 0.5
    %v1729 = vrot.slane %v1584, 7
    %v1731 = vmul.f32 %v1722, %v1729
    %v1732 = vmul.f32 %v1722, %v1723
    %1734 = vrot.lane.b32.xlu0 %v1732, 64
    %v1735 = vpop.permute.xlu0 %1734
    %v1737 = vadd.f32 %v1731, %v1735
    %v1738 = vtanh.pop %v1737
    %v1739 = vmul.f32 %v1727, %v1738
    %1741 = vrot.lane.b32.xlu0 %v1739, 64
    %v1742 = vpop.permute.xlu0 %1741
    %v1744 = vrot.slane %v1656, 5
    %v1746 = vsel %vm200, %v1742, %v1744
    %v1747 = vpack.c.bf16 %v1746, %v1746
    %v1749 = vshrl.u32 %v1747, 16
    %v1751 = vrot.slane %v1749, 1
    %1753 = vmatprep.subr.bf16.mxu0 %v1250
    %1754 = vmatpush1.bf16.msra.mxu0 %v1249
    %1755 = vmatprep.subr.bf16.mxu0 %v1252
    %1756 = vmatpush1.bf16.msra.mxu0 %v1251
    %1757 = vmatprep.subr.bf16.mxu0 %v1254
    %1758 = vmatpush1.bf16.msra.mxu0 %v1253
    %1759 = vmatprep.subr.bf16.mxu0 %v1256
    %1760 = vmatpush1.bf16.msra.mxu0 %v1255
    %1761 = vmatprep.subr.bf16.mxu0 %v1258
    %1762 = vmatpush1.bf16.msra.mxu0 %v1257
    %1763 = vmatprep.subr.bf16.mxu0 %v1260
    %1764 = vmatpush1.bf16.msra.mxu0 %v1259
    %1765 = vmatprep.subr.bf16.mxu0 %v1262
    %1766 = vmatpush1.bf16.msra.mxu0 %v1261
    %1767 = vmatprep.subr.bf16.mxu0 %v1264
    %1768 = vmatpush1.bf16.msra.mxu0 %v1263
    %1769 = vmatprep.subr.bf16.mxu0 0
    %1770 = vmatpush1.bf16.msra.mxu0 0
    %1771 = vmatprep.subr.bf16.mxu0 0
    %1772 = vmatpush1.bf16.msra.mxu0 0
    %1773 = vmatprep.subr.bf16.mxu0 0
    %1774 = vmatpush1.bf16.msra.mxu0 0
    %1775 = vmatprep.subr.bf16.mxu0 0
    %1776 = vmatpush1.bf16.msra.mxu0 0
    %1777 = vmatprep.subr.bf16.mxu0 0
    %1778 = vmatpush1.bf16.msra.mxu0 0
    %1779 = vmatprep.subr.bf16.mxu0 0
    %1780 = vmatpush1.bf16.msra.mxu0 0
    %1781 = vmatprep.subr.bf16.mxu0 0
    %1782 = vmatpush1.bf16.msra.mxu0 0
    %1783 = vmatprep.subr.bf16.mxu0 0
    %1784 = vmatpush1.bf16.msra.mxu0 0
    %1785 = vmatprep.mubr.bf16.mxu0 0
    %1786 = vmatmul.mubr.bf16.gmra.mrb[0].mxu0 %v1751
    %v1787 = vpop.f32.mrb[0].mxu0
    %v1788 = vadd.f32 %v1284, %v1787
    %v1789 = vpop.f32.mrb[0].mxu0
    %v1790 = vadd.f32 %v1288, %v1789
    %v1791 = vpop.f32.mrb[0].mxu0
    %v1792 = vpop.f32.mrb[0].mxu0
    %1793 = vdwg.mxu0
    %v1794 = vmul.f32 %v1788, 0.5
    %v1795 = vtanh.pop %v1794
    %v1796 = vmul.f32 %v1795, 0.5
    %v1797 = vadd.f32 %v1796, 0.5
    %v1798 = vtanh.pop %v1790
    %v1799 = vmul.f32 %v1790, 0.5
    %v1800 = vtanh.pop %v1799
    %v1801 = vmul.f32 %v1800, 0.5
    %v1802 = vadd.f32 %v1801, 0.5
    %v1803 = vmul.f32 %v1797, %v1654
    %v1804 = vmul.f32 %v1797, %v1798
    %1806 = vrot.lane.b32.xlu0 %v1804, 64
    %v1807 = vpop.permute.xlu0 %1806
    %v1809 = vadd.f32 %v1803, %v1807
    %v1810 = vtanh.pop %v1809
    %v1811 = vmul.f32 %v1802, %v1810
    %1813 = vrot.lane.b32.xlu0 %v1811, 64
    %v1814 = vpop.permute.xlu0 %1813
    %1816 = vst.msk [vmem:[#allocation3 + $0x3] sm:$0x1] %vm269, %v1814
    %v1817 = vpack.c.bf16 %v1739, %v1739
    %v1819 = vshrl.u32 %v1817, 16
    %v1821 = vrot.slane %v1819, 1
    %1822 = vrot.lane.b32.xlu0 %v1821, 64
    %v1823 = vpop.permute.xlu0 %1822
    %v1825 = vsel %vm200, %v1823, 0
    %1827 = vmatprep.subr.bf16.mxu0 %v1119
    %1828 = vmatpush1.bf16.msra.mxu0 %v1118
    %1829 = vmatprep.subr.bf16.mxu0 %v1121
    %1830 = vmatpush1.bf16.msra.mxu0 %v1120
    %1831 = vmatprep.subr.bf16.mxu0 %v1123
    %1832 = vmatpush1.bf16.msra.mxu0 %v1122
    %1833 = vmatprep.subr.bf16.mxu0 %v1125
    %1834 = vmatpush1.bf16.msra.mxu0 %v1124
    %1835 = vmatprep.subr.bf16.mxu0 0
    %1836 = vmatpush1.bf16.msra.mxu0 0
    %1837 = vmatprep.subr.bf16.mxu0 0
    %1838 = vmatpush1.bf16.msra.mxu0 0
    %1839 = vmatprep.subr.bf16.mxu0 0
    %1840 = vmatpush1.bf16.msra.mxu0 0
    %1841 = vmatprep.subr.bf16.mxu0 0
    %1842 = vmatpush1.bf16.msra.mxu0 0
    %1843 = vmatprep.subr.bf16.mxu0 0
    %1844 = vmatpush1.bf16.msra.mxu0 0
    %1845 = vmatprep.subr.bf16.mxu0 0
    %1846 = vmatpush1.bf16.msra.mxu0 0
    %1847 = vmatprep.subr.bf16.mxu0 0
    %1848 = vmatpush1.bf16.msra.mxu0 0
    %1849 = vmatprep.subr.bf16.mxu0 0
    %1850 = vmatpush1.bf16.msra.mxu0 0
    %1851 = vmatprep.subr.bf16.mxu0 0
    %1852 = vmatpush1.bf16.msra.mxu0 0
    %1853 = vmatprep.subr.bf16.mxu0 0
    %1854 = vmatpush1.bf16.msra.mxu0 0
    %1855 = vmatprep.subr.bf16.mxu0 0
    %1856 = vmatpush1.bf16.msra.mxu0 0
    %1857 = vmatprep.subr.bf16.mxu0 0
    %1858 = vmatpush1.bf16.msra.mxu0 0
    %1859 = vmatprep.mubr.bf16.mxu0 0
    %1860 = vmatmul.mubr.bf16.gmra.mrb[0].mxu0 %v1825
    %v1861 = vpop.f32.mrb[0].mxu0
    %v1862 = vadd.f32 0.0, %v1861
    %v1863 = vpop.f32.mrb[0].mxu0
    %v1864 = vadd.f32 0.0, %v1863
    %v1865 = vpop.f32.mrb[0].mxu0
    %v1866 = vpop.f32.mrb[0].mxu0
    %1867 = vdwg.mxu0
    %v1870 = vrot.slane %v1862, 4
    %v1871 = vrot.slane %v1864, 4
    %v1874 = vadd.f32 %v1092, %v1870
    %v1875 = vadd.f32 %v1093, %v1871
    %v1876 = vmul.f32 %v1874, 0.5
    %v1877 = vtanh.pop %v1876
    %v1878 = vmul.f32 %v1877, 0.5
    %v1879 = vadd.f32 %v1878, 0.5
    %v1880 = vtanh.pop %v1875
    %v1881 = vmul.f32 %v1875, 0.5
    %v1882 = vtanh.pop %v1881
    %v1883 = vmul.f32 %v1882, 0.5
    %v1884 = vadd.f32 %v1883, 0.5
    %v1886 = vrot.slane %v1737, 7
    %v1888 = vmul.f32 %v1879, %v1886
    %v1889 = vmul.f32 %v1879, %v1880
    %1891 = vrot.lane.b32.xlu0 %v1889, 64
    %v1892 = vpop.permute.xlu0 %1891
    %v1894 = vadd.f32 %v1888, %v1892
    %v1895 = vtanh.pop %v1894
    %v1896 = vmul.f32 %v1884, %v1895
    %1898 = vrot.lane.b32.xlu0 %v1896, 64
    %v1899 = vpop.permute.xlu0 %1898
    %v1901 = vrot.slane %v1811, 4
    %v1903 = vsel %vm200, %v1899, %v1901
    %v1904 = vpack.c.bf16 %v1903, %v1903
    %v1906 = vrot.slane %v1904, 2
    %1908 = vmatprep.subr.bf16.mxu0 %v1250
    %1909 = vmatpush1.bf16.msra.mxu0 %v1249
    %1910 = vmatprep.subr.bf16.mxu0 %v1252
    %1911 = vmatpush1.bf16.msra.mxu0 %v1251
    %1912 = vmatprep.subr.bf16.mxu0 %v1254
    %1913 = vmatpush1.bf16.msra.mxu0 %v1253
    %1914 = vmatprep.subr.bf16.mxu0 %v1256
    %1915 = vmatpush1.bf16.msra.mxu0 %v1255
    %1916 = vmatprep.subr.bf16.mxu0 %v1258
    %1917 = vmatpush1.bf16.msra.mxu0 %v1257
    %1918 = vmatprep.subr.bf16.mxu0 %v1260
    %1919 = vmatpush1.bf16.msra.mxu0 %v1259
    %1920 = vmatprep.subr.bf16.mxu0 %v1262
    %1921 = vmatpush1.bf16.msra.mxu0 %v1261
    %1922 = vmatprep.subr.bf16.mxu0 %v1264
    %1923 = vmatpush1.bf16.msra.mxu0 %v1263
    %1924 = vmatprep.subr.bf16.mxu0 0
    %1925 = vmatpush1.bf16.msra.mxu0 0
    %1926 = vmatprep.subr.bf16.mxu0 0
    %1927 = vmatpush1.bf16.msra.mxu0 0
    %1928 = vmatprep.subr.bf16.mxu0 0
    %1929 = vmatpush1.bf16.msra.mxu0 0
    %1930 = vmatprep.subr.bf16.mxu0 0
    %1931 = vmatpush1.bf16.msra.mxu0 0
    %1932 = vmatprep.subr.bf16.mxu0 0
    %1933 = vmatpush1.bf16.msra.mxu0 0
    %1934 = vmatprep.subr.bf16.mxu0 0
    %1935 = vmatpush1.bf16.msra.mxu0 0
    %1936 = vmatprep.subr.bf16.mxu0 0
    %1937 = vmatpush1.bf16.msra.mxu0 0
    %1938 = vmatprep.subr.bf16.mxu0 0
    %1939 = vmatpush1.bf16.msra.mxu0 0
    %1940 = vmatprep.mubr.bf16.mxu0 0
    %1941 = vmatmul.mubr.bf16.gmra.mrb[0].mxu0 %v1906
    %v1942 = vpop.f32.mrb[0].mxu0
    %v1943 = vadd.f32 %v1284, %v1942
    %v1944 = vpop.f32.mrb[0].mxu0
    %v1945 = vadd.f32 %v1288, %v1944
    %v1946 = vpop.f32.mrb[0].mxu0
    %v1947 = vpop.f32.mrb[0].mxu0
    %1948 = vdwg.mxu0
    %v1949 = vmul.f32 %v1943, 0.5
    %v1950 = vtanh.pop %v1949
    %v1951 = vmul.f32 %v1950, 0.5
    %v1952 = vadd.f32 %v1951, 0.5
    %v1953 = vtanh.pop %v1945
    %v1954 = vmul.f32 %v1945, 0.5
    %v1955 = vtanh.pop %v1954
    %v1956 = vmul.f32 %v1955, 0.5
    %v1957 = vadd.f32 %v1956, 0.5
    %v1958 = vmul.f32 %v1952, %v1809
    %v1959 = vmul.f32 %v1952, %v1953
    %1961 = vrot.lane.b32.xlu0 %v1959, 64
    %v1962 = vpop.permute.xlu0 %1961
    %v1964 = vadd.f32 %v1958, %v1962
    %v1965 = vtanh.pop %v1964
    %v1966 = vmul.f32 %v1957, %v1965
    %1968 = vrot.lane.b32.xlu0 %v1966, 64
    %v1969 = vpop.permute.xlu0 %1968
    %1971 = vst.msk [vmem:[#allocation3 + $0x4] sm:$0x1] %vm269, %v1969
    %v1972 = vpack.c.bf16 %v1896, %v1896
    %v1974 = vrot.slane %v1972, 2
    %1975 = vrot.lane.b32.xlu0 %v1974, 64
    %v1976 = vpop.permute.xlu0 %1975
    %v1978 = vsel %vm200, %v1976, 0
    %1980 = vmatprep.subr.bf16.mxu0 %v1119
    %1981 = vmatpush1.bf16.msra.mxu0 %v1118
    %1982 = vmatprep.subr.bf16.mxu0 %v1121
    %1983 = vmatpush1.bf16.msra.mxu0 %v1120
    %1984 = vmatprep.subr.bf16.mxu0 %v1123
    %1985 = vmatpush1.bf16.msra.mxu0 %v1122
    %1986 = vmatprep.subr.bf16.mxu0 %v1125
    %1987 = vmatpush1.bf16.msra.mxu0 %v1124
    %1988 = vmatprep.subr.bf16.mxu0 0
    %1989 = vmatpush1.bf16.msra.mxu0 0
    %1990 = vmatprep.subr.bf16.mxu0 0
    %1991 = vmatpush1.bf16.msra.mxu0 0
    %1992 = vmatprep.subr.bf16.mxu0 0
    %1993 = vmatpush1.bf16.msra.mxu0 0
    %1994 = vmatprep.subr.bf16.mxu0 0
    %1995 = vmatpush1.bf16.msra.mxu0 0
    %1996 = vmatprep.subr.bf16.mxu0 0
    %1997 = vmatpush1.bf16.msra.mxu0 0
    %1998 = vmatprep.subr.bf16.mxu0 0
    %1999 = vmatpush1.bf16.msra.mxu0 0
    %2000 = vmatprep.subr.bf16.mxu0 0
    %2001 = vmatpush1.bf16.msra.mxu0 0
    %2002 = vmatprep.subr.bf16.mxu0 0
    %2003 = vmatpush1.bf16.msra.mxu0 0
    %2004 = vmatprep.subr.bf16.mxu0 0
    %2005 = vmatpush1.bf16.msra.mxu0 0
    %2006 = vmatprep.subr.bf16.mxu0 0
    %2007 = vmatpush1.bf16.msra.mxu0 0
    %2008 = vmatprep.subr.bf16.mxu0 0
    %2009 = vmatpush1.bf16.msra.mxu0 0
    %2010 = vmatprep.subr.bf16.mxu0 0
    %2011 = vmatpush1.bf16.msra.mxu0 0
    %2012 = vmatprep.mubr.bf16.mxu0 0
    %2013 = vmatmul.mubr.bf16.gmra.mrb[0].mxu0 %v1978
    %v2014 = vpop.f32.mrb[0].mxu0
    %v2015 = vadd.f32 0.0, %v2014
    %v2016 = vpop.f32.mrb[0].mxu0
    %v2017 = vadd.f32 0.0, %v2016
    %v2018 = vpop.f32.mrb[0].mxu0
    %v2019 = vpop.f32.mrb[0].mxu0
    %2020 = vdwg.mxu0
    %v2023 = vrot.slane %v2015, 3
    %v2024 = vrot.slane %v2017, 3
    %v2027 = vadd.f32 %v1092, %v2023
    %v2028 = vadd.f32 %v1093, %v2024
    %v2029 = vmul.f32 %v2027, 0.5
    %v2030 = vtanh.pop %v2029
    %v2031 = vmul.f32 %v2030, 0.5
    %v2032 = vadd.f32 %v2031, 0.5
    %v2033 = vtanh.pop %v2028
    %v2034 = vmul.f32 %v2028, 0.5
    %v2035 = vtanh.pop %v2034
    %v2036 = vmul.f32 %v2035, 0.5
    %v2037 = vadd.f32 %v2036, 0.5
    %v2039 = vrot.slane %v1894, 7
    %v2041 = vmul.f32 %v2032, %v2039
    %v2042 = vmul.f32 %v2032, %v2033
    %2044 = vrot.lane.b32.xlu0 %v2042, 64
    %v2045 = vpop.permute.xlu0 %2044
    %v2047 = vadd.f32 %v2041, %v2045
    %v2048 = vtanh.pop %v2047
    %v2049 = vmul.f32 %v2037, %v2048
    %2051 = vrot.lane.b32.xlu0 %v2049, 64
    %v2052 = vpop.permute.xlu0 %2051
    %v2054 = vrot.slane %v1966, 3
    %v2056 = vsel %vm200, %v2052, %v2054
    %v2057 = vpack.c.bf16 %v2056, %v2056
    %v2059 = vshrl.u32 %v2057, 16
    %v2061 = vrot.slane %v2059, 2
    %2063 = vmatprep.subr.bf16.mxu0 %v1250
    %2064 = vmatpush1.bf16.msra.mxu0 %v1249
    %2065 = vmatprep.subr.bf16.mxu0 %v1252
    %2066 = vmatpush1.bf16.msra.mxu0 %v1251
    %2067 = vmatprep.subr.bf16.mxu0 %v1254
    %2068 = vmatpush1.bf16.msra.mxu0 %v1253
    %2069 = vmatprep.subr.bf16.mxu0 %v1256
    %2070 = vmatpush1.bf16.msra.mxu0 %v1255
    %2071 = vmatprep.subr.bf16.mxu0 %v1258
    %2072 = vmatpush1.bf16.msra.mxu0 %v1257
    %2073 = vmatprep.subr.bf16.mxu0 %v1260
    %2074 = vmatpush1.bf16.msra.mxu0 %v1259
    %2075 = vmatprep.subr.bf16.mxu0 %v1262
    %2076 = vmatpush1.bf16.msra.mxu0 %v1261
    %2077 = vmatprep.subr.bf16.mxu0 %v1264
    %2078 = vmatpush1.bf16.msra.mxu0 %v1263
    %2079 = vmatprep.subr.bf16.mxu0 0
    %2080 = vmatpush1.bf16.msra.mxu0 0
    %2081 = vmatprep.subr.bf16.mxu0 0
    %2082 = vmatpush1.bf16.msra.mxu0 0
    %2083 = vmatprep.subr.bf16.mxu0 0
    %2084 = vmatpush1.bf16.msra.mxu0 0
    %2085 = vmatprep.subr.bf16.mxu0 0
    %2086 = vmatpush1.bf16.msra.mxu0 0
    %2087 = vmatprep.subr.bf16.mxu0 0
    %2088 = vmatpush1.bf16.msra.mxu0 0
    %2089 = vmatprep.subr.bf16.mxu0 0
    %2090 = vmatpush1.bf16.msra.mxu0 0
    %2091 = vmatprep.subr.bf16.mxu0 0
    %2092 = vmatpush1.bf16.msra.mxu0 0
    %2093 = vmatprep.subr.bf16.mxu0 0
    %2094 = vmatpush1.bf16.msra.mxu0 0
    %2095 = vmatprep.mubr.bf16.mxu0 0
    %2096 = vmatmul.mubr.bf16.gmra.mrb[0].mxu0 %v2061
    %v2097 = vpop.f32.mrb[0].mxu0
    %v2098 = vadd.f32 %v1284, %v2097
    %v2099 = vpop.f32.mrb[0].mxu0
    %v2100 = vadd.f32 %v1288, %v2099
    %v2101 = vpop.f32.mrb[0].mxu0
    %v2102 = vpop.f32.mrb[0].mxu0
    %2103 = vdwg.mxu0
    %v2104 = vmul.f32 %v2098, 0.5
    %v2105 = vtanh.pop %v2104
    %v2106 = vmul.f32 %v2105, 0.5
    %v2107 = vadd.f32 %v2106, 0.5
    %v2108 = vtanh.pop %v2100
    %v2109 = vmul.f32 %v2100, 0.5
    %v2110 = vtanh.pop %v2109
    %v2111 = vmul.f32 %v2110, 0.5
    %v2112 = vadd.f32 %v2111, 0.5
    %v2113 = vmul.f32 %v2107, %v1964
    %v2114 = vmul.f32 %v2107, %v2108
    %2116 = vrot.lane.b32.xlu0 %v2114, 64
    %v2117 = vpop.permute.xlu0 %2116
    %v2119 = vadd.f32 %v2113, %v2117
    %v2120 = vtanh.pop %v2119
    %v2121 = vmul.f32 %v2112, %v2120
    %2123 = vrot.lane.b32.xlu0 %v2121, 64
    %v2124 = vpop.permute.xlu0 %2123
    %2126 = vst.msk [vmem:[#allocation3 + $0x5] sm:$0x1] %vm269, %v2124
    %v2127 = vpack.c.bf16 %v2049, %v2049
    %v2129 = vshrl.u32 %v2127, 16
    %v2131 = vrot.slane %v2129, 2
    %2132 = vrot.lane.b32.xlu0 %v2131, 64
    %v2133 = vpop.permute.xlu0 %2132
    %v2135 = vsel %vm200, %v2133, 0
    %2137 = vmatprep.subr.bf16.mxu0 %v1119
    %2138 = vmatpush1.bf16.msra.mxu0 %v1118
    %2139 = vmatprep.subr.bf16.mxu0 %v1121
    %2140 = vmatpush1.bf16.msra.mxu0 %v1120
    %2141 = vmatprep.subr.bf16.mxu0 %v1123
    %2142 = vmatpush1.bf16.msra.mxu0 %v1122
    %2143 = vmatprep.subr.bf16.mxu0 %v1125
    %2144 = vmatpush1.bf16.msra.mxu0 %v1124
    %2145 = vmatprep.subr.bf16.mxu0 0
    %2146 = vmatpush1.bf16.msra.mxu0 0
    %2147 = vmatprep.subr.bf16.mxu0 0
    %2148 = vmatpush1.bf16.msra.mxu0 0
    %2149 = vmatprep.subr.bf16.mxu0 0
    %2150 = vmatpush1.bf16.msra.mxu0 0
    %2151 = vmatprep.subr.bf16.mxu0 0
    %2152 = vmatpush1.bf16.msra.mxu0 0
    %2153 = vmatprep.subr.bf16.mxu0 0
    %2154 = vmatpush1.bf16.msra.mxu0 0
    %2155 = vmatprep.subr.bf16.mxu0 0
    %2156 = vmatpush1.bf16.msra.mxu0 0
    %2157 = vmatprep.subr.bf16.mxu0 0
    %2158 = vmatpush1.bf16.msra.mxu0 0
    %2159 = vmatprep.subr.bf16.mxu0 0
    %2160 = vmatpush1.bf16.msra.mxu0 0
    %2161 = vmatprep.subr.bf16.mxu0 0
    %2162 = vmatpush1.bf16.msra.mxu0 0
    %2163 = vmatprep.subr.bf16.mxu0 0
    %2164 = vmatpush1.bf16.msra.mxu0 0
    %2165 = vmatprep.subr.bf16.mxu0 0
    %2166 = vmatpush1.bf16.msra.mxu0 0
    %2167 = vmatprep.subr.bf16.mxu0 0
    %2168 = vmatpush1.bf16.msra.mxu0 0
    %2169 = vmatprep.mubr.bf16.mxu0 0
    %2170 = vmatmul.mubr.bf16.gmra.mrb[0].mxu0 %v2135
    %v2171 = vpop.f32.mrb[0].mxu0
    %v2172 = vadd.f32 0.0, %v2171
    %v2173 = vpop.f32.mrb[0].mxu0
    %v2174 = vadd.f32 0.0, %v2173
    %v2175 = vpop.f32.mrb[0].mxu0
    %v2176 = vpop.f32.mrb[0].mxu0
    %2177 = vdwg.mxu0
    %v2180 = vrot.slane %v2172, 2
    %v2181 = vrot.slane %v2174, 2
    %v2184 = vadd.f32 %v1092, %v2180
    %v2185 = vadd.f32 %v1093, %v2181
    %v2186 = vmul.f32 %v2184, 0.5
    %v2187 = vtanh.pop %v2186
    %v2188 = vmul.f32 %v2187, 0.5
    %v2189 = vadd.f32 %v2188, 0.5
    %v2190 = vtanh.pop %v2185
    %v2191 = vmul.f32 %v2185, 0.5
    %v2192 = vtanh.pop %v2191
    %v2193 = vmul.f32 %v2192, 0.5
    %v2194 = vadd.f32 %v2193, 0.5
    %v2196 = vrot.slane %v2047, 7
    %v2198 = vmul.f32 %v2189, %v2196
    %v2199 = vmul.f32 %v2189, %v2190
    %2201 = vrot.lane.b32.xlu0 %v2199, 64
    %v2202 = vpop.permute.xlu0 %2201
    %v2204 = vadd.f32 %v2198, %v2202
    %v2205 = vtanh.pop %v2204
    %v2206 = vmul.f32 %v2194, %v2205
    %2208 = vrot.lane.b32.xlu0 %v2206, 64
    %v2209 = vpop.permute.xlu0 %2208
    %v2211 = vrot.slane %v2121, 2
    %v2213 = vsel %vm200, %v2209, %v2211
    %v2214 = vpack.c.bf16 %v2213, %v2213
    %v2216 = vrot.slane %v2214, 3
    %2218 = vmatprep.subr.bf16.mxu0 %v1250
    %2219 = vmatpush1.bf16.msra.mxu0 %v1249
    %2220 = vmatprep.subr.bf16.mxu0 %v1252
    %2221 = vmatpush1.bf16.msra.mxu0 %v1251
    %2222 = vmatprep.subr.bf16.mxu0 %v1254
    %2223 = vmatpush1.bf16.msra.mxu0 %v1253
    %2224 = vmatprep.subr.bf16.mxu0 %v1256
    %2225 = vmatpush1.bf16.msra.mxu0 %v1255
    %2226 = vmatprep.subr.bf16.mxu0 %v1258
    %2227 = vmatpush1.bf16.msra.mxu0 %v1257
    %2228 = vmatprep.subr.bf16.mxu0 %v1260
    %2229 = vmatpush1.bf16.msra.mxu0 %v1259
    %2230 = vmatprep.subr.bf16.mxu0 %v1262
    %2231 = vmatpush1.bf16.msra.mxu0 %v1261
    %2232 = vmatprep.subr.bf16.mxu0 %v1264
    %2233 = vmatpush1.bf16.msra.mxu0 %v1263
    %2234 = vmatprep.subr.bf16.mxu0 0
    %2235 = vmatpush1.bf16.msra.mxu0 0
    %2236 = vmatprep.subr.bf16.mxu0 0
    %2237 = vmatpush1.bf16.msra.mxu0 0
    %2238 = vmatprep.subr.bf16.mxu0 0
    %2239 = vmatpush1.bf16.msra.mxu0 0
    %2240 = vmatprep.subr.bf16.mxu0 0
    %2241 = vmatpush1.bf16.msra.mxu0 0
    %2242 = vmatprep.subr.bf16.mxu0 0
    %2243 = vmatpush1.bf16.msra.mxu0 0
    %2244 = vmatprep.subr.bf16.mxu0 0
    %2245 = vmatpush1.bf16.msra.mxu0 0
    %2246 = vmatprep.subr.bf16.mxu0 0
    %2247 = vmatpush1.bf16.msra.mxu0 0
    %2248 = vmatprep.subr.bf16.mxu0 0
    %2249 = vmatpush1.bf16.msra.mxu0 0
    %2250 = vmatprep.mubr.bf16.mxu0 0
    %2251 = vmatmul.mubr.bf16.gmra.mrb[0].mxu0 %v2216
    %v2252 = vpop.f32.mrb[0].mxu0
    %v2253 = vadd.f32 %v1284, %v2252
    %v2254 = vpop.f32.mrb[0].mxu0
    %v2255 = vadd.f32 %v1288, %v2254
    %v2256 = vpop.f32.mrb[0].mxu0
    %v2257 = vpop.f32.mrb[0].mxu0
    %2258 = vdwg.mxu0
    %v2259 = vmul.f32 %v2253, 0.5
    %v2260 = vtanh.pop %v2259
    %v2261 = vmul.f32 %v2260, 0.5
    %v2262 = vadd.f32 %v2261, 0.5
    %v2263 = vtanh.pop %v2255
    %v2264 = vmul.f32 %v2255, 0.5
    %v2265 = vtanh.pop %v2264
    %v2266 = vmul.f32 %v2265, 0.5
    %v2267 = vadd.f32 %v2266, 0.5
    %v2268 = vmul.f32 %v2262, %v2119
    %v2269 = vmul.f32 %v2262, %v2263
    %2271 = vrot.lane.b32.xlu0 %v2269, 64
    %v2272 = vpop.permute.xlu0 %2271
    %v2274 = vadd.f32 %v2268, %v2272
    %v2275 = vtanh.pop %v2274
    %v2276 = vmul.f32 %v2267, %v2275
    %2278 = vrot.lane.b32.xlu0 %v2276, 64
    %v2279 = vpop.permute.xlu0 %2278
    %2281 = vst.msk [vmem:[#allocation3 + $0x6] sm:$0x1] %vm269, %v2279
    %v2282 = vpack.c.bf16 %v2206, %v2206
    %v2284 = vrot.slane %v2282, 3
    %2285 = vrot.lane.b32.xlu0 %v2284, 64
    %v2286 = vpop.permute.xlu0 %2285
    %v2288 = vsel %vm200, %v2286, 0
    %2290 = vmatprep.subr.bf16.mxu0 %v1119
    %2291 = vmatpush1.bf16.msra.mxu0 %v1118
    %2292 = vmatprep.subr.bf16.mxu0 %v1121
    %2293 = vmatpush1.bf16.msra.mxu0 %v1120
    %2294 = vmatprep.subr.bf16.mxu0 %v1123
    %2295 = vmatpush1.bf16.msra.mxu0 %v1122
    %2296 = vmatprep.subr.bf16.mxu0 %v1125
    %2297 = vmatpush1.bf16.msra.mxu0 %v1124
    %2298 = vmatprep.subr.bf16.mxu0 0
    %2299 = vmatpush1.bf16.msra.mxu0 0
    %2300 = vmatprep.subr.bf16.mxu0 0
    %2301 = vmatpush1.bf16.msra.mxu0 0
    %2302 = vmatprep.subr.bf16.mxu0 0
    %2303 = vmatpush1.bf16.msra.mxu0 0
    %2304 = vmatprep.subr.bf16.mxu0 0
    %2305 = vmatpush1.bf16.msra.mxu0 0
    %2306 = vmatprep.subr.bf16.mxu0 0
    %2307 = vmatpush1.bf16.msra.mxu0 0
    %2308 = vmatprep.subr.bf16.mxu0 0
    %2309 = vmatpush1.bf16.msra.mxu0 0
    %2310 = vmatprep.subr.bf16.mxu0 0
    %2311 = vmatpush1.bf16.msra.mxu0 0
    %2312 = vmatprep.subr.bf16.mxu0 0
    %2313 = vmatpush1.bf16.msra.mxu0 0
    %2314 = vmatprep.subr.bf16.mxu0 0
    %2315 = vmatpush1.bf16.msra.mxu0 0
    %2316 = vmatprep.subr.bf16.mxu0 0
    %2317 = vmatpush1.bf16.msra.mxu0 0
    %2318 = vmatprep.subr.bf16.mxu0 0
    %2319 = vmatpush1.bf16.msra.mxu0 0
    %2320 = vmatprep.subr.bf16.mxu0 0
    %2321 = vmatpush1.bf16.msra.mxu0 0
    %2322 = vmatprep.mubr.bf16.mxu0 0
    %2323 = vmatmul.mubr.bf16.gmra.mrb[0].mxu0 %v2288
    %v2324 = vpop.f32.mrb[0].mxu0
    %v2325 = vadd.f32 0.0, %v2324
    %v2326 = vpop.f32.mrb[0].mxu0
    %v2327 = vadd.f32 0.0, %v2326
    %v2328 = vpop.f32.mrb[0].mxu0
    %v2329 = vpop.f32.mrb[0].mxu0
    %2330 = vdwg.mxu0
    %v2333 = vrot.slane %v2325, 1
    %v2334 = vrot.slane %v2327, 1
    %v2337 = vadd.f32 %v1092, %v2333
    %v2338 = vadd.f32 %v1093, %v2334
    %v2339 = vmul.f32 %v2337, 0.5
    %v2340 = vtanh.pop %v2339
    %v2341 = vmul.f32 %v2340, 0.5
    %v2342 = vadd.f32 %v2341, 0.5
    %v2343 = vtanh.pop %v2338
    %v2344 = vmul.f32 %v2338, 0.5
    %v2345 = vtanh.pop %v2344
    %v2346 = vmul.f32 %v2345, 0.5
    %v2347 = vadd.f32 %v2346, 0.5
    %v2349 = vrot.slane %v2204, 7
    %v2351 = vmul.f32 %v2342, %v2349
    %v2352 = vmul.f32 %v2342, %v2343
    %2354 = vrot.lane.b32.xlu0 %v2352, 64
    %v2355 = vpop.permute.xlu0 %2354
    %v2357 = vadd.f32 %v2351, %v2355
    %v2358 = vtanh.pop %v2357
    %v2359 = vmul.f32 %v2347, %v2358
    %2361 = vrot.lane.b32.xlu0 %v2359, 64
    %v2362 = vpop.permute.xlu0 %2361
    %v2364 = vrot.slane %v2276, 1
    %v2366 = vsel %vm200, %v2362, %v2364
    %v2367 = vpack.c.bf16 %v2366, %v2366
    %v2369 = vshrl.u32 %v2367, 16
    %v2371 = vrot.slane %v2369, 3
    %2373 = vmatprep.subr.bf16.mxu0 %v1250
    %2374 = vmatpush1.bf16.msra.mxu0 %v1249
    %2375 = vmatprep.subr.bf16.mxu0 %v1252
    %2376 = vmatpush1.bf16.msra.mxu0 %v1251
    %2377 = vmatprep.subr.bf16.mxu0 %v1254
    %2378 = vmatpush1.bf16.msra.mxu0 %v1253
    %2379 = vmatprep.subr.bf16.mxu0 %v1256
    %2380 = vmatpush1.bf16.msra.mxu0 %v1255
    %2381 = vmatprep.subr.bf16.mxu0 %v1258
    %2382 = vmatpush1.bf16.msra.mxu0 %v1257
    %2383 = vmatprep.subr.bf16.mxu0 %v1260
    %2384 = vmatpush1.bf16.msra.mxu0 %v1259
    %2385 = vmatprep.subr.bf16.mxu0 %v1262
    %2386 = vmatpush1.bf16.msra.mxu0 %v1261
    %2387 = vmatprep.subr.bf16.mxu0 %v1264
    %2388 = vmatpush1.bf16.msra.mxu0 %v1263
    %2389 = vmatprep.subr.bf16.mxu0 0
    %2390 = vmatpush1.bf16.msra.mxu0 0
    %2391 = vmatprep.subr.bf16.mxu0 0
    %2392 = vmatpush1.bf16.msra.mxu0 0
    %2393 = vmatprep.subr.bf16.mxu0 0
    %2394 = vmatpush1.bf16.msra.mxu0 0
    %2395 = vmatprep.subr.bf16.mxu0 0
    %2396 = vmatpush1.bf16.msra.mxu0 0
    %2397 = vmatprep.subr.bf16.mxu0 0
    %2398 = vmatpush1.bf16.msra.mxu0 0
    %2399 = vmatprep.subr.bf16.mxu0 0
    %2400 = vmatpush1.bf16.msra.mxu0 0
    %2401 = vmatprep.subr.bf16.mxu0 0
    %2402 = vmatpush1.bf16.msra.mxu0 0
    %2403 = vmatprep.subr.bf16.mxu0 0
    %2404 = vmatpush1.bf16.msra.mxu0 0
    %2405 = vmatprep.mubr.bf16.mxu0 0
    %2406 = vmatmul.mubr.bf16.gmra.mrb[0].mxu0 %v2371
    %v2407 = vpop.f32.mrb[0].mxu0
    %v2408 = vadd.f32 %v1284, %v2407
    %v2409 = vpop.f32.mrb[0].mxu0
    %v2410 = vadd.f32 %v1288, %v2409
    %v2411 = vpop.f32.mrb[0].mxu0
    %v2412 = vpop.f32.mrb[0].mxu0
    %2413 = vdwg.mxu0
    %v2414 = vmul.f32 %v2408, 0.5
    %v2415 = vtanh.pop %v2414
    %v2416 = vmul.f32 %v2415, 0.5
    %v2417 = vadd.f32 %v2416, 0.5
    %v2418 = vtanh.pop %v2410
    %v2419 = vmul.f32 %v2410, 0.5
    %v2420 = vtanh.pop %v2419
    %v2421 = vmul.f32 %v2420, 0.5
    %v2422 = vadd.f32 %v2421, 0.5
    %v2423 = vmul.f32 %v2417, %v2274
    %v2424 = vmul.f32 %v2417, %v2418
    %2426 = vrot.lane.b32.xlu0 %v2424, 64
    %v2427 = vpop.permute.xlu0 %2426
    %v2429 = vadd.f32 %v2423, %v2427
    %v2430 = vtanh.pop %v2429
    %v2431 = vmul.f32 %v2422, %v2430
    %2433 = vrot.lane.b32.xlu0 %v2431, 64
    %v2434 = vpop.permute.xlu0 %2433
    %2436 = vst.msk [vmem:[#allocation3 + $0x7] sm:$0x1] %vm269, %v2434
    %v2437 = vld [vmem:[#allocation3] sm:$0xff]
    %v2438 = vpack.c.bf16 %v2437, %v2437
    %v2439 = vld [vmem:[%s6] sm:$0xf]
    %v2440 = vld [vmem:[%s6 + $0x4] sm:$0xf]
    %v2441 = vld [vmem:[%s6 + $0x8] sm:$0xf]
    %v2442 = vld [vmem:[%s6 + $0xc] sm:$0xf]
    %v2443 = vld [vmem:[%s6 + $0x10] sm:$0xf]
    %v2444 = vld [vmem:[%s6 + $0x14] sm:$0xf]
    %v2445 = vld [vmem:[%s6 + $0x18] sm:$0xf]
    %v2446 = vld [vmem:[%s6 + $0x1c] sm:$0xf]
    %v2447 = vld [vmem:[%s7] sm:$0x1]
    %v2449 = vlaneseq
    %v2450 = vshrl.u32 %v2449, 7
    %v2451 = vsub.s32 0, %v2450
    %v2452 = vrot.slane %v2447, %v2451
    %v2462 = vunpack.c.l.b16 %v2439
    %v2463 = vunpack.c.l.b16 %v2440
    %v2464 = vunpack.c.l.b16 %v2441
    %v2465 = vunpack.c.l.b16 %v2442
    %v2466 = vunpack.c.l.b16 %v2443
    %v2467 = vunpack.c.l.b16 %v2444
    %v2468 = vunpack.c.l.b16 %v2445
    %v2469 = vunpack.c.l.b16 %v2446
    %v2470 = vpack.c.b16 %v2463, %v2462
    %v2471 = vpack.c.b16 %v2465, %v2464
    %v2472 = vpack.c.b16 %v2467, %v2466
    %v2473 = vpack.c.b16 %v2469, %v2468
    %v2479 = vsel %vm200, %v2438, 0
    %2481 = vmatprep.subr.bf16.mxu0 0
    %2482 = vmatpush1.bf16.msra.mxu0 %v2470
    %2483 = vmatprep.subr.bf16.mxu0 0
    %2484 = vmatpush1.bf16.msra.mxu0 %v2471
    %2485 = vmatprep.subr.bf16.mxu0 0
    %2486 = vmatpush1.bf16.msra.mxu0 %v2472
    %2487 = vmatprep.subr.bf16.mxu0 0
    %2488 = vmatpush1.bf16.msra.mxu0 %v2473
    %2489 = vmatprep.subr.bf16.mxu0 0
    %2490 = vmatpush1.bf16.msra.mxu0 0
    %2491 = vmatprep.subr.bf16.mxu0 0
    %2492 = vmatpush1.bf16.msra.mxu0 0
    %2493 = vmatprep.subr.bf16.mxu0 0
    %2494 = vmatpush1.bf16.msra.mxu0 0
    %2495 = vmatprep.subr.bf16.mxu0 0
    %2496 = vmatpush1.bf16.msra.mxu0 0
    %2497 = vmatprep.subr.bf16.mxu0 0
    %2498 = vmatpush1.bf16.msra.mxu0 0
    %2499 = vmatprep.subr.bf16.mxu0 0
    %2500 = vmatpush1.bf16.msra.mxu0 0
    %2501 = vmatprep.subr.bf16.mxu0 0
    %2502 = vmatpush1.bf16.msra.mxu0 0
    %2503 = vmatprep.subr.bf16.mxu0 0
    %2504 = vmatpush1.bf16.msra.mxu0 0
    %2505 = vmatprep.subr.bf16.mxu0 0
    %2506 = vmatpush1.bf16.msra.mxu0 0
    %2507 = vmatprep.subr.bf16.mxu0 0
    %2508 = vmatpush1.bf16.msra.mxu0 0
    %2509 = vmatprep.subr.bf16.mxu0 0
    %2510 = vmatpush1.bf16.msra.mxu0 0
    %2511 = vmatprep.subr.bf16.mxu0 0
    %2512 = vmatpush1.bf16.msra.mxu0 0
    %2513 = vmatprep.mubr.bf16.mxu0 0
    %2514 = vmatmul.mubr.bf16.gmra.mrb[0].mxu0 %v2479
    %v2515 = vpop.f32.mrb[0].mxu0
    %v2516 = vadd.f32 %v2452, %v2515
    %v2517 = vpop.f32.mrb[0].mxu0
    %v2518 = vpop.f32.mrb[0].mxu0
    %v2519 = vpop.f32.mrb[0].mxu0
    %2520 = vdwg.mxu0
    %2522 = vrot.lane.b32.xlu0 %v2516, 112
    %v2523 = vpop.permute.xlu0 %2522
    %2525 = vst.msk [vmem:[#allocation7] sm:$0xff] %vm115, %v2523
    // Predicated region
    $region38: #{tpu_custom_call.1} parent=1 // pred_check
      _
    $region39: #{tpu_custom_call.1} parent=1 // pred_check_branch
      %2527 = sbr.rel (0) target = $region41
    $region40: #{tpu_custom_call.1} parent=1 // pred_region
      %s2529 = ssub.s32 128, 128
      %2530 = vsyncadd [#allocation6], %s2529
      %s2532 = sshll.u32 [#allocation7], 4
      %s2533 = int_to_ptr.vmem [resolvable:$true] %s2532
      %2535 = dma.vmem_to_hbm [thread:$0]  %s2533, 128, %s8, [#allocation6]
    $region41: #{tpu_custom_call.1} parent=1 // pred_fallthru
      _
    // Predicated region
    $region42: #{tpu_custom_call.1} parent=1 // pred_check
      _
    $region43: #{tpu_custom_call.1} parent=1 // pred_check_branch
      %2537 = sbr.rel (0) target = $region45
    $region44: #{tpu_custom_call.1} parent=1 // pred_region
      %s2539 = ssub.s32 128, 128
      %2540 = vsyncadd [#allocation9], %s2539
      %s2542 = sshll.u32 [#allocation8], 4
      %s2543 = int_to_ptr.vmem [resolvable:$true] %s2542
      %2545 = dma.vmem_to_hbm [thread:$0]  %s2543, 128, %s9, [#allocation9]
    $region45: #{tpu_custom_call.1} parent=1 // pred_fallthru
      _
    // Predicated region
    $region46: #{tpu_custom_call.1} parent=1 // pred_check
      _
    $region47: #{tpu_custom_call.1} parent=1 // pred_check_branch
      %2547 = sbr.rel (0) target = $region49
    $region48: #{tpu_custom_call.1} parent=1 // pred_region
      %2548 = dma.done [#allocation6], 128
    $region49: #{tpu_custom_call.1} parent=1 // pred_fallthru
      _
    // Predicated region
    $region50: #{tpu_custom_call.1} parent=1 // pred_check
      _
    $region51: #{tpu_custom_call.1} parent=1 // pred_check_branch
      %2550 = sbr.rel (0) target = $region53
    $region52: #{tpu_custom_call.1} parent=1 // pred_region
      %2551 = dma.done [#allocation9], 128
    $region53: #{tpu_custom_call.1} parent=1 // pred_fallthru
      _
    %2552 = vsyncpa [#allocation5], 1
    %2553 = vsyncpa [#allocation6], 1
    %2554 = vsyncpa [#allocation9], 1

</llo_original>
